<compile_context>
chip_gen: v7x
topology: tpu7x:2x2x1
jax: 0.10.0
libtpu: 0.0.40
codegen_flags: <defaults>
</compile_context>

<pallas_src>
import functools
import math

import jax
import jax.numpy as jnp
from jax import lax
from jax.experimental import pallas as pl
from jax.experimental.pallas import tpu as pltpu

HIDDEN = 64              # PyTorch hidden size per layer
LANES = 2 * HIDDEN       # 128: [layer-0 | layer-1] packed into one vreg lane span
GCOLS = 4 * LANES        # 512: gate slabs i|f|g|o, each 128 lanes (64 per layer)


# --------------------------------------------------------------------------
# Fused kernel: interleaved 2-layer LSTM + output Linear, all in VMEM.
# --------------------------------------------------------------------------
def _fused_lstm_dqn_kernel(T, Bp, x_ref, wih0_ref, b0_ref, b1_ref,
                           wrec_ref, wout_ref, bout_ref, o_ref,
                           xg_sc, h_sc, c_sc):
    H2 = LANES

    # ---- precompute layer-0 input projections for all timesteps (one MXU pass)
    acts = jnp.dot(x_ref[...], wih0_ref[...], preferred_element_type=jnp.float32)
    b0 = b0_ref[...]
    b1 = b1_ref[...]
    # Skewed schedule: iteration k (k = 0..T) consumes xg row-block k:
    #   k = 0       : layer-0 step 0 only      -> x[0]@Wih0 + b0   (layer-1 preact 0)
    #   1 <= k <= T-1: layer-0 step k + layer-1 step k-1 -> x[k]@Wih0 + b0 + b1
    #   k = T       : layer-1 step T-1 only    -> b1               (layer-0 half unused)
    xg_sc[pl.ds(0, Bp), :] = acts[:Bp, :] + b0
    if T > 1:
        xg_sc[pl.ds(Bp, (T - 1) * Bp), :] = acts[Bp:, :] + (b0 + b1)
    xg_sc[pl.ds(T * Bp, Bp), :] = jnp.broadcast_to(b1, (Bp, GCOLS))

    h_sc[...] = jnp.zeros_like(h_sc)   # packed [h0 | h1]
    c_sc[...] = jnp.zeros_like(c_sc)   # packed [c0 | c1]

    def step(k, carry):
        base = pl.multiple_of(k * Bp, Bp)
        # One fused recurrent matmul per step: covers layer-0 recurrence,
        # layer-1 input projection and layer-1 recurrence simultaneously.
        gates = xg_sc[pl.ds(base, Bp), :] + jnp.dot(
            h_sc[...], wrec_ref[...], preferred_element_type=jnp.float32)
        # Dense gate lanes: each 128-lane slab is [layer0 | layer1] of one gate,
        # so every transcendental below runs on a full vreg, no pad lanes.
        i_g = jax.nn.sigmoid(gates[:, 0 * H2:1 * H2])
        f_g = jax.nn.sigmoid(gates[:, 1 * H2:2 * H2])
        g_g = jnp.tanh(gates[:, 2 * H2:3 * H2])
        o_g = jax.nn.sigmoid(gates[:, 3 * H2:4 * H2])
        c_new = f_g * c_sc[...] + i_g * g_g
        h_new = o_g * jnp.tanh(c_new)
        c_sc[...] = c_new
        h_sc[...] = h_new
        return carry

    # T+1 skewed steps cover layer-0 steps 0..T-1 and layer-1 steps 0..T-1.
    unroll = True if T + 1 <= 16 else 8
    lax.fori_loop(0, T + 1, step, None, unroll=unroll)

    # Output Linear on h1[T-1] (lanes 64..127 of packed h; Wout rows 0..63 are 0,
    # so the stale layer-0 half contributes nothing).
    o_ref[...] = jnp.dot(h_sc[...], wout_ref[...],
                         preferred_element_type=jnp.float32) + bout_ref[...]


def _fused_call(x2d, packed, T, Bp):
    kernel = functools.partial(_fused_lstm_dqn_kernel, T, Bp)
    vmem = lambda: pl.BlockSpec(memory_space=pltpu.MemorySpace.VMEM)
    f32 = jnp.float32
    opad = packed["bout"].shape[-1]

    # Explicit VMEM budget (matters on v7x's 64 MiB physical / 32 MiB scoped default).
    def nbytes(shape):
        return int(math.prod(shape)) * 4
    need = (nbytes(x2d.shape)
            + sum(nbytes(v.shape) for v in packed.values())
            + nbytes((Bp, opad))
            + nbytes(((T + 1) * Bp, GCOLS)) + 2 * nbytes((Bp, LANES)))
    vmem_limit = min(max(need + (4 << 20), 16 << 20), 64 << 20)
    # TODO(synk): for very long sequences, time-chunk the xg scratch (emit_pipeline
    # over time blocks) instead of keeping the whole ((T+1)*Bp, 512) buffer resident.

    return pl.pallas_call(
        kernel,
        out_shape=jax.ShapeDtypeStruct((Bp, opad), f32),
        in_specs=[vmem() for _ in range(7)],
        out_specs=vmem(),
        scratch_shapes=[
            pltpu.VMEM(((T + 1) * Bp, GCOLS), f32),  # per-step gate preactivations
            pltpu.VMEM((Bp, LANES), f32),            # packed [h0 | h1]
            pltpu.VMEM((Bp, LANES), f32),            # packed [c0 | c1]
        ],
        compiler_params=pltpu.CompilerParams(vmem_limit_bytes=vmem_limit),
    )(x2d, packed["wih0"], packed["b0"], packed["b1"],
      packed["wrec"], packed["wout"], packed["bout"])


# --------------------------------------------------------------------------
# Parameter init (PyTorch layout) and one-time host-side packing.
# --------------------------------------------------------------------------
def init_params(key, input_size, output_size):
    """Deterministic init mimicking PyTorch's U(-1/sqrt(H), 1/sqrt(H))."""
    H = HIDDEN
    k = 1.0 / math.sqrt(H)
    keys = jax.random.split(key, 10)
    u = lambda kk, shape: jax.random.uniform(kk, shape, jnp.float32, -k, k)
    return {
        "w_ih0": u(keys[0], (4 * H, input_size)),
        "w_hh0": u(keys[1], (4 * H, H)),
        "b_ih0": u(keys[2], (4 * H,)),
        "b_hh0": u(keys[3], (4 * H,)),
        "w_ih1": u(keys[4], (4 * H, H)),
        "w_hh1": u(keys[5], (4 * H, H)),
        "b_ih1": u(keys[6], (4 * H,)),
        "b_hh1": u(keys[7], (4 * H,)),
        "w_out": u(keys[8], (output_size, H)),
        "b_out": u(keys[9], (output_size,)),
    }


def pack_params(params):
    """Pack weights ONCE into the layer-packed, lane-dense layout the kernel wants."""
    H = HIDDEN

    def place_gates(w_t, layer):
        # w_t: (rows, 4H), PyTorch gate order i|f|g|o along columns.
        # Gate gi of `layer` lands in columns [gi*128 + layer*64, +64).
        rows = w_t.shape[0]
        out = jnp.zeros((rows, GCOLS), jnp.float32)
        for gi in range(4):
            blk = w_t[:, gi * H:(gi + 1) * H]
            col = gi * 2 * H + layer * H
            out = out.at[:, col:col + H].set(blk)
        return out

    # Fused recurrent weight: rows 0..63 multiply h0, rows 64..127 multiply h1.
    wrec_top = place_gates(params["w_hh0"].T, 0) + place_gates(params["w_ih1"].T, 1)
    wrec_bot = place_gates(params["w_hh1"].T, 1)
    wrec = jnp.concatenate([wrec_top, wrec_bot], axis=0)                  # (128, 512)

    w_out_t = params["w_out"].T                                           # (H, O)
    out_size = w_out_t.shape[1]
    opad = ((out_size + 127) // 128) * 128                                # lane-dense out
    wout = jnp.zeros((LANES, opad), jnp.float32)
    wout = wout.at[H:2 * H, :out_size].set(w_out_t)                       # h1 lanes 64..127
    bout = jnp.zeros((1, opad), jnp.float32).at[0, :out_size].set(params["b_out"])

    packed = {
        "wih0": place_gates(params["w_ih0"].T, 0),                             # (D, 512)
        "b0":   place_gates((params["b_ih0"] + params["b_hh0"])[None, :], 0),  # (1, 512)
        "b1":   place_gates((params["b_ih1"] + params["b_hh1"])[None, :], 1),  # (1, 512)
        "wrec": wrec,                                                          # (128, 512)
        "wout": wout,                                                          # (128, OPAD)
        "bout": bout,                                                          # (1, OPAD)
    }
    return jax.tree_util.tree_map(lambda a: a.astype(jnp.float32), packed)


@functools.partial(jax.jit, static_argnames=("output_size",))
def lstm_dqn_forward(packed, x_bt, *, output_size):
    """x_bt: (B, T, input_size) float32 -> (B, output_size)."""
    B, T, D = x_bt.shape
    Bp = ((B + 7) // 8) * 8                      # pad batch to sublane width
    x = jnp.transpose(x_bt, (1, 0, 2))           # time-major (T, B, D)
    x = jnp.pad(x, ((0, 0), (0, Bp - B), (0, 0)))
    x2d = x.reshape(T * Bp, D)                   # rows grouped per timestep
    out = _fused_call(x2d, packed, T, Bp)
    return out[:B, :output_size]


# --------------------------------------------------------------------------
# Pure-JAX reference (for correctness check)
# --------------------------------------------------------------------------
def _ref_lstm_layer(x_tbd, w_ih, w_hh, b_ih, b_hh):
    T, B, _ = x_tbd.shape
    H = HIDDEN
    h = jnp.zeros((B, H), jnp.float32)
    c = jnp.zeros((B, H), jnp.float32)
    outs = []
    for t in range(T):
        g = x_tbd[t] @ w_ih.T + b_ih + h @ w_hh.T + b_hh
        i = jax.nn.sigmoid(g[:, 0 * H:1 * H])
        f = jax.nn.sigmoid(g[:, 1 * H:2 * H])
        gg = jnp.tanh(g[:, 2 * H:3 * H])
        o = jax.nn.sigmoid(g[:, 3 * H:4 * H])
        c = f * c + i * gg
        h = o * jnp.tanh(c)
        outs.append(h)
    return jnp.stack(outs, 0)


def ref_forward(params, x_bt):
    x = jnp.transpose(x_bt, (1, 0, 2))
    h0 = _ref_lstm_layer(x, params["w_ih0"], params["w_hh0"],
                         params["b_ih0"], params["b_hh0"])
    h1 = _ref_lstm_layer(h0, params["w_ih1"], params["w_hh1"],
                         params["b_ih1"], params["b_hh1"])
    return h1[-1] @ params["w_out"].T + params["b_out"]


if __name__ == "__main__":
    B, T, INPUT_SIZE, OUTPUT_SIZE = 2, 8, 16, 4

    key = jax.random.PRNGKey(0)
    pkey, xkey = jax.random.split(key)
    params = init_params(pkey, INPUT_SIZE, OUTPUT_SIZE)
    packed = pack_params(params)          # one-time host-side weight packing
    x = jax.random.normal(xkey, (B, T, INPUT_SIZE), jnp.float32)

    out = jax.block_until_ready(lstm_dqn_forward(packed, x, output_size=OUTPUT_SIZE))
    ref = ref_forward(params, x)

    assert out.shape == (B, OUTPUT_SIZE)
    assert jnp.allclose(out, ref, atol=1e-4, rtol=1e-4), (out, ref)

    print("KERNEL_OK")
</pallas_src>

<mosaic_0001>
module attributes {stable_mosaic.version = 11 : i64} {
  func.func @_fused_lstm_dqn_kernel(%arg0: memref<64x16xf32, #tpu.memory_space<vmem>>, %arg1: memref<16x512xf32, #tpu.memory_space<vmem>>, %arg2: memref<1x512xf32, #tpu.memory_space<vmem>>, %arg3: memref<1x512xf32, #tpu.memory_space<vmem>>, %arg4: memref<128x512xf32, #tpu.memory_space<vmem>>, %arg5: memref<128x128xf32, #tpu.memory_space<vmem>>, %arg6: memref<1x128xf32, #tpu.memory_space<vmem>>, %arg7: memref<8x128xf32, #tpu.memory_space<vmem>>, %arg8: memref<72x512xf32, #tpu.memory_space<vmem>>, %arg9: memref<8x128xf32, #tpu.memory_space<vmem>>, %arg10: memref<8x128xf32, #tpu.memory_space<vmem>>) attributes {dimension_semantics = [], scalar_prefetch = 0 : i64, scratch_operands = 3 : i64, tpu.core_type = #tpu.core_type<tc>} {
    %c0 = arith.constant 0 : index
    %c0_0 = arith.constant 0 : index
    %0 = vector.load %arg0[%c0, %c0_0] : memref<64x16xf32, #tpu.memory_space<vmem>>, vector<64x16xf32>
    %c0_1 = arith.constant 0 : index
    %c0_2 = arith.constant 0 : index
    %1 = vector.load %arg1[%c0_1, %c0_2] : memref<16x512xf32, #tpu.memory_space<vmem>>, vector<16x512xf32>
    %cst = arith.constant dense<0.000000e+00> : vector<64x512xf32>
    %2 = tpu.matmul %0, %1, %cst {dimension_numbers = #tpu.dot_dimension_numbers<[1], [0], [0], [1], [0, 0, 1, 1], [], []>} : vector<64x16xf32>, vector<16x512xf32>, vector<64x512xf32> -> vector<64x512xf32>
    %c0_3 = arith.constant 0 : index
    %c0_4 = arith.constant 0 : index
    %3 = vector.load %arg2[%c0_3, %c0_4] : memref<1x512xf32, #tpu.memory_space<vmem>>, vector<1x512xf32>
    %c0_5 = arith.constant 0 : index
    %c0_6 = arith.constant 0 : index
    %4 = vector.load %arg3[%c0_5, %c0_6] : memref<1x512xf32, #tpu.memory_space<vmem>>, vector<1x512xf32>
    %5 = vector.extract_strided_slice %2 {offsets = [0, 0], sizes = [8, 512], strides = [1, 1]} : vector<64x512xf32> to vector<8x512xf32>
    %6 = vector.broadcast %3 : vector<1x512xf32> to vector<8x512xf32>
    %7 = arith.addf %5, %6 : vector<8x512xf32>
    %c0_7 = arith.constant 0 : index
    %c0_8 = arith.constant 0 : index
    %8 = vector.load %arg8[%c0_7, %c0_8] : memref<72x512xf32, #tpu.memory_space<vmem>>, vector<8x512xf32>
    tpu.vector_store %arg8[%c0_7, %c0_8], %7 {strides = array<i32>} : memref<72x512xf32, #tpu.memory_space<vmem>>, vector<8x512xf32>,
    %9 = vector.extract_strided_slice %2 {offsets = [8, 0], sizes = [56, 512], strides = [1, 1]} : vector<64x512xf32> to vector<56x512xf32>
    %10 = arith.addf %3, %4 : vector<1x512xf32>
    %11 = vector.broadcast %10 : vector<1x512xf32> to vector<56x512xf32>
    %12 = arith.addf %9, %11 : vector<56x512xf32>
    %c8 = arith.constant 8 : index
    %c0_9 = arith.constant 0 : index
    %13 = vector.load %arg8[%c8, %c0_9] : memref<72x512xf32, #tpu.memory_space<vmem>>, vector<56x512xf32>
    tpu.vector_store %arg8[%c8, %c0_9], %12 {strides = array<i32>} : memref<72x512xf32, #tpu.memory_space<vmem>>, vector<56x512xf32>,
    %14 = vector.shape_cast %4 : vector<1x512xf32> to vector<1x512xf32>
    %15 = vector.broadcast %14 : vector<1x512xf32> to vector<8x512xf32>
    %c64 = arith.constant 64 : index
    %c0_10 = arith.constant 0 : index
    %16 = vector.load %arg8[%c64, %c0_10] : memref<72x512xf32, #tpu.memory_space<vmem>>, vector<8x512xf32>
    tpu.vector_store %arg8[%c64, %c0_10], %15 {strides = array<i32>} : memref<72x512xf32, #tpu.memory_space<vmem>>, vector<8x512xf32>,
    %cst_11 = arith.constant 0.000000e+00 : f32
    %17 = vector.broadcast %cst_11 : f32 to vector<8x128xf32>
    %c0_12 = arith.constant 0 : index
    %c0_13 = arith.constant 0 : index
    %18 = vector.load %arg9[%c0_12, %c0_13] : memref<8x128xf32, #tpu.memory_space<vmem>>, vector<8x128xf32>
    tpu.vector_store %arg9[%c0_12, %c0_13], %17 {strides = array<i32>} : memref<8x128xf32, #tpu.memory_space<vmem>>, vector<8x128xf32>,
    %cst_14 = arith.constant 0.000000e+00 : f32
    %19 = vector.broadcast %cst_14 : f32 to vector<8x128xf32>
    %c0_15 = arith.constant 0 : index
    %c0_16 = arith.constant 0 : index
    %20 = vector.load %arg10[%c0_15, %c0_16] : memref<8x128xf32, #tpu.memory_space<vmem>>, vector<8x128xf32>
    tpu.vector_store %arg10[%c0_15, %c0_16], %19 {strides = array<i32>} : memref<8x128xf32, #tpu.memory_space<vmem>>, vector<8x128xf32>,
    %c0_i32 = arith.constant 0 : i32
    %c8_i32 = arith.constant 8 : i32
    %21 = arith.muli %c0_i32, %c8_i32 : i32
    %22 = tpu.assume_multiple %21, 8 : i32
    %23 = arith.index_cast %22 : i32 to index
    %c0_17 = arith.constant 0 : index
    %24 = vector.load %arg8[%23, %c0_17] : memref<72x512xf32, #tpu.memory_space<vmem>>, vector<8x512xf32>
    %c0_18 = arith.constant 0 : index
    %c0_19 = arith.constant 0 : index
    %25 = vector.load %arg9[%c0_18, %c0_19] : memref<8x128xf32, #tpu.memory_space<vmem>>, vector<8x128xf32>
    %c0_20 = arith.constant 0 : index
    %c0_21 = arith.constant 0 : index
    %26 = vector.load %arg4[%c0_20, %c0_21] : memref<128x512xf32, #tpu.memory_space<vmem>>, vector<128x512xf32>
    %cst_22 = arith.constant dense<0.000000e+00> : vector<8x512xf32>
    %27 = tpu.matmul %25, %26, %cst_22 {dimension_numbers = #tpu.dot_dimension_numbers<[1], [0], [0], [1], [0, 0, 1, 1], [], []>} : vector<8x128xf32>, vector<128x512xf32>, vector<8x512xf32> -> vector<8x512xf32>
    %28 = arith.addf %24, %27 : vector<8x512xf32>
    %29 = vector.extract_strided_slice %28 {offsets = [0, 0], sizes = [8, 128], strides = [1, 1]} : vector<8x512xf32> to vector<8x128xf32>
    %30 = arith.negf %29 : vector<8x128xf32>
    %31 = math.exp %30 : vector<8x128xf32>
    %cst_23 = arith.constant 1.000000e+00 : f32
    %32 = vector.broadcast %cst_23 : f32 to vector<8x128xf32>
    %33 = arith.addf %32, %31 : vector<8x128xf32>
    %34 = arith.divf %32, %33 : vector<8x128xf32>
    %35 = vector.extract_strided_slice %28 {offsets = [0, 128], sizes = [8, 128], strides = [1, 1]} : vector<8x512xf32> to vector<8x128xf32>
    %36 = arith.negf %35 : vector<8x128xf32>
    %37 = math.exp %36 : vector<8x128xf32>
    %cst_24 = arith.constant 1.000000e+00 : f32
    %38 = vector.broadcast %cst_24 : f32 to vector<8x128xf32>
    %39 = arith.addf %38, %37 : vector<8x128xf32>
    %40 = arith.divf %38, %39 : vector<8x128xf32>
    %41 = vector.extract_strided_slice %28 {offsets = [0, 256], sizes = [8, 128], strides = [1, 1]} : vector<8x512xf32> to vector<8x128xf32>
    %42 = math.tanh %41 : vector<8x128xf32>
    %43 = vector.extract_strided_slice %28 {offsets = [0, 384], sizes = [8, 128], strides = [1, 1]} : vector<8x512xf32> to vector<8x128xf32>
    %44 = arith.negf %43 : vector<8x128xf32>
    %45 = math.exp %44 : vector<8x128xf32>
    %cst_25 = arith.constant 1.000000e+00 : f32
    %46 = vector.broadcast %cst_25 : f32 to vector<8x128xf32>
    %47 = arith.addf %46, %45 : vector<8x128xf32>
    %48 = arith.divf %46, %47 : vector<8x128xf32>
    %c0_26 = arith.constant 0 : index
    %c0_27 = arith.constant 0 : index
    %49 = vector.load %arg10[%c0_26, %c0_27] : memref<8x128xf32, #tpu.memory_space<vmem>>, vector<8x128xf32>
    %50 = arith.mulf %40, %49 : vector<8x128xf32>
    %51 = arith.mulf %34, %42 : vector<8x128xf32>
    %52 = arith.addf %50, %51 : vector<8x128xf32>
    %53 = math.tanh %52 : vector<8x128xf32>
    %54 = arith.mulf %48, %53 : vector<8x128xf32>
    %c0_28 = arith.constant 0 : index
    %c0_29 = arith.constant 0 : index
    %55 = vector.load %arg10[%c0_28, %c0_29] : memref<8x128xf32, #tpu.memory_space<vmem>>, vector<8x128xf32>
    tpu.vector_store %arg10[%c0_28, %c0_29], %52 {strides = array<i32>} : memref<8x128xf32, #tpu.memory_space<vmem>>, vector<8x128xf32>,
    %c0_30 = arith.constant 0 : index
    %c0_31 = arith.constant 0 : index
    %56 = vector.load %arg9[%c0_30, %c0_31] : memref<8x128xf32, #tpu.memory_space<vmem>>, vector<8x128xf32>
    tpu.vector_store %arg9[%c0_30, %c0_31], %54 {strides = array<i32>} : memref<8x128xf32, #tpu.memory_space<vmem>>, vector<8x128xf32>,
    %c1_i32 = arith.constant 1 : i32
    %c8_i32_32 = arith.constant 8 : i32
    %57 = arith.muli %c1_i32, %c8_i32_32 : i32
    %58 = tpu.assume_multiple %57, 8 : i32
    %59 = arith.index_cast %58 : i32 to index
    %c0_33 = arith.constant 0 : index
    %60 = vector.load %arg8[%59, %c0_33] : memref<72x512xf32, #tpu.memory_space<vmem>>, vector<8x512xf32>
    %c0_34 = arith.constant 0 : index
    %c0_35 = arith.constant 0 : index
    %61 = vector.load %arg9[%c0_34, %c0_35] : memref<8x128xf32, #tpu.memory_space<vmem>>, vector<8x128xf32>
    %c0_36 = arith.constant 0 : index
    %c0_37 = arith.constant 0 : index
    %62 = vector.load %arg4[%c0_36, %c0_37] : memref<128x512xf32, #tpu.memory_space<vmem>>, vector<128x512xf32>
    %cst_38 = arith.constant dense<0.000000e+00> : vector<8x512xf32>
    %63 = tpu.matmul %61, %62, %cst_38 {dimension_numbers = #tpu.dot_dimension_numbers<[1], [0], [0], [1], [0, 0, 1, 1], [], []>} : vector<8x128xf32>, vector<128x512xf32>, vector<8x512xf32> -> vector<8x512xf32>
    %64 = arith.addf %60, %63 : vector<8x512xf32>
    %65 = vector.extract_strided_slice %64 {offsets = [0, 0], sizes = [8, 128], strides = [1, 1]} : vector<8x512xf32> to vector<8x128xf32>
    %66 = arith.negf %65 : vector<8x128xf32>
    %67 = math.exp %66 : vector<8x128xf32>
    %cst_39 = arith.constant 1.000000e+00 : f32
    %68 = vector.broadcast %cst_39 : f32 to vector<8x128xf32>
    %69 = arith.addf %68, %67 : vector<8x128xf32>
    %70 = arith.divf %68, %69 : vector<8x128xf32>
    %71 = vector.extract_strided_slice %64 {offsets = [0, 128], sizes = [8, 128], strides = [1, 1]} : vector<8x512xf32> to vector<8x128xf32>
    %72 = arith.negf %71 : vector<8x128xf32>
    %73 = math.exp %72 : vector<8x128xf32>
    %cst_40 = arith.constant 1.000000e+00 : f32
    %74 = vector.broadcast %cst_40 : f32 to vector<8x128xf32>
    %75 = arith.addf %74, %73 : vector<8x128xf32>
    %76 = arith.divf %74, %75 : vector<8x128xf32>
    %77 = vector.extract_strided_slice %64 {offsets = [0, 256], sizes = [8, 128], strides = [1, 1]} : vector<8x512xf32> to vector<8x128xf32>
    %78 = math.tanh %77 : vector<8x128xf32>
    %79 = vector.extract_strided_slice %64 {offsets = [0, 384], sizes = [8, 128], strides = [1, 1]} : vector<8x512xf32> to vector<8x128xf32>
    %80 = arith.negf %79 : vector<8x128xf32>
    %81 = math.exp %80 : vector<8x128xf32>
    %cst_41 = arith.constant 1.000000e+00 : f32
    %82 = vector.broadcast %cst_41 : f32 to vector<8x128xf32>
    %83 = arith.addf %82, %81 : vector<8x128xf32>
    %84 = arith.divf %82, %83 : vector<8x128xf32>
    %c0_42 = arith.constant 0 : index
    %c0_43 = arith.constant 0 : index
    %85 = vector.load %arg10[%c0_42, %c0_43] : memref<8x128xf32, #tpu.memory_space<vmem>>, vector<8x128xf32>
    %86 = arith.mulf %76, %85 : vector<8x128xf32>
    %87 = arith.mulf %70, %78 : vector<8x128xf32>
    %88 = arith.addf %86, %87 : vector<8x128xf32>
    %89 = math.tanh %88 : vector<8x128xf32>
    %90 = arith.mulf %84, %89 : vector<8x128xf32>
    %c0_44 = arith.constant 0 : index
    %c0_45 = arith.constant 0 : index
    %91 = vector.load %arg10[%c0_44, %c0_45] : memref<8x128xf32, #tpu.memory_space<vmem>>, vector<8x128xf32>
    tpu.vector_store %arg10[%c0_44, %c0_45], %88 {strides = array<i32>} : memref<8x128xf32, #tpu.memory_space<vmem>>, vector<8x128xf32>,
    %c0_46 = arith.constant 0 : index
    %c0_47 = arith.constant 0 : index
    %92 = vector.load %arg9[%c0_46, %c0_47] : memref<8x128xf32, #tpu.memory_space<vmem>>, vector<8x128xf32>
    tpu.vector_store %arg9[%c0_46, %c0_47], %90 {strides = array<i32>} : memref<8x128xf32, #tpu.memory_space<vmem>>, vector<8x128xf32>,
    %c2_i32 = arith.constant 2 : i32
    %c8_i32_48 = arith.constant 8 : i32
    %93 = arith.muli %c2_i32, %c8_i32_48 : i32
    %94 = tpu.assume_multiple %93, 8 : i32
    %95 = arith.index_cast %94 : i32 to index
    %c0_49 = arith.constant 0 : index
    %96 = vector.load %arg8[%95, %c0_49] : memref<72x512xf32, #tpu.memory_space<vmem>>, vector<8x512xf32>
    %c0_50 = arith.constant 0 : index
    %c0_51 = arith.constant 0 : index
    %97 = vector.load %arg9[%c0_50, %c0_51] : memref<8x128xf32, #tpu.memory_space<vmem>>, vector<8x128xf32>
    %c0_52 = arith.constant 0 : index
    %c0_53 = arith.constant 0 : index
    %98 = vector.load %arg4[%c0_52, %c0_53] : memref<128x512xf32, #tpu.memory_space<vmem>>, vector<128x512xf32>
    %cst_54 = arith.constant dense<0.000000e+00> : vector<8x512xf32>
    %99 = tpu.matmul %97, %98, %cst_54 {dimension_numbers = #tpu.dot_dimension_numbers<[1], [0], [0], [1], [0, 0, 1, 1], [], []>} : vector<8x128xf32>, vector<128x512xf32>, vector<8x512xf32> -> vector<8x512xf32>
    %100 = arith.addf %96, %99 : vector<8x512xf32>
    %101 = vector.extract_strided_slice %100 {offsets = [0, 0], sizes = [8, 128], strides = [1, 1]} : vector<8x512xf32> to vector<8x128xf32>
    %102 = arith.negf %101 : vector<8x128xf32>
    %103 = math.exp %102 : vector<8x128xf32>
    %cst_55 = arith.constant 1.000000e+00 : f32
    %104 = vector.broadcast %cst_55 : f32 to vector<8x128xf32>
    %105 = arith.addf %104, %103 : vector<8x128xf32>
    %106 = arith.divf %104, %105 : vector<8x128xf32>
    %107 = vector.extract_strided_slice %100 {offsets = [0, 128], sizes = [8, 128], strides = [1, 1]} : vector<8x512xf32> to vector<8x128xf32>
    %108 = arith.negf %107 : vector<8x128xf32>
    %109 = math.exp %108 : vector<8x128xf32>
    %cst_56 = arith.constant 1.000000e+00 : f32
    %110 = vector.broadcast %cst_56 : f32 to vector<8x128xf32>
    %111 = arith.addf %110, %109 : vector<8x128xf32>
    %112 = arith.divf %110, %111 : vector<8x128xf32>
    %113 = vector.extract_strided_slice %100 {offsets = [0, 256], sizes = [8, 128], strides = [1, 1]} : vector<8x512xf32> to vector<8x128xf32>
    %114 = math.tanh %113 : vector<8x128xf32>
    %115 = vector.extract_strided_slice %100 {offsets = [0, 384], sizes = [8, 128], strides = [1, 1]} : vector<8x512xf32> to vector<8x128xf32>
    %116 = arith.negf %115 : vector<8x128xf32>
    %117 = math.exp %116 : vector<8x128xf32>
    %cst_57 = arith.constant 1.000000e+00 : f32
    %118 = vector.broadcast %cst_57 : f32 to vector<8x128xf32>
    %119 = arith.addf %118, %117 : vector<8x128xf32>
    %120 = arith.divf %118, %119 : vector<8x128xf32>
    %c0_58 = arith.constant 0 : index
    %c0_59 = arith.constant 0 : index
    %121 = vector.load %arg10[%c0_58, %c0_59] : memref<8x128xf32, #tpu.memory_space<vmem>>, vector<8x128xf32>
    %122 = arith.mulf %112, %121 : vector<8x128xf32>
    %123 = arith.mulf %106, %114 : vector<8x128xf32>
    %124 = arith.addf %122, %123 : vector<8x128xf32>
    %125 = math.tanh %124 : vector<8x128xf32>
    %126 = arith.mulf %120, %125 : vector<8x128xf32>
    %c0_60 = arith.constant 0 : index
    %c0_61 = arith.constant 0 : index
    %127 = vector.load %arg10[%c0_60, %c0_61] : memref<8x128xf32, #tpu.memory_space<vmem>>, vector<8x128xf32>
    tpu.vector_store %arg10[%c0_60, %c0_61], %124 {strides = array<i32>} : memref<8x128xf32, #tpu.memory_space<vmem>>, vector<8x128xf32>,
    %c0_62 = arith.constant 0 : index
    %c0_63 = arith.constant 0 : index
    %128 = vector.load %arg9[%c0_62, %c0_63] : memref<8x128xf32, #tpu.memory_space<vmem>>, vector<8x128xf32>
    tpu.vector_store %arg9[%c0_62, %c0_63], %126 {strides = array<i32>} : memref<8x128xf32, #tpu.memory_space<vmem>>, vector<8x128xf32>,
    %c3_i32 = arith.constant 3 : i32
    %c8_i32_64 = arith.constant 8 : i32
    %129 = arith.muli %c3_i32, %c8_i32_64 : i32
    %130 = tpu.assume_multiple %129, 8 : i32
    %131 = arith.index_cast %130 : i32 to index
    %c0_65 = arith.constant 0 : index
    %132 = vector.load %arg8[%131, %c0_65] : memref<72x512xf32, #tpu.memory_space<vmem>>, vector<8x512xf32>
    %c0_66 = arith.constant 0 : index
    %c0_67 = arith.constant 0 : index
    %133 = vector.load %arg9[%c0_66, %c0_67] : memref<8x128xf32, #tpu.memory_space<vmem>>, vector<8x128xf32>
    %c0_68 = arith.constant 0 : index
    %c0_69 = arith.constant 0 : index
    %134 = vector.load %arg4[%c0_68, %c0_69] : memref<128x512xf32, #tpu.memory_space<vmem>>, vector<128x512xf32>
    %cst_70 = arith.constant dense<0.000000e+00> : vector<8x512xf32>
    %135 = tpu.matmul %133, %134, %cst_70 {dimension_numbers = #tpu.dot_dimension_numbers<[1], [0], [0], [1], [0, 0, 1, 1], [], []>} : vector<8x128xf32>, vector<128x512xf32>, vector<8x512xf32> -> vector<8x512xf32>
    %136 = arith.addf %132, %135 : vector<8x512xf32>
    %137 = vector.extract_strided_slice %136 {offsets = [0, 0], sizes = [8, 128], strides = [1, 1]} : vector<8x512xf32> to vector<8x128xf32>
    %138 = arith.negf %137 : vector<8x128xf32>
    %139 = math.exp %138 : vector<8x128xf32>
    %cst_71 = arith.constant 1.000000e+00 : f32
    %140 = vector.broadcast %cst_71 : f32 to vector<8x128xf32>
    %141 = arith.addf %140, %139 : vector<8x128xf32>
    %142 = arith.divf %140, %141 : vector<8x128xf32>
    %143 = vector.extract_strided_slice %136 {offsets = [0, 128], sizes = [8, 128], strides = [1, 1]} : vector<8x512xf32> to vector<8x128xf32>
    %144 = arith.negf %143 : vector<8x128xf32>
    %145 = math.exp %144 : vector<8x128xf32>
    %cst_72 = arith.constant 1.000000e+00 : f32
    %146 = vector.broadcast %cst_72 : f32 to vector<8x128xf32>
    %147 = arith.addf %146, %145 : vector<8x128xf32>
    %148 = arith.divf %146, %147 : vector<8x128xf32>
    %149 = vector.extract_strided_slice %136 {offsets = [0, 256], sizes = [8, 128], strides = [1, 1]} : vector<8x512xf32> to vector<8x128xf32>
    %150 = math.tanh %149 : vector<8x128xf32>
    %151 = vector.extract_strided_slice %136 {offsets = [0, 384], sizes = [8, 128], strides = [1, 1]} : vector<8x512xf32> to vector<8x128xf32>
    %152 = arith.negf %151 : vector<8x128xf32>
    %153 = math.exp %152 : vector<8x128xf32>
    %cst_73 = arith.constant 1.000000e+00 : f32
    %154 = vector.broadcast %cst_73 : f32 to vector<8x128xf32>
    %155 = arith.addf %154, %153 : vector<8x128xf32>
    %156 = arith.divf %154, %155 : vector<8x128xf32>
    %c0_74 = arith.constant 0 : index
    %c0_75 = arith.constant 0 : index
    %157 = vector.load %arg10[%c0_74, %c0_75] : memref<8x128xf32, #tpu.memory_space<vmem>>, vector<8x128xf32>
    %158 = arith.mulf %148, %157 : vector<8x128xf32>
    %159 = arith.mulf %142, %150 : vector<8x128xf32>
    %160 = arith.addf %158, %159 : vector<8x128xf32>
    %161 = math.tanh %160 : vector<8x128xf32>
    %162 = arith.mulf %156, %161 : vector<8x128xf32>
    %c0_76 = arith.constant 0 : index
    %c0_77 = arith.constant 0 : index
    %163 = vector.load %arg10[%c0_76, %c0_77] : memref<8x128xf32, #tpu.memory_space<vmem>>, vector<8x128xf32>
    tpu.vector_store %arg10[%c0_76, %c0_77], %160 {strides = array<i32>} : memref<8x128xf32, #tpu.memory_space<vmem>>, vector<8x128xf32>,
    %c0_78 = arith.constant 0 : index
    %c0_79 = arith.constant 0 : index
    %164 = vector.load %arg9[%c0_78, %c0_79] : memref<8x128xf32, #tpu.memory_space<vmem>>, vector<8x128xf32>
    tpu.vector_store %arg9[%c0_78, %c0_79], %162 {strides = array<i32>} : memref<8x128xf32, #tpu.memory_space<vmem>>, vector<8x128xf32>,
    %c4_i32 = arith.constant 4 : i32
    %c8_i32_80 = arith.constant 8 : i32
    %165 = arith.muli %c4_i32, %c8_i32_80 : i32
    %166 = tpu.assume_multiple %165, 8 : i32
    %167 = arith.index_cast %166 : i32 to index
    %c0_81 = arith.constant 0 : index
    %168 = vector.load %arg8[%167, %c0_81] : memref<72x512xf32, #tpu.memory_space<vmem>>, vector<8x512xf32>
    %c0_82 = arith.constant 0 : index
    %c0_83 = arith.constant 0 : index
    %169 = vector.load %arg9[%c0_82, %c0_83] : memref<8x128xf32, #tpu.memory_space<vmem>>, vector<8x128xf32>
    %c0_84 = arith.constant 0 : index
    %c0_85 = arith.constant 0 : index
    %170 = vector.load %arg4[%c0_84, %c0_85] : memref<128x512xf32, #tpu.memory_space<vmem>>, vector<128x512xf32>
    %cst_86 = arith.constant dense<0.000000e+00> : vector<8x512xf32>
    %171 = tpu.matmul %169, %170, %cst_86 {dimension_numbers = #tpu.dot_dimension_numbers<[1], [0], [0], [1], [0, 0, 1, 1], [], []>} : vector<8x128xf32>, vector<128x512xf32>, vector<8x512xf32> -> vector<8x512xf32>
    %172 = arith.addf %168, %171 : vector<8x512xf32>
    %173 = vector.extract_strided_slice %172 {offsets = [0, 0], sizes = [8, 128], strides = [1, 1]} : vector<8x512xf32> to vector<8x128xf32>
    %174 = arith.negf %173 : vector<8x128xf32>
    %175 = math.exp %174 : vector<8x128xf32>
    %cst_87 = arith.constant 1.000000e+00 : f32
    %176 = vector.broadcast %cst_87 : f32 to vector<8x128xf32>
    %177 = arith.addf %176, %175 : vector<8x128xf32>
    %178 = arith.divf %176, %177 : vector<8x128xf32>
    %179 = vector.extract_strided_slice %172 {offsets = [0, 128], sizes = [8, 128], strides = [1, 1]} : vector<8x512xf32> to vector<8x128xf32>
    %180 = arith.negf %179 : vector<8x128xf32>
    %181 = math.exp %180 : vector<8x128xf32>
    %cst_88 = arith.constant 1.000000e+00 : f32
    %182 = vector.broadcast %cst_88 : f32 to vector<8x128xf32>
    %183 = arith.addf %182, %181 : vector<8x128xf32>
    %184 = arith.divf %182, %183 : vector<8x128xf32>
    %185 = vector.extract_strided_slice %172 {offsets = [0, 256], sizes = [8, 128], strides = [1, 1]} : vector<8x512xf32> to vector<8x128xf32>
    %186 = math.tanh %185 : vector<8x128xf32>
    %187 = vector.extract_strided_slice %172 {offsets = [0, 384], sizes = [8, 128], strides = [1, 1]} : vector<8x512xf32> to vector<8x128xf32>
    %188 = arith.negf %187 : vector<8x128xf32>
    %189 = math.exp %188 : vector<8x128xf32>
    %cst_89 = arith.constant 1.000000e+00 : f32
    %190 = vector.broadcast %cst_89 : f32 to vector<8x128xf32>
    %191 = arith.addf %190, %189 : vector<8x128xf32>
    %192 = arith.divf %190, %191 : vector<8x128xf32>
    %c0_90 = arith.constant 0 : index
    %c0_91 = arith.constant 0 : index
    %193 = vector.load %arg10[%c0_90, %c0_91] : memref<8x128xf32, #tpu.memory_space<vmem>>, vector<8x128xf32>
    %194 = arith.mulf %184, %193 : vector<8x128xf32>
    %195 = arith.mulf %178, %186 : vector<8x128xf32>
    %196 = arith.addf %194, %195 : vector<8x128xf32>
    %197 = math.tanh %196 : vector<8x128xf32>
    %198 = arith.mulf %192, %197 : vector<8x128xf32>
    %c0_92 = arith.constant 0 : index
    %c0_93 = arith.constant 0 : index
    %199 = vector.load %arg10[%c0_92, %c0_93] : memref<8x128xf32, #tpu.memory_space<vmem>>, vector<8x128xf32>
    tpu.vector_store %arg10[%c0_92, %c0_93], %196 {strides = array<i32>} : memref<8x128xf32, #tpu.memory_space<vmem>>, vector<8x128xf32>,
    %c0_94 = arith.constant 0 : index
    %c0_95 = arith.constant 0 : index
    %200 = vector.load %arg9[%c0_94, %c0_95] : memref<8x128xf32, #tpu.memory_space<vmem>>, vector<8x128xf32>
    tpu.vector_store %arg9[%c0_94, %c0_95], %198 {strides = array<i32>} : memref<8x128xf32, #tpu.memory_space<vmem>>, vector<8x128xf32>,
    %c5_i32 = arith.constant 5 : i32
    %c8_i32_96 = arith.constant 8 : i32
    %201 = arith.muli %c5_i32, %c8_i32_96 : i32
    %202 = tpu.assume_multiple %201, 8 : i32
    %203 = arith.index_cast %202 : i32 to index
    %c0_97 = arith.constant 0 : index
    %204 = vector.load %arg8[%203, %c0_97] : memref<72x512xf32, #tpu.memory_space<vmem>>, vector<8x512xf32>
    %c0_98 = arith.constant 0 : index
    %c0_99 = arith.constant 0 : index
    %205 = vector.load %arg9[%c0_98, %c0_99] : memref<8x128xf32, #tpu.memory_space<vmem>>, vector<8x128xf32>
    %c0_100 = arith.constant 0 : index
    %c0_101 = arith.constant 0 : index
    %206 = vector.load %arg4[%c0_100, %c0_101] : memref<128x512xf32, #tpu.memory_space<vmem>>, vector<128x512xf32>
    %cst_102 = arith.constant dense<0.000000e+00> : vector<8x512xf32>
    %207 = tpu.matmul %205, %206, %cst_102 {dimension_numbers = #tpu.dot_dimension_numbers<[1], [0], [0], [1], [0, 0, 1, 1], [], []>} : vector<8x128xf32>, vector<128x512xf32>, vector<8x512xf32> -> vector<8x512xf32>
    %208 = arith.addf %204, %207 : vector<8x512xf32>
    %209 = vector.extract_strided_slice %208 {offsets = [0, 0], sizes = [8, 128], strides = [1, 1]} : vector<8x512xf32> to vector<8x128xf32>
    %210 = arith.negf %209 : vector<8x128xf32>
    %211 = math.exp %210 : vector<8x128xf32>
    %cst_103 = arith.constant 1.000000e+00 : f32
    %212 = vector.broadcast %cst_103 : f32 to vector<8x128xf32>
    %213 = arith.addf %212, %211 : vector<8x128xf32>
    %214 = arith.divf %212, %213 : vector<8x128xf32>
    %215 = vector.extract_strided_slice %208 {offsets = [0, 128], sizes = [8, 128], strides = [1, 1]} : vector<8x512xf32> to vector<8x128xf32>
    %216 = arith.negf %215 : vector<8x128xf32>
    %217 = math.exp %216 : vector<8x128xf32>
    %cst_104 = arith.constant 1.000000e+00 : f32
    %218 = vector.broadcast %cst_104 : f32 to vector<8x128xf32>
    %219 = arith.addf %218, %217 : vector<8x128xf32>
    %220 = arith.divf %218, %219 : vector<8x128xf32>
    %221 = vector.extract_strided_slice %208 {offsets = [0, 256], sizes = [8, 128], strides = [1, 1]} : vector<8x512xf32> to vector<8x128xf32>
    %222 = math.tanh %221 : vector<8x128xf32>
    %223 = vector.extract_strided_slice %208 {offsets = [0, 384], sizes = [8, 128], strides = [1, 1]} : vector<8x512xf32> to vector<8x128xf32>
    %224 = arith.negf %223 : vector<8x128xf32>
    %225 = math.exp %224 : vector<8x128xf32>
    %cst_105 = arith.constant 1.000000e+00 : f32
    %226 = vector.broadcast %cst_105 : f32 to vector<8x128xf32>
    %227 = arith.addf %226, %225 : vector<8x128xf32>
    %228 = arith.divf %226, %227 : vector<8x128xf32>
    %c0_106 = arith.constant 0 : index
    %c0_107 = arith.constant 0 : index
    %229 = vector.load %arg10[%c0_106, %c0_107] : memref<8x128xf32, #tpu.memory_space<vmem>>, vector<8x128xf32>
    %230 = arith.mulf %220, %229 : vector<8x128xf32>
    %231 = arith.mulf %214, %222 : vector<8x128xf32>
    %232 = arith.addf %230, %231 : vector<8x128xf32>
    %233 = math.tanh %232 : vector<8x128xf32>
    %234 = arith.mulf %228, %233 : vector<8x128xf32>
    %c0_108 = arith.constant 0 : index
    %c0_109 = arith.constant 0 : index
    %235 = vector.load %arg10[%c0_108, %c0_109] : memref<8x128xf32, #tpu.memory_space<vmem>>, vector<8x128xf32>
    tpu.vector_store %arg10[%c0_108, %c0_109], %232 {strides = array<i32>} : memref<8x128xf32, #tpu.memory_space<vmem>>, vector<8x128xf32>,
    %c0_110 = arith.constant 0 : index
    %c0_111 = arith.constant 0 : index
    %236 = vector.load %arg9[%c0_110, %c0_111] : memref<8x128xf32, #tpu.memory_space<vmem>>, vector<8x128xf32>
    tpu.vector_store %arg9[%c0_110, %c0_111], %234 {strides = array<i32>} : memref<8x128xf32, #tpu.memory_space<vmem>>, vector<8x128xf32>,
    %c6_i32 = arith.constant 6 : i32
    %c8_i32_112 = arith.constant 8 : i32
    %237 = arith.muli %c6_i32, %c8_i32_112 : i32
    %238 = tpu.assume_multiple %237, 8 : i32
    %239 = arith.index_cast %238 : i32 to index
    %c0_113 = arith.constant 0 : index
    %240 = vector.load %arg8[%239, %c0_113] : memref<72x512xf32, #tpu.memory_space<vmem>>, vector<8x512xf32>
    %c0_114 = arith.constant 0 : index
    %c0_115 = arith.constant 0 : index
    %241 = vector.load %arg9[%c0_114, %c0_115] : memref<8x128xf32, #tpu.memory_space<vmem>>, vector<8x128xf32>
    %c0_116 = arith.constant 0 : index
    %c0_117 = arith.constant 0 : index
    %242 = vector.load %arg4[%c0_116, %c0_117] : memref<128x512xf32, #tpu.memory_space<vmem>>, vector<128x512xf32>
    %cst_118 = arith.constant dense<0.000000e+00> : vector<8x512xf32>
    %243 = tpu.matmul %241, %242, %cst_118 {dimension_numbers = #tpu.dot_dimension_numbers<[1], [0], [0], [1], [0, 0, 1, 1], [], []>} : vector<8x128xf32>, vector<128x512xf32>, vector<8x512xf32> -> vector<8x512xf32>
    %244 = arith.addf %240, %243 : vector<8x512xf32>
    %245 = vector.extract_strided_slice %244 {offsets = [0, 0], sizes = [8, 128], strides = [1, 1]} : vector<8x512xf32> to vector<8x128xf32>
    %246 = arith.negf %245 : vector<8x128xf32>
    %247 = math.exp %246 : vector<8x128xf32>
    %cst_119 = arith.constant 1.000000e+00 : f32
    %248 = vector.broadcast %cst_119 : f32 to vector<8x128xf32>
    %249 = arith.addf %248, %247 : vector<8x128xf32>
    %250 = arith.divf %248, %249 : vector<8x128xf32>
    %251 = vector.extract_strided_slice %244 {offsets = [0, 128], sizes = [8, 128], strides = [1, 1]} : vector<8x512xf32> to vector<8x128xf32>
    %252 = arith.negf %251 : vector<8x128xf32>
    %253 = math.exp %252 : vector<8x128xf32>
    %cst_120 = arith.constant 1.000000e+00 : f32
    %254 = vector.broadcast %cst_120 : f32 to vector<8x128xf32>
    %255 = arith.addf %254, %253 : vector<8x128xf32>
    %256 = arith.divf %254, %255 : vector<8x128xf32>
    %257 = vector.extract_strided_slice %244 {offsets = [0, 256], sizes = [8, 128], strides = [1, 1]} : vector<8x512xf32> to vector<8x128xf32>
    %258 = math.tanh %257 : vector<8x128xf32>
    %259 = vector.extract_strided_slice %244 {offsets = [0, 384], sizes = [8, 128], strides = [1, 1]} : vector<8x512xf32> to vector<8x128xf32>
    %260 = arith.negf %259 : vector<8x128xf32>
    %261 = math.exp %260 : vector<8x128xf32>
    %cst_121 = arith.constant 1.000000e+00 : f32
    %262 = vector.broadcast %cst_121 : f32 to vector<8x128xf32>
    %263 = arith.addf %262, %261 : vector<8x128xf32>
    %264 = arith.divf %262, %263 : vector<8x128xf32>
    %c0_122 = arith.constant 0 : index
    %c0_123 = arith.constant 0 : index
    %265 = vector.load %arg10[%c0_122, %c0_123] : memref<8x128xf32, #tpu.memory_space<vmem>>, vector<8x128xf32>
    %266 = arith.mulf %256, %265 : vector<8x128xf32>
    %267 = arith.mulf %250, %258 : vector<8x128xf32>
    %268 = arith.addf %266, %267 : vector<8x128xf32>
    %269 = math.tanh %268 : vector<8x128xf32>
    %270 = arith.mulf %264, %269 : vector<8x128xf32>
    %c0_124 = arith.constant 0 : index
    %c0_125 = arith.constant 0 : index
    %271 = vector.load %arg10[%c0_124, %c0_125] : memref<8x128xf32, #tpu.memory_space<vmem>>, vector<8x128xf32>
    tpu.vector_store %arg10[%c0_124, %c0_125], %268 {strides = array<i32>} : memref<8x128xf32, #tpu.memory_space<vmem>>, vector<8x128xf32>,
    %c0_126 = arith.constant 0 : index
    %c0_127 = arith.constant 0 : index
    %272 = vector.load %arg9[%c0_126, %c0_127] : memref<8x128xf32, #tpu.memory_space<vmem>>, vector<8x128xf32>
    tpu.vector_store %arg9[%c0_126, %c0_127], %270 {strides = array<i32>} : memref<8x128xf32, #tpu.memory_space<vmem>>, vector<8x128xf32>,
    %c7_i32 = arith.constant 7 : i32
    %c8_i32_128 = arith.constant 8 : i32
    %273 = arith.muli %c7_i32, %c8_i32_128 : i32
    %274 = tpu.assume_multiple %273, 8 : i32
    %275 = arith.index_cast %274 : i32 to index
    %c0_129 = arith.constant 0 : index
    %276 = vector.load %arg8[%275, %c0_129] : memref<72x512xf32, #tpu.memory_space<vmem>>, vector<8x512xf32>
    %c0_130 = arith.constant 0 : index
    %c0_131 = arith.constant 0 : index
    %277 = vector.load %arg9[%c0_130, %c0_131] : memref<8x128xf32, #tpu.memory_space<vmem>>, vector<8x128xf32>
    %c0_132 = arith.constant 0 : index
    %c0_133 = arith.constant 0 : index
    %278 = vector.load %arg4[%c0_132, %c0_133] : memref<128x512xf32, #tpu.memory_space<vmem>>, vector<128x512xf32>
    %cst_134 = arith.constant dense<0.000000e+00> : vector<8x512xf32>
    %279 = tpu.matmul %277, %278, %cst_134 {dimension_numbers = #tpu.dot_dimension_numbers<[1], [0], [0], [1], [0, 0, 1, 1], [], []>} : vector<8x128xf32>, vector<128x512xf32>, vector<8x512xf32> -> vector<8x512xf32>
    %280 = arith.addf %276, %279 : vector<8x512xf32>
    %281 = vector.extract_strided_slice %280 {offsets = [0, 0], sizes = [8, 128], strides = [1, 1]} : vector<8x512xf32> to vector<8x128xf32>
    %282 = arith.negf %281 : vector<8x128xf32>
    %283 = math.exp %282 : vector<8x128xf32>
    %cst_135 = arith.constant 1.000000e+00 : f32
    %284 = vector.broadcast %cst_135 : f32 to vector<8x128xf32>
    %285 = arith.addf %284, %283 : vector<8x128xf32>
    %286 = arith.divf %284, %285 : vector<8x128xf32>
    %287 = vector.extract_strided_slice %280 {offsets = [0, 128], sizes = [8, 128], strides = [1, 1]} : vector<8x512xf32> to vector<8x128xf32>
    %288 = arith.negf %287 : vector<8x128xf32>
    %289 = math.exp %288 : vector<8x128xf32>
    %cst_136 = arith.constant 1.000000e+00 : f32
    %290 = vector.broadcast %cst_136 : f32 to vector<8x128xf32>
    %291 = arith.addf %290, %289 : vector<8x128xf32>
    %292 = arith.divf %290, %291 : vector<8x128xf32>
    %293 = vector.extract_strided_slice %280 {offsets = [0, 256], sizes = [8, 128], strides = [1, 1]} : vector<8x512xf32> to vector<8x128xf32>
    %294 = math.tanh %293 : vector<8x128xf32>
    %295 = vector.extract_strided_slice %280 {offsets = [0, 384], sizes = [8, 128], strides = [1, 1]} : vector<8x512xf32> to vector<8x128xf32>
    %296 = arith.negf %295 : vector<8x128xf32>
    %297 = math.exp %296 : vector<8x128xf32>
    %cst_137 = arith.constant 1.000000e+00 : f32
    %298 = vector.broadcast %cst_137 : f32 to vector<8x128xf32>
    %299 = arith.addf %298, %297 : vector<8x128xf32>
    %300 = arith.divf %298, %299 : vector<8x128xf32>
    %c0_138 = arith.constant 0 : index
    %c0_139 = arith.constant 0 : index
    %301 = vector.load %arg10[%c0_138, %c0_139] : memref<8x128xf32, #tpu.memory_space<vmem>>, vector<8x128xf32>
    %302 = arith.mulf %292, %301 : vector<8x128xf32>
    %303 = arith.mulf %286, %294 : vector<8x128xf32>
    %304 = arith.addf %302, %303 : vector<8x128xf32>
    %305 = math.tanh %304 : vector<8x128xf32>
    %306 = arith.mulf %300, %305 : vector<8x128xf32>
    %c0_140 = arith.constant 0 : index
    %c0_141 = arith.constant 0 : index
    %307 = vector.load %arg10[%c0_140, %c0_141] : memref<8x128xf32, #tpu.memory_space<vmem>>, vector<8x128xf32>
    tpu.vector_store %arg10[%c0_140, %c0_141], %304 {strides = array<i32>} : memref<8x128xf32, #tpu.memory_space<vmem>>, vector<8x128xf32>,
    %c0_142 = arith.constant 0 : index
    %c0_143 = arith.constant 0 : index
    %308 = vector.load %arg9[%c0_142, %c0_143] : memref<8x128xf32, #tpu.memory_space<vmem>>, vector<8x128xf32>
    tpu.vector_store %arg9[%c0_142, %c0_143], %306 {strides = array<i32>} : memref<8x128xf32, #tpu.memory_space<vmem>>, vector<8x128xf32>,
    %c8_i32_144 = arith.constant 8 : i32
    %c8_i32_145 = arith.constant 8 : i32
    %309 = arith.muli %c8_i32_144, %c8_i32_145 : i32
    %310 = tpu.assume_multiple %309, 8 : i32
    %311 = arith.index_cast %310 : i32 to index
    %c0_146 = arith.constant 0 : index
    %312 = vector.load %arg8[%311, %c0_146] : memref<72x512xf32, #tpu.memory_space<vmem>>, vector<8x512xf32>
    %c0_147 = arith.constant 0 : index
    %c0_148 = arith.constant 0 : index
    %313 = vector.load %arg9[%c0_147, %c0_148] : memref<8x128xf32, #tpu.memory_space<vmem>>, vector<8x128xf32>
    %c0_149 = arith.constant 0 : index
    %c0_150 = arith.constant 0 : index
    %314 = vector.load %arg4[%c0_149, %c0_150] : memref<128x512xf32, #tpu.memory_space<vmem>>, vector<128x512xf32>
    %cst_151 = arith.constant dense<0.000000e+00> : vector<8x512xf32>
    %315 = tpu.matmul %313, %314, %cst_151 {dimension_numbers = #tpu.dot_dimension_numbers<[1], [0], [0], [1], [0, 0, 1, 1], [], []>} : vector<8x128xf32>, vector<128x512xf32>, vector<8x512xf32> -> vector<8x512xf32>
    %316 = arith.addf %312, %315 : vector<8x512xf32>
    %317 = vector.extract_strided_slice %316 {offsets = [0, 0], sizes = [8, 128], strides = [1, 1]} : vector<8x512xf32> to vector<8x128xf32>
    %318 = arith.negf %317 : vector<8x128xf32>
    %319 = math.exp %318 : vector<8x128xf32>
    %cst_152 = arith.constant 1.000000e+00 : f32
    %320 = vector.broadcast %cst_152 : f32 to vector<8x128xf32>
    %321 = arith.addf %320, %319 : vector<8x128xf32>
    %322 = arith.divf %320, %321 : vector<8x128xf32>
    %323 = vector.extract_strided_slice %316 {offsets = [0, 128], sizes = [8, 128], strides = [1, 1]} : vector<8x512xf32> to vector<8x128xf32>
    %324 = arith.negf %323 : vector<8x128xf32>
    %325 = math.exp %324 : vector<8x128xf32>
    %cst_153 = arith.constant 1.000000e+00 : f32
    %326 = vector.broadcast %cst_153 : f32 to vector<8x128xf32>
    %327 = arith.addf %326, %325 : vector<8x128xf32>
    %328 = arith.divf %326, %327 : vector<8x128xf32>
    %329 = vector.extract_strided_slice %316 {offsets = [0, 256], sizes = [8, 128], strides = [1, 1]} : vector<8x512xf32> to vector<8x128xf32>
    %330 = math.tanh %329 : vector<8x128xf32>
    %331 = vector.extract_strided_slice %316 {offsets = [0, 384], sizes = [8, 128], strides = [1, 1]} : vector<8x512xf32> to vector<8x128xf32>
    %332 = arith.negf %331 : vector<8x128xf32>
    %333 = math.exp %332 : vector<8x128xf32>
    %cst_154 = arith.constant 1.000000e+00 : f32
    %334 = vector.broadcast %cst_154 : f32 to vector<8x128xf32>
    %335 = arith.addf %334, %333 : vector<8x128xf32>
    %336 = arith.divf %334, %335 : vector<8x128xf32>
    %c0_155 = arith.constant 0 : index
    %c0_156 = arith.constant 0 : index
    %337 = vector.load %arg10[%c0_155, %c0_156] : memref<8x128xf32, #tpu.memory_space<vmem>>, vector<8x128xf32>
    %338 = arith.mulf %328, %337 : vector<8x128xf32>
    %339 = arith.mulf %322, %330 : vector<8x128xf32>
    %340 = arith.addf %338, %339 : vector<8x128xf32>
    %341 = math.tanh %340 : vector<8x128xf32>
    %342 = arith.mulf %336, %341 : vector<8x128xf32>
    %c0_157 = arith.constant 0 : index
    %c0_158 = arith.constant 0 : index
    %343 = vector.load %arg10[%c0_157, %c0_158] : memref<8x128xf32, #tpu.memory_space<vmem>>, vector<8x128xf32>
    tpu.vector_store %arg10[%c0_157, %c0_158], %340 {strides = array<i32>} : memref<8x128xf32, #tpu.memory_space<vmem>>, vector<8x128xf32>,
    %c0_159 = arith.constant 0 : index
    %c0_160 = arith.constant 0 : index
    %344 = vector.load %arg9[%c0_159, %c0_160] : memref<8x128xf32, #tpu.memory_space<vmem>>, vector<8x128xf32>
    tpu.vector_store %arg9[%c0_159, %c0_160], %342 {strides = array<i32>} : memref<8x128xf32, #tpu.memory_space<vmem>>, vector<8x128xf32>,
    %c9_i32 = arith.constant 9 : i32
    %c0_161 = arith.constant 0 : index
    %c0_162 = arith.constant 0 : index
    %345 = vector.load %arg9[%c0_161, %c0_162] : memref<8x128xf32, #tpu.memory_space<vmem>>, vector<8x128xf32>
    %c0_163 = arith.constant 0 : index
    %c0_164 = arith.constant 0 : index
    %346 = vector.load %arg5[%c0_163, %c0_164] : memref<128x128xf32, #tpu.memory_space<vmem>>, vector<128x128xf32>
    %cst_165 = arith.constant dense<0.000000e+00> : vector<8x128xf32>
    %347 = tpu.matmul %345, %346, %cst_165 {dimension_numbers = #tpu.dot_dimension_numbers<[1], [0], [0], [1], [0, 0, 1, 1], [], []>} : vector<8x128xf32>, vector<128x128xf32>, vector<8x128xf32> -> vector<8x128xf32>
    %c0_166 = arith.constant 0 : index
    %c0_167 = arith.constant 0 : index
    %348 = vector.load %arg6[%c0_166, %c0_167] : memref<1x128xf32, #tpu.memory_space<vmem>>, vector<1x128xf32>
    %349 = vector.broadcast %348 : vector<1x128xf32> to vector<8x128xf32>
    %350 = arith.addf %347, %349 : vector<8x128xf32>
    %c0_168 = arith.constant 0 : index
    %c0_169 = arith.constant 0 : index
    %351 = vector.load %arg7[%c0_168, %c0_169] : memref<8x128xf32, #tpu.memory_space<vmem>>, vector<8x128xf32>
    tpu.vector_store %arg7[%c0_168, %c0_169], %350 {strides = array<i32>} : memref<8x128xf32, #tpu.memory_space<vmem>>, vector<8x128xf32>,
    return
  }
}

</mosaic_0001>

<llo_original>
// kernel: lstm_dqn_forward.1
$region0: #{lstm_dqn_forward.1}
  #allocation0 [shape = 'u32[]', space=smem, size = 0x4, offset = 0x4, fixed_abs, tag = 'smem constant byte address 0x4 - core index']
  #allocation1 [shape = 'u32[144,128]{1,0:T(1,128)}', space=vmem, size = 0x12000, scoped, tag = 'internal scratch']
  #allocation2 [shape = 'f32[72,512]{1,0:T(8,128)}', space=vmem, size = 0x24000, scoped, tag = 'scratch operand']
  #allocation3 [shape = 'f32[8,128]{1,0:T(8,128)}', space=vmem, size = 0x1000, scoped, tag = 'scratch operand']
  #allocation4 [shape = 'f32[8,128]{1,0:T(8,128)}', space=vmem, size = 0x1000, scoped, tag = 'scratch operand']
  %s0 = inlined_call_operand.vmem [shape: f32[64,16], index: 0, kind: input, shape index: {}]
  %s1 = inlined_call_operand.hbm [shape: f32[16,512], index: 1, kind: input, shape index: {}]
  %s2 = inlined_call_operand.hbm [shape: f32[1,512], index: 2, kind: input, shape index: {}]
  %s3 = inlined_call_operand.hbm [shape: f32[1,512], index: 3, kind: input, shape index: {}]
  %s4 = inlined_call_operand.hbm [shape: f32[128,512], index: 4, kind: input, shape index: {}]
  %s5 = inlined_call_operand.vmem [shape: f32[128,128], index: 5, kind: input, shape index: {}]
  %s6 = inlined_call_operand.vmem [shape: f32[1,128], index: 6, kind: input, shape index: {}]
  %s7 = inlined_call_operand.vmem [shape: f32[8,128], index: 7, kind: output, shape index: {}]
  %s8 = sld [smem:[#allocation0]]
  $region54: #{lstm_dqn_forward.1} parent=0
    _
  %s10 = ssub.s32 1, %s8
  %s11 = scalar_select 0, %s10, %s8
  $region1: #{lstm_dqn_forward.1} parent=0
    #allocation5 [shape = 'u8[32768]{0}', space=vmem, size = 0x8000, scoped, tag = 'input window, operand 1, single buffered']
    #allocation6 [shape = 's32[1]{0}', space=sflag, size = 0x4, scoped, tag = 'scoped memory for lstm_dqn_forward.1']
    #allocation7 [shape = 'u8[2048]{0}', space=vmem, size = 0x800, scoped, tag = 'input window, operand 2, single buffered']
    #allocation8 [shape = 's32[1]{0}', space=sflag, size = 0x4, scoped, tag = 'scoped memory for lstm_dqn_forward.1']
    #allocation9 [shape = 'u8[2048]{0}', space=vmem, size = 0x800, scoped, tag = 'input window, operand 3, single buffered']
    #allocation10 [shape = 'u8[262144]{0}', space=vmem, size = 0x40000, scoped, tag = 'input window, operand 4, single buffered']
    #allocation11 [shape = 's32[1]{0}', space=sflag, size = 0x4, scoped, tag = 'scoped memory for lstm_dqn_forward.1']
    %12 = vsyncpa [#allocation6], 0
    %13 = vsyncpa [#allocation8], 0
    %14 = vsyncpa [#allocation11], 0
    // Predicated region
    $region2: #{lstm_dqn_forward.1} parent=1 // pred_check
      _
    $region3: #{lstm_dqn_forward.1} parent=1 // pred_check_branch
      %16 = sbr.rel (0) target = $region5
    $region4: #{lstm_dqn_forward.1} parent=1 // pred_region
      _
    $region5: #{lstm_dqn_forward.1} parent=1 // pred_fallthru
      _
    // Predicated region
    $region6: #{lstm_dqn_forward.1} parent=1 // pred_check
      _
    $region7: #{lstm_dqn_forward.1} parent=1 // pred_check_branch
      %18 = sbr.rel (0) target = $region9
    $region8: #{lstm_dqn_forward.1} parent=1 // pred_region
      %s20 = ssub.s32 1024, 1024
      %21 = vsyncadd [#allocation6], %s20
      %s22 = sshll.u32 [#allocation5], 4
      %s23 = int_to_ptr.vmem [resolvable:$true] %s22
      %28 = dma.hbm_to_vmem [thread:$0]  %s1, 1024, %s23, [#allocation6], 512, 512, 32
    $region9: #{lstm_dqn_forward.1} parent=1 // pred_fallthru
      _
    // Predicated region
    $region10: #{lstm_dqn_forward.1} parent=1 // pred_check
      _
    $region11: #{lstm_dqn_forward.1} parent=1 // pred_check_branch
      %30 = sbr.rel (0) target = $region13
    $region12: #{lstm_dqn_forward.1} parent=1 // pred_region
      %s32 = ssub.s32 64, 64
      %33 = vsyncadd [#allocation8], %s32
      %s35 = sshll.u32 [#allocation7], 4
      %s36 = int_to_ptr.vmem [resolvable:$true] %s35
      %38 = dma.hbm_to_vmem [thread:$0]  %s2, 64, %s36, [#allocation8]
    $region13: #{lstm_dqn_forward.1} parent=1 // pred_fallthru
      _
    // Predicated region
    $region14: #{lstm_dqn_forward.1} parent=1 // pred_check
      _
    $region15: #{lstm_dqn_forward.1} parent=1 // pred_check_branch
      %40 = sbr.rel (0) target = $region17
    $region16: #{lstm_dqn_forward.1} parent=1 // pred_region
      %s42 = ssub.s32 64, 64
      %43 = vsyncadd [#allocation8], %s42
      %s45 = sshll.u32 [#allocation9], 4
      %s46 = int_to_ptr.vmem [resolvable:$true] %s45
      %48 = dma.hbm_to_vmem [thread:$0]  %s3, 64, %s46, [#allocation8]
    $region17: #{lstm_dqn_forward.1} parent=1 // pred_fallthru
      _
    // Predicated region
    $region18: #{lstm_dqn_forward.1} parent=1 // pred_check
      _
    $region19: #{lstm_dqn_forward.1} parent=1 // pred_check_branch
      %50 = sbr.rel (0) target = $region21
    $region20: #{lstm_dqn_forward.1} parent=1 // pred_region
      %s52 = ssub.s32 8192, 8192
      %53 = vsyncadd [#allocation11], %s52
      %s54 = sshll.u32 [#allocation10], 4
      %s55 = int_to_ptr.vmem [resolvable:$true] %s54
      %60 = dma.hbm_to_vmem [thread:$0]  %s4, 8192, %s55, [#allocation11], 512, 512, 32
    $region21: #{lstm_dqn_forward.1} parent=1 // pred_fallthru
      _
    // Predicated region
    $region22: #{lstm_dqn_forward.1} parent=1 // pred_check
      _
    $region23: #{lstm_dqn_forward.1} parent=1 // pred_check_branch
      %62 = sbr.rel (0) target = $region25
    $region24: #{lstm_dqn_forward.1} parent=1 // pred_region
      _
    $region25: #{lstm_dqn_forward.1} parent=1 // pred_fallthru
      _
    // Predicated region
    $region26: #{lstm_dqn_forward.1} parent=1 // pred_check
      _
    $region27: #{lstm_dqn_forward.1} parent=1 // pred_check_branch
      %64 = sbr.rel (0) target = $region29
    $region28: #{lstm_dqn_forward.1} parent=1 // pred_region
      _
    $region29: #{lstm_dqn_forward.1} parent=1 // pred_fallthru
      _
    // Predicated region
    $region30: #{lstm_dqn_forward.1} parent=1 // pred_check
      _
    $region31: #{lstm_dqn_forward.1} parent=1 // pred_check_branch
      %66 = sbr.rel (0) target = $region33
    $region32: #{lstm_dqn_forward.1} parent=1 // pred_region
      %67 = dma.done [#allocation6], 1024
    $region33: #{lstm_dqn_forward.1} parent=1 // pred_fallthru
      _
    // Predicated region
    $region34: #{lstm_dqn_forward.1} parent=1 // pred_check
      _
    $region35: #{lstm_dqn_forward.1} parent=1 // pred_check_branch
      %69 = sbr.rel (0) target = $region37
    $region36: #{lstm_dqn_forward.1} parent=1 // pred_region
      %70 = dma.done [#allocation8], 64
    $region37: #{lstm_dqn_forward.1} parent=1 // pred_fallthru
      _
    // Predicated region
    $region38: #{lstm_dqn_forward.1} parent=1 // pred_check
      _
    $region39: #{lstm_dqn_forward.1} parent=1 // pred_check_branch
      %72 = sbr.rel (0) target = $region41
    $region40: #{lstm_dqn_forward.1} parent=1 // pred_region
      %73 = dma.done [#allocation8], 64
    $region41: #{lstm_dqn_forward.1} parent=1 // pred_fallthru
      _
    // Predicated region
    $region42: #{lstm_dqn_forward.1} parent=1 // pred_check
      _
    $region43: #{lstm_dqn_forward.1} parent=1 // pred_check_branch
      %75 = sbr.rel (0) target = $region45
    $region44: #{lstm_dqn_forward.1} parent=1 // pred_region
      %76 = dma.done [#allocation11], 8192
    $region45: #{lstm_dqn_forward.1} parent=1 // pred_fallthru
      _
    %v77 = vld [vmem:[%s0] sm:$0xff]
    %v78 = vld [vmem:[%s0 + $0x8] sm:$0xff]
    %v79 = vld [vmem:[%s0 + $0x10] sm:$0xff]
    %v80 = vld [vmem:[%s0 + $0x18] sm:$0xff]
    %v81 = vld [vmem:[%s0 + $0x20] sm:$0xff]
    %v82 = vld [vmem:[%s0 + $0x28] sm:$0xff]
    %v83 = vld [vmem:[%s0 + $0x30] sm:$0xff]
    %v84 = vld [vmem:[%s0 + $0x38] sm:$0xff]
    %v85 = vld [vmem:[#allocation5] sm:$0xff]
    %v86 = vld [vmem:[#allocation5 + $0x8] sm:$0xff]
    %v87 = vld [vmem:[#allocation5 + $0x10] sm:$0xff]
    %v88 = vld [vmem:[#allocation5 + $0x18] sm:$0xff]
    %v89 = vld [vmem:[#allocation5 + $0x20] sm:$0xff]
    %v90 = vld [vmem:[#allocation5 + $0x28] sm:$0xff]
    %v91 = vld [vmem:[#allocation5 + $0x30] sm:$0xff]
    %v92 = vld [vmem:[#allocation5 + $0x38] sm:$0xff]
    %vm93 = vcmask 130048
    %v95 = vsel %vm93, %v77, 0
    %v98 = vsel %vm93, %v78, 0
    %v101 = vsel %vm93, %v79, 0
    %v104 = vsel %vm93, %v80, 0
    %v107 = vsel %vm93, %v81, 0
    %v110 = vsel %vm93, %v82, 0
    %v113 = vsel %vm93, %v83, 0
    %v116 = vsel %vm93, %v84, 0
    %118 = vmatprep.subr.mxu0 %v86
    %119 = vmatpush1.msra.mxu0 %v85
    %120 = vmatprep.subr.mxu0 %v90
    %121 = vmatpush1.msra.mxu0 %v89
    %122 = vmatprep.subr.mxu0 0.0
    %123 = vmatpush1.msra.mxu0 0.0
    %124 = vmatprep.subr.mxu0 0.0
    %125 = vmatpush1.msra.mxu0 0.0
    %126 = vmatprep.subr.mxu0 0.0
    %127 = vmatpush1.msra.mxu0 0.0
    %128 = vmatprep.subr.mxu0 0.0
    %129 = vmatpush1.msra.mxu0 0.0
    %130 = vmatprep.subr.mxu0 0.0
    %131 = vmatpush1.msra.mxu0 0.0
    %132 = vmatprep.subr.mxu0 0.0
    %133 = vmatpush1.msra.mxu0 0.0
    %134 = vmatprep.subr.mxu0 0.0
    %135 = vmatpush1.msra.mxu0 0.0
    %136 = vmatprep.subr.mxu0 0.0
    %137 = vmatpush1.msra.mxu0 0.0
    %138 = vmatprep.subr.mxu0 0.0
    %139 = vmatpush1.msra.mxu0 0.0
    %140 = vmatprep.subr.mxu0 0.0
    %141 = vmatpush1.msra.mxu0 0.0
    %142 = vmatprep.subr.mxu0 0.0
    %143 = vmatpush1.msra.mxu0 0.0
    %144 = vmatprep.subr.mxu0 0.0
    %145 = vmatpush1.msra.mxu0 0.0
    %146 = vmatprep.subr.mxu0 0.0
    %147 = vmatpush1.msra.mxu0 0.0
    %148 = vmatprep.subr.mxu0 0.0
    %149 = vmatpush1.msra.mxu0 0.0
    %150 = vmatprep.subr.mxu0 0.0
    %151 = vmatpush1.msra.mxu0 0.0
    %152 = vmatprep.subr.mxu0 0.0
    %153 = vmatpush1.msra.mxu0 0.0
    %154 = vmatprep.subr.mxu0 0.0
    %155 = vmatpush1.msra.mxu0 0.0
    %156 = vmatprep.subr.mxu0 0.0
    %157 = vmatpush1.msra.mxu0 0.0
    %158 = vmatprep.subr.mxu0 0.0
    %159 = vmatpush1.msra.mxu0 0.0
    %160 = vmatprep.subr.mxu0 0.0
    %161 = vmatpush1.msra.mxu0 0.0
    %162 = vmatprep.subr.mxu0 0.0
    %163 = vmatpush1.msra.mxu0 0.0
    %164 = vmatprep.subr.mxu0 0.0
    %165 = vmatpush1.msra.mxu0 0.0
    %166 = vmatprep.subr.mxu0 0.0
    %167 = vmatpush1.msra.mxu0 0.0
    %168 = vmatprep.subr.mxu0 0.0
    %169 = vmatpush1.msra.mxu0 0.0
    %170 = vmatprep.subr.mxu0 0.0
    %171 = vmatpush1.msra.mxu0 0.0
    %172 = vmatprep.subr.mxu0 0.0
    %173 = vmatpush1.msra.mxu0 0.0
    %174 = vmatprep.subr.mxu0 0.0
    %175 = vmatpush1.msra.mxu0 0.0
    %176 = vmatprep.subr.mxu0 0.0
    %177 = vmatpush1.msra.mxu0 0.0
    %178 = vmatprep.subr.mxu0 0.0
    %179 = vmatpush1.msra.mxu0 0.0
    %180 = vmatprep.subr.mxu0 0.0
    %181 = vmatpush1.msra.mxu0 0.0
    %182 = vmatprep.mubr.f32.mxu0 0.0
    %183 = vmatmul.mubr.f32.gmra.mrb[0].mxu0 %v95
    %v184 = vpop.f32.mrb[0].mxu0
    %v185 = vadd.f32 0.0, %v184
    %v186 = vpop.f32.mrb[0].mxu0
    %v187 = vadd.f32 0.0, %v186
    %188 = vmatprep.mubr.f32.mxu0 0.0
    %189 = vmatmul.mubr.f32.gmra.mrb[0].mxu0 %v98
    %v190 = vpop.f32.mrb[0].mxu0
    %v191 = vadd.f32 0.0, %v190
    %v192 = vpop.f32.mrb[0].mxu0
    %v193 = vadd.f32 0.0, %v192
    %194 = vmatprep.mubr.f32.mxu0 0.0
    %195 = vmatmul.mubr.f32.gmra.mrb[0].mxu0 %v101
    %v196 = vpop.f32.mrb[0].mxu0
    %v197 = vadd.f32 0.0, %v196
    %v198 = vpop.f32.mrb[0].mxu0
    %v199 = vadd.f32 0.0, %v198
    %200 = vmatprep.mubr.f32.mxu0 0.0
    %201 = vmatmul.mubr.f32.gmra.mrb[0].mxu0 %v104
    %v202 = vpop.f32.mrb[0].mxu0
    %v203 = vadd.f32 0.0, %v202
    %v204 = vpop.f32.mrb[0].mxu0
    %v205 = vadd.f32 0.0, %v204
    %206 = vmatprep.mubr.f32.mxu0 0.0
    %207 = vmatmul.mubr.f32.gmra.mrb[0].mxu0 %v107
    %v208 = vpop.f32.mrb[0].mxu0
    %v209 = vadd.f32 0.0, %v208
    %v210 = vpop.f32.mrb[0].mxu0
    %v211 = vadd.f32 0.0, %v210
    %212 = vmatprep.mubr.f32.mxu0 0.0
    %213 = vmatmul.mubr.f32.gmra.mrb[0].mxu0 %v110
    %v214 = vpop.f32.mrb[0].mxu0
    %v215 = vadd.f32 0.0, %v214
    %v216 = vpop.f32.mrb[0].mxu0
    %v217 = vadd.f32 0.0, %v216
    %218 = vmatprep.mubr.f32.mxu0 0.0
    %219 = vmatmul.mubr.f32.gmra.mrb[0].mxu0 %v113
    %v220 = vpop.f32.mrb[0].mxu0
    %v221 = vadd.f32 0.0, %v220
    %v222 = vpop.f32.mrb[0].mxu0
    %v223 = vadd.f32 0.0, %v222
    %224 = vmatprep.mubr.f32.mxu0 0.0
    %225 = vmatmul.mubr.f32.gmra.mrb[0].mxu0 %v116
    %v226 = vpop.f32.mrb[0].mxu0
    %v227 = vadd.f32 0.0, %v226
    %v228 = vpop.f32.mrb[0].mxu0
    %v229 = vadd.f32 0.0, %v228
    %230 = vdwg.mxu0
    %231 = vmatprep.subr.mxu0 %v88
    %232 = vmatpush1.msra.mxu0 %v87
    %233 = vmatprep.subr.mxu0 %v92
    %234 = vmatpush1.msra.mxu0 %v91
    %235 = vmatprep.subr.mxu0 0.0
    %236 = vmatpush1.msra.mxu0 0.0
    %237 = vmatprep.subr.mxu0 0.0
    %238 = vmatpush1.msra.mxu0 0.0
    %239 = vmatprep.subr.mxu0 0.0
    %240 = vmatpush1.msra.mxu0 0.0
    %241 = vmatprep.subr.mxu0 0.0
    %242 = vmatpush1.msra.mxu0 0.0
    %243 = vmatprep.subr.mxu0 0.0
    %244 = vmatpush1.msra.mxu0 0.0
    %245 = vmatprep.subr.mxu0 0.0
    %246 = vmatpush1.msra.mxu0 0.0
    %247 = vmatprep.subr.mxu0 0.0
    %248 = vmatpush1.msra.mxu0 0.0
    %249 = vmatprep.subr.mxu0 0.0
    %250 = vmatpush1.msra.mxu0 0.0
    %251 = vmatprep.subr.mxu0 0.0
    %252 = vmatpush1.msra.mxu0 0.0
    %253 = vmatprep.subr.mxu0 0.0
    %254 = vmatpush1.msra.mxu0 0.0
    %255 = vmatprep.subr.mxu0 0.0
    %256 = vmatpush1.msra.mxu0 0.0
    %257 = vmatprep.subr.mxu0 0.0
    %258 = vmatpush1.msra.mxu0 0.0
    %259 = vmatprep.subr.mxu0 0.0
    %260 = vmatpush1.msra.mxu0 0.0
    %261 = vmatprep.subr.mxu0 0.0
    %262 = vmatpush1.msra.mxu0 0.0
    %263 = vmatprep.subr.mxu0 0.0
    %264 = vmatpush1.msra.mxu0 0.0
    %265 = vmatprep.subr.mxu0 0.0
    %266 = vmatpush1.msra.mxu0 0.0
    %267 = vmatprep.subr.mxu0 0.0
    %268 = vmatpush1.msra.mxu0 0.0
    %269 = vmatprep.subr.mxu0 0.0
    %270 = vmatpush1.msra.mxu0 0.0
    %271 = vmatprep.subr.mxu0 0.0
    %272 = vmatpush1.msra.mxu0 0.0
    %273 = vmatprep.subr.mxu0 0.0
    %274 = vmatpush1.msra.mxu0 0.0
    %275 = vmatprep.subr.mxu0 0.0
    %276 = vmatpush1.msra.mxu0 0.0
    %277 = vmatprep.subr.mxu0 0.0
    %278 = vmatpush1.msra.mxu0 0.0
    %279 = vmatprep.subr.mxu0 0.0
    %280 = vmatpush1.msra.mxu0 0.0
    %281 = vmatprep.subr.mxu0 0.0
    %282 = vmatpush1.msra.mxu0 0.0
    %283 = vmatprep.subr.mxu0 0.0
    %284 = vmatpush1.msra.mxu0 0.0
    %285 = vmatprep.subr.mxu0 0.0
    %286 = vmatpush1.msra.mxu0 0.0
    %287 = vmatprep.subr.mxu0 0.0
    %288 = vmatpush1.msra.mxu0 0.0
    %289 = vmatprep.subr.mxu0 0.0
    %290 = vmatpush1.msra.mxu0 0.0
    %291 = vmatprep.subr.mxu0 0.0
    %292 = vmatpush1.msra.mxu0 0.0
    %293 = vmatprep.subr.mxu0 0.0
    %294 = vmatpush1.msra.mxu0 0.0
    %295 = vmatprep.mubr.f32.mxu0 0.0
    %296 = vmatmul.mubr.f32.gmra.mrb[0].mxu0 %v95
    %v297 = vpop.f32.mrb[0].mxu0
    %v298 = vadd.f32 0.0, %v297
    %v299 = vpop.f32.mrb[0].mxu0
    %v300 = vadd.f32 0.0, %v299
    %301 = vmatprep.mubr.f32.mxu0 0.0
    %302 = vmatmul.mubr.f32.gmra.mrb[0].mxu0 %v98
    %v303 = vpop.f32.mrb[0].mxu0
    %v304 = vadd.f32 0.0, %v303
    %v305 = vpop.f32.mrb[0].mxu0
    %v306 = vadd.f32 0.0, %v305
    %307 = vmatprep.mubr.f32.mxu0 0.0
    %308 = vmatmul.mubr.f32.gmra.mrb[0].mxu0 %v101
    %v309 = vpop.f32.mrb[0].mxu0
    %v310 = vadd.f32 0.0, %v309
    %v311 = vpop.f32.mrb[0].mxu0
    %v312 = vadd.f32 0.0, %v311
    %313 = vmatprep.mubr.f32.mxu0 0.0
    %314 = vmatmul.mubr.f32.gmra.mrb[0].mxu0 %v104
    %v315 = vpop.f32.mrb[0].mxu0
    %v316 = vadd.f32 0.0, %v315
    %v317 = vpop.f32.mrb[0].mxu0
    %v318 = vadd.f32 0.0, %v317
    %319 = vmatprep.mubr.f32.mxu0 0.0
    %320 = vmatmul.mubr.f32.gmra.mrb[0].mxu0 %v107
    %v321 = vpop.f32.mrb[0].mxu0
    %v322 = vadd.f32 0.0, %v321
    %v323 = vpop.f32.mrb[0].mxu0
    %v324 = vadd.f32 0.0, %v323
    %325 = vmatprep.mubr.f32.mxu0 0.0
    %326 = vmatmul.mubr.f32.gmra.mrb[0].mxu0 %v110
    %v327 = vpop.f32.mrb[0].mxu0
    %v328 = vadd.f32 0.0, %v327
    %v329 = vpop.f32.mrb[0].mxu0
    %v330 = vadd.f32 0.0, %v329
    %331 = vmatprep.mubr.f32.mxu0 0.0
    %332 = vmatmul.mubr.f32.gmra.mrb[0].mxu0 %v113
    %v333 = vpop.f32.mrb[0].mxu0
    %v334 = vadd.f32 0.0, %v333
    %v335 = vpop.f32.mrb[0].mxu0
    %v336 = vadd.f32 0.0, %v335
    %337 = vmatprep.mubr.f32.mxu0 0.0
    %338 = vmatmul.mubr.f32.gmra.mrb[0].mxu0 %v116
    %v339 = vpop.f32.mrb[0].mxu0
    %v340 = vadd.f32 0.0, %v339
    %v341 = vpop.f32.mrb[0].mxu0
    %v342 = vadd.f32 0.0, %v341
    %343 = vdwg.mxu0
    %v344 = vld [vmem:[#allocation7] sm:$0xf]
    %v345 = vld [vmem:[#allocation9] sm:$0xf]
    %v347 = vlaneseq
    %v348 = vshrl.u32 %v347, 7
    %v349 = vsub.s32 0, %v348
    %v350 = vrot.slane %v344, %v349
    %v351 = vlaneseq
    %v352 = vshrl.u32 %v351, 7
    %v353 = vsub.s32 1, %v352
    %v354 = vrot.slane %v344, %v353
    %v355 = vlaneseq
    %v356 = vshrl.u32 %v355, 7
    %v357 = vsub.s32 2, %v356
    %v358 = vrot.slane %v344, %v357
    %v359 = vlaneseq
    %v360 = vshrl.u32 %v359, 7
    %v361 = vsub.s32 3, %v360
    %v362 = vrot.slane %v344, %v361
    %v367 = vadd.f32 %v185, %v350
    %v368 = vadd.f32 %v187, %v354
    %v369 = vadd.f32 %v298, %v358
    %v370 = vadd.f32 %v300, %v362
    %371 = vst [vmem:[#allocation2] sm:$0xff] %v367
    %372 = vst [vmem:[#allocation2 + $0x8] sm:$0xff] %v368
    %373 = vst [vmem:[#allocation2 + $0x10] sm:$0xff] %v369
    %374 = vst [vmem:[#allocation2 + $0x18] sm:$0xff] %v370
    %v375 = vadd.f32 %v344, %v345
    %v377 = vlaneseq
    %v378 = vshrl.u32 %v377, 7
    %v379 = vsub.s32 0, %v378
    %v380 = vrot.slane %v375, %v379
    %v381 = vlaneseq
    %v382 = vshrl.u32 %v381, 7
    %v383 = vsub.s32 1, %v382
    %v384 = vrot.slane %v375, %v383
    %v385 = vlaneseq
    %v386 = vshrl.u32 %v385, 7
    %v387 = vsub.s32 2, %v386
    %v388 = vrot.slane %v375, %v387
    %v389 = vlaneseq
    %v390 = vshrl.u32 %v389, 7
    %v391 = vsub.s32 3, %v390
    %v392 = vrot.slane %v375, %v391
    %v397 = vadd.f32 %v191, %v380
    %v398 = vadd.f32 %v193, %v384
    %v399 = vadd.f32 %v304, %v388
    %v400 = vadd.f32 %v306, %v392
    %v401 = vadd.f32 %v197, %v380
    %v402 = vadd.f32 %v199, %v384
    %v403 = vadd.f32 %v310, %v388
    %v404 = vadd.f32 %v312, %v392
    %v405 = vadd.f32 %v203, %v380
    %v406 = vadd.f32 %v205, %v384
    %v407 = vadd.f32 %v316, %v388
    %v408 = vadd.f32 %v318, %v392
    %v409 = vadd.f32 %v209, %v380
    %v410 = vadd.f32 %v211, %v384
    %v411 = vadd.f32 %v322, %v388
    %v412 = vadd.f32 %v324, %v392
    %v413 = vadd.f32 %v215, %v380
    %v414 = vadd.f32 %v217, %v384
    %v415 = vadd.f32 %v328, %v388
    %v416 = vadd.f32 %v330, %v392
    %v417 = vadd.f32 %v221, %v380
    %v418 = vadd.f32 %v223, %v384
    %v419 = vadd.f32 %v334, %v388
    %v420 = vadd.f32 %v336, %v392
    %v421 = vadd.f32 %v227, %v380
    %v422 = vadd.f32 %v229, %v384
    %v423 = vadd.f32 %v340, %v388
    %v424 = vadd.f32 %v342, %v392
    %425 = vst [vmem:[#allocation2 + $0x20] sm:$0xff] %v397
    %426 = vst [vmem:[#allocation2 + $0x28] sm:$0xff] %v398
    %427 = vst [vmem:[#allocation2 + $0x30] sm:$0xff] %v399
    %428 = vst [vmem:[#allocation2 + $0x38] sm:$0xff] %v400
    %429 = vst [vmem:[#allocation2 + $0x40] sm:$0xff] %v401
    %430 = vst [vmem:[#allocation2 + $0x48] sm:$0xff] %v402
    %431 = vst [vmem:[#allocation2 + $0x50] sm:$0xff] %v403
    %432 = vst [vmem:[#allocation2 + $0x58] sm:$0xff] %v404
    %433 = vst [vmem:[#allocation2 + $0x60] sm:$0xff] %v405
    %434 = vst [vmem:[#allocation2 + $0x68] sm:$0xff] %v406
    %435 = vst [vmem:[#allocation2 + $0x70] sm:$0xff] %v407
    %436 = vst [vmem:[#allocation2 + $0x78] sm:$0xff] %v408
    %437 = vst [vmem:[#allocation2 + $0x80] sm:$0xff] %v409
    %438 = vst [vmem:[#allocation2 + $0x88] sm:$0xff] %v410
    %439 = vst [vmem:[#allocation2 + $0x90] sm:$0xff] %v411
    %440 = vst [vmem:[#allocation2 + $0x98] sm:$0xff] %v412
    %441 = vst [vmem:[#allocation2 + $0xa0] sm:$0xff] %v413
    %442 = vst [vmem:[#allocation2 + $0xa8] sm:$0xff] %v414
    %443 = vst [vmem:[#allocation2 + $0xb0] sm:$0xff] %v415
    %444 = vst [vmem:[#allocation2 + $0xb8] sm:$0xff] %v416
    %445 = vst [vmem:[#allocation2 + $0xc0] sm:$0xff] %v417
    %446 = vst [vmem:[#allocation2 + $0xc8] sm:$0xff] %v418
    %447 = vst [vmem:[#allocation2 + $0xd0] sm:$0xff] %v419
    %448 = vst [vmem:[#allocation2 + $0xd8] sm:$0xff] %v420
    %449 = vst [vmem:[#allocation2 + $0xe0] sm:$0xff] %v421
    %450 = vst [vmem:[#allocation2 + $0xe8] sm:$0xff] %v422
    %451 = vst [vmem:[#allocation2 + $0xf0] sm:$0xff] %v423
    %452 = vst [vmem:[#allocation2 + $0xf8] sm:$0xff] %v424
    %v454 = vlaneseq
    %v455 = vshrl.u32 %v454, 7
    %v456 = vsub.s32 0, %v455
    %v457 = vrot.slane %v345, %v456
    %v458 = vlaneseq
    %v459 = vshrl.u32 %v458, 7
    %v460 = vsub.s32 1, %v459
    %v461 = vrot.slane %v345, %v460
    %v462 = vlaneseq
    %v463 = vshrl.u32 %v462, 7
    %v464 = vsub.s32 2, %v463
    %v465 = vrot.slane %v345, %v464
    %v466 = vlaneseq
    %v467 = vshrl.u32 %v466, 7
    %v468 = vsub.s32 3, %v467
    %v469 = vrot.slane %v345, %v468
    %474 = vst [vmem:[#allocation2 + $0x100] sm:$0xff] %v457
    %475 = vst [vmem:[#allocation2 + $0x108] sm:$0xff] %v461
    %476 = vst [vmem:[#allocation2 + $0x110] sm:$0xff] %v465
    %477 = vst [vmem:[#allocation2 + $0x118] sm:$0xff] %v469
    %478 = vst [vmem:[#allocation3] sm:$0xff] 0.0
    %479 = vst [vmem:[#allocation4] sm:$0xff] 0.0
    %s480 = smul.u32 0, 4
    %s481 = smul.addr %s480, 8
    %s482 = scalar_lea.vmem [#allocation2], %s481
    %v483 = vld [vmem:[%s482] sm:$0xff]
    %v484 = vld [vmem:[%s482 + $0x8] sm:$0xff]
    %v485 = vld [vmem:[%s482 + $0x10] sm:$0xff]
    %v486 = vld [vmem:[%s482 + $0x18] sm:$0xff]
    %v487 = vld [vmem:[#allocation3] sm:$0xff]
    %v488 = vld [vmem:[#allocation10] sm:$0xff]
    %v489 = vld [vmem:[#allocation10 + $0x8] sm:$0xff]
    %v490 = vld [vmem:[#allocation10 + $0x10] sm:$0xff]
    %v491 = vld [vmem:[#allocation10 + $0x18] sm:$0xff]
    %v492 = vld [vmem:[#allocation10 + $0x20] sm:$0xff]
    %v493 = vld [vmem:[#allocation10 + $0x28] sm:$0xff]
    %v494 = vld [vmem:[#allocation10 + $0x30] sm:$0xff]
    %v495 = vld [vmem:[#allocation10 + $0x38] sm:$0xff]
    %v496 = vld [vmem:[#allocation10 + $0x40] sm:$0xff]
    %v497 = vld [vmem:[#allocation10 + $0x48] sm:$0xff]
    %v498 = vld [vmem:[#allocation10 + $0x50] sm:$0xff]
    %v499 = vld [vmem:[#allocation10 + $0x58] sm:$0xff]
    %v500 = vld [vmem:[#allocation10 + $0x60] sm:$0xff]
    %v501 = vld [vmem:[#allocation10 + $0x68] sm:$0xff]
    %v502 = vld [vmem:[#allocation10 + $0x70] sm:$0xff]
    %v503 = vld [vmem:[#allocation10 + $0x78] sm:$0xff]
    %v504 = vld [vmem:[#allocation10 + $0x80] sm:$0xff]
    %v505 = vld [vmem:[#allocation10 + $0x88] sm:$0xff]
    %v506 = vld [vmem:[#allocation10 + $0x90] sm:$0xff]
    %v507 = vld [vmem:[#allocation10 + $0x98] sm:$0xff]
    %v508 = vld [vmem:[#allocation10 + $0xa0] sm:$0xff]
    %v509 = vld [vmem:[#allocation10 + $0xa8] sm:$0xff]
    %v510 = vld [vmem:[#allocation10 + $0xb0] sm:$0xff]
    %v511 = vld [vmem:[#allocation10 + $0xb8] sm:$0xff]
    %v512 = vld [vmem:[#allocation10 + $0xc0] sm:$0xff]
    %v513 = vld [vmem:[#allocation10 + $0xc8] sm:$0xff]
    %v514 = vld [vmem:[#allocation10 + $0xd0] sm:$0xff]
    %v515 = vld [vmem:[#allocation10 + $0xd8] sm:$0xff]
    %v516 = vld [vmem:[#allocation10 + $0xe0] sm:$0xff]
    %v517 = vld [vmem:[#allocation10 + $0xe8] sm:$0xff]
    %v518 = vld [vmem:[#allocation10 + $0xf0] sm:$0xff]
    %v519 = vld [vmem:[#allocation10 + $0xf8] sm:$0xff]
    %v520 = vld [vmem:[#allocation10 + $0x100] sm:$0xff]
    %v521 = vld [vmem:[#allocation10 + $0x108] sm:$0xff]
    %v522 = vld [vmem:[#allocation10 + $0x110] sm:$0xff]
    %v523 = vld [vmem:[#allocation10 + $0x118] sm:$0xff]
    %v524 = vld [vmem:[#allocation10 + $0x120] sm:$0xff]
    %v525 = vld [vmem:[#allocation10 + $0x128] sm:$0xff]
    %v526 = vld [vmem:[#allocation10 + $0x130] sm:$0xff]
    %v527 = vld [vmem:[#allocation10 + $0x138] sm:$0xff]
    %v528 = vld [vmem:[#allocation10 + $0x140] sm:$0xff]
    %v529 = vld [vmem:[#allocation10 + $0x148] sm:$0xff]
    %v530 = vld [vmem:[#allocation10 + $0x150] sm:$0xff]
    %v531 = vld [vmem:[#allocation10 + $0x158] sm:$0xff]
    %v532 = vld [vmem:[#allocation10 + $0x160] sm:$0xff]
    %v533 = vld [vmem:[#allocation10 + $0x168] sm:$0xff]
    %v534 = vld [vmem:[#allocation10 + $0x170] sm:$0xff]
    %v535 = vld [vmem:[#allocation10 + $0x178] sm:$0xff]
    %v536 = vld [vmem:[#allocation10 + $0x180] sm:$0xff]
    %v537 = vld [vmem:[#allocation10 + $0x188] sm:$0xff]
    %v538 = vld [vmem:[#allocation10 + $0x190] sm:$0xff]
    %v539 = vld [vmem:[#allocation10 + $0x198] sm:$0xff]
    %v540 = vld [vmem:[#allocation10 + $0x1a0] sm:$0xff]
    %v541 = vld [vmem:[#allocation10 + $0x1a8] sm:$0xff]
    %v542 = vld [vmem:[#allocation10 + $0x1b0] sm:$0xff]
    %v543 = vld [vmem:[#allocation10 + $0x1b8] sm:$0xff]
    %v544 = vld [vmem:[#allocation10 + $0x1c0] sm:$0xff]
    %v545 = vld [vmem:[#allocation10 + $0x1c8] sm:$0xff]
    %v546 = vld [vmem:[#allocation10 + $0x1d0] sm:$0xff]
    %v547 = vld [vmem:[#allocation10 + $0x1d8] sm:$0xff]
    %v548 = vld [vmem:[#allocation10 + $0x1e0] sm:$0xff]
    %v549 = vld [vmem:[#allocation10 + $0x1e8] sm:$0xff]
    %v550 = vld [vmem:[#allocation10 + $0x1f0] sm:$0xff]
    %v551 = vld [vmem:[#allocation10 + $0x1f8] sm:$0xff]
    %552 = vmatprep.subr.mxu0 %v489
    %553 = vmatpush1.msra.mxu0 %v488
    %554 = vmatprep.subr.mxu0 %v493
    %555 = vmatpush1.msra.mxu0 %v492
    %556 = vmatprep.subr.mxu0 %v497
    %557 = vmatpush1.msra.mxu0 %v496
    %558 = vmatprep.subr.mxu0 %v501
    %559 = vmatpush1.msra.mxu0 %v500
    %560 = vmatprep.subr.mxu0 %v505
    %561 = vmatpush1.msra.mxu0 %v504
    %562 = vmatprep.subr.mxu0 %v509
    %563 = vmatpush1.msra.mxu0 %v508
    %564 = vmatprep.subr.mxu0 %v513
    %565 = vmatpush1.msra.mxu0 %v512
    %566 = vmatprep.subr.mxu0 %v517
    %567 = vmatpush1.msra.mxu0 %v516
    %568 = vmatprep.subr.mxu0 %v521
    %569 = vmatpush1.msra.mxu0 %v520
    %570 = vmatprep.subr.mxu0 %v525
    %571 = vmatpush1.msra.mxu0 %v524
    %572 = vmatprep.subr.mxu0 %v529
    %573 = vmatpush1.msra.mxu0 %v528
    %574 = vmatprep.subr.mxu0 %v533
    %575 = vmatpush1.msra.mxu0 %v532
    %576 = vmatprep.subr.mxu0 %v537
    %577 = vmatpush1.msra.mxu0 %v536
    %578 = vmatprep.subr.mxu0 %v541
    %579 = vmatpush1.msra.mxu0 %v540
    %580 = vmatprep.subr.mxu0 %v545
    %581 = vmatpush1.msra.mxu0 %v544
    %582 = vmatprep.subr.mxu0 %v549
    %583 = vmatpush1.msra.mxu0 %v548
    %584 = vmatprep.subr.mxu0 0.0
    %585 = vmatpush1.msra.mxu0 0.0
    %586 = vmatprep.subr.mxu0 0.0
    %587 = vmatpush1.msra.mxu0 0.0
    %588 = vmatprep.subr.mxu0 0.0
    %589 = vmatpush1.msra.mxu0 0.0
    %590 = vmatprep.subr.mxu0 0.0
    %591 = vmatpush1.msra.mxu0 0.0
    %592 = vmatprep.subr.mxu0 0.0
    %593 = vmatpush1.msra.mxu0 0.0
    %594 = vmatprep.subr.mxu0 0.0
    %595 = vmatpush1.msra.mxu0 0.0
    %596 = vmatprep.subr.mxu0 0.0
    %597 = vmatpush1.msra.mxu0 0.0
    %598 = vmatprep.subr.mxu0 0.0
    %599 = vmatpush1.msra.mxu0 0.0
    %600 = vmatprep.subr.mxu0 0.0
    %601 = vmatpush1.msra.mxu0 0.0
    %602 = vmatprep.subr.mxu0 0.0
    %603 = vmatpush1.msra.mxu0 0.0
    %604 = vmatprep.subr.mxu0 0.0
    %605 = vmatpush1.msra.mxu0 0.0
    %606 = vmatprep.subr.mxu0 0.0
    %607 = vmatpush1.msra.mxu0 0.0
    %608 = vmatprep.subr.mxu0 0.0
    %609 = vmatpush1.msra.mxu0 0.0
    %610 = vmatprep.subr.mxu0 0.0
    %611 = vmatpush1.msra.mxu0 0.0
    %612 = vmatprep.subr.mxu0 0.0
    %613 = vmatpush1.msra.mxu0 0.0
    %614 = vmatprep.subr.mxu0 0.0
    %615 = vmatpush1.msra.mxu0 0.0
    %616 = vmatprep.mubr.f32.mxu0 0.0
    %617 = vmatmul.mubr.f32.gmra.mrb[0].mxu0 %v487
    %v618 = vpop.f32.mrb[0].mxu0
    %v619 = vadd.f32 0.0, %v618
    %v620 = vpop.f32.mrb[0].mxu0
    %v621 = vadd.f32 0.0, %v620
    %622 = vdwg.mxu0
    %623 = vmatprep.subr.mxu0 %v491
    %624 = vmatpush1.msra.mxu0 %v490
    %625 = vmatprep.subr.mxu0 %v495
    %626 = vmatpush1.msra.mxu0 %v494
    %627 = vmatprep.subr.mxu0 %v499
    %628 = vmatpush1.msra.mxu0 %v498
    %629 = vmatprep.subr.mxu0 %v503
    %630 = vmatpush1.msra.mxu0 %v502
    %631 = vmatprep.subr.mxu0 %v507
    %632 = vmatpush1.msra.mxu0 %v506
    %633 = vmatprep.subr.mxu0 %v511
    %634 = vmatpush1.msra.mxu0 %v510
    %635 = vmatprep.subr.mxu0 %v515
    %636 = vmatpush1.msra.mxu0 %v514
    %637 = vmatprep.subr.mxu0 %v519
    %638 = vmatpush1.msra.mxu0 %v518
    %639 = vmatprep.subr.mxu0 %v523
    %640 = vmatpush1.msra.mxu0 %v522
    %641 = vmatprep.subr.mxu0 %v527
    %642 = vmatpush1.msra.mxu0 %v526
    %643 = vmatprep.subr.mxu0 %v531
    %644 = vmatpush1.msra.mxu0 %v530
    %645 = vmatprep.subr.mxu0 %v535
    %646 = vmatpush1.msra.mxu0 %v534
    %647 = vmatprep.subr.mxu0 %v539
    %648 = vmatpush1.msra.mxu0 %v538
    %649 = vmatprep.subr.mxu0 %v543
    %650 = vmatpush1.msra.mxu0 %v542
    %651 = vmatprep.subr.mxu0 %v547
    %652 = vmatpush1.msra.mxu0 %v546
    %653 = vmatprep.subr.mxu0 %v551
    %654 = vmatpush1.msra.mxu0 %v550
    %655 = vmatprep.subr.mxu0 0.0
    %656 = vmatpush1.msra.mxu0 0.0
    %657 = vmatprep.subr.mxu0 0.0
    %658 = vmatpush1.msra.mxu0 0.0
    %659 = vmatprep.subr.mxu0 0.0
    %660 = vmatpush1.msra.mxu0 0.0
    %661 = vmatprep.subr.mxu0 0.0
    %662 = vmatpush1.msra.mxu0 0.0
    %663 = vmatprep.subr.mxu0 0.0
    %664 = vmatpush1.msra.mxu0 0.0
    %665 = vmatprep.subr.mxu0 0.0
    %666 = vmatpush1.msra.mxu0 0.0
    %667 = vmatprep.subr.mxu0 0.0
    %668 = vmatpush1.msra.mxu0 0.0
    %669 = vmatprep.subr.mxu0 0.0
    %670 = vmatpush1.msra.mxu0 0.0
    %671 = vmatprep.subr.mxu0 0.0
    %672 = vmatpush1.msra.mxu0 0.0
    %673 = vmatprep.subr.mxu0 0.0
    %674 = vmatpush1.msra.mxu0 0.0
    %675 = vmatprep.subr.mxu0 0.0
    %676 = vmatpush1.msra.mxu0 0.0
    %677 = vmatprep.subr.mxu0 0.0
    %678 = vmatpush1.msra.mxu0 0.0
    %679 = vmatprep.subr.mxu0 0.0
    %680 = vmatpush1.msra.mxu0 0.0
    %681 = vmatprep.subr.mxu0 0.0
    %682 = vmatpush1.msra.mxu0 0.0
    %683 = vmatprep.subr.mxu0 0.0
    %684 = vmatpush1.msra.mxu0 0.0
    %685 = vmatprep.subr.mxu0 0.0
    %686 = vmatpush1.msra.mxu0 0.0
    %687 = vmatprep.mubr.f32.mxu0 0.0
    %688 = vmatmul.mubr.f32.gmra.mrb[0].mxu0 %v487
    %v689 = vpop.f32.mrb[0].mxu0
    %v690 = vadd.f32 0.0, %v689
    %v691 = vpop.f32.mrb[0].mxu0
    %v692 = vadd.f32 0.0, %v691
    %693 = vdwg.mxu0
    %v694 = vadd.f32 %v483, %v619
    %v695 = vadd.f32 %v484, %v621
    %v696 = vadd.f32 %v485, %v690
    %v697 = vadd.f32 %v486, %v692
    %v698 = vxor.u32 %v694, 2147483648
    %v699 = vmul.f32 %v698, 1.442695
    %v700 = vpow.pop %v699
    %v701 = vadd.f32 %v700, 1.0
    %v702 = vrcp.pop %v701
    %v703 = vmul.f32 1.0, %v702
    %v704 = vxor.u32 %v695, 2147483648
    %v705 = vmul.f32 %v704, 1.442695
    %v706 = vpow.pop %v705
    %v707 = vadd.f32 %v706, 1.0
    %v708 = vrcp.pop %v707
    %v709 = vmul.f32 1.0, %v708
    %v710 = vtanh.pop %v696
    %v711 = vxor.u32 %v697, 2147483648
    %v712 = vmul.f32 %v711, 1.442695
    %v713 = vpow.pop %v712
    %v714 = vadd.f32 %v713, 1.0
    %v715 = vrcp.pop %v714
    %v716 = vmul.f32 1.0, %v715
    %v717 = vld [vmem:[#allocation4] sm:$0xff]
    %v718 = vmul.f32 %v709, %v717
    %v719 = vmul.f32 %v703, %v710
    %v720 = vadd.f32 %v718, %v719
    %v721 = vtanh.pop %v720
    %v722 = vmul.f32 %v716, %v721
    %723 = vst [vmem:[#allocation4] sm:$0xff] %v720
    %724 = vst [vmem:[#allocation3] sm:$0xff] %v722
    %s725 = smul.u32 1, 4
    %s726 = smul.addr %s725, 8
    %s727 = scalar_lea.vmem [#allocation2], %s726
    %v728 = vld [vmem:[%s727] sm:$0xff]
    %v729 = vld [vmem:[%s727 + $0x8] sm:$0xff]
    %v730 = vld [vmem:[%s727 + $0x10] sm:$0xff]
    %v731 = vld [vmem:[%s727 + $0x18] sm:$0xff]
    %v732 = vld [vmem:[#allocation3] sm:$0xff]
    %v733 = vld [vmem:[#allocation10] sm:$0xff]
    %v734 = vld [vmem:[#allocation10 + $0x8] sm:$0xff]
    %v735 = vld [vmem:[#allocation10 + $0x10] sm:$0xff]
    %v736 = vld [vmem:[#allocation10 + $0x18] sm:$0xff]
    %v737 = vld [vmem:[#allocation10 + $0x20] sm:$0xff]
    %v738 = vld [vmem:[#allocation10 + $0x28] sm:$0xff]
    %v739 = vld [vmem:[#allocation10 + $0x30] sm:$0xff]
    %v740 = vld [vmem:[#allocation10 + $0x38] sm:$0xff]
    %v741 = vld [vmem:[#allocation10 + $0x40] sm:$0xff]
    %v742 = vld [vmem:[#allocation10 + $0x48] sm:$0xff]
    %v743 = vld [vmem:[#allocation10 + $0x50] sm:$0xff]
    %v744 = vld [vmem:[#allocation10 + $0x58] sm:$0xff]
    %v745 = vld [vmem:[#allocation10 + $0x60] sm:$0xff]
    %v746 = vld [vmem:[#allocation10 + $0x68] sm:$0xff]
    %v747 = vld [vmem:[#allocation10 + $0x70] sm:$0xff]
    %v748 = vld [vmem:[#allocation10 + $0x78] sm:$0xff]
    %v749 = vld [vmem:[#allocation10 + $0x80] sm:$0xff]
    %v750 = vld [vmem:[#allocation10 + $0x88] sm:$0xff]
    %v751 = vld [vmem:[#allocation10 + $0x90] sm:$0xff]
    %v752 = vld [vmem:[#allocation10 + $0x98] sm:$0xff]
    %v753 = vld [vmem:[#allocation10 + $0xa0] sm:$0xff]
    %v754 = vld [vmem:[#allocation10 + $0xa8] sm:$0xff]
    %v755 = vld [vmem:[#allocation10 + $0xb0] sm:$0xff]
    %v756 = vld [vmem:[#allocation10 + $0xb8] sm:$0xff]
    %v757 = vld [vmem:[#allocation10 + $0xc0] sm:$0xff]
    %v758 = vld [vmem:[#allocation10 + $0xc8] sm:$0xff]
    %v759 = vld [vmem:[#allocation10 + $0xd0] sm:$0xff]
    %v760 = vld [vmem:[#allocation10 + $0xd8] sm:$0xff]
    %v761 = vld [vmem:[#allocation10 + $0xe0] sm:$0xff]
    %v762 = vld [vmem:[#allocation10 + $0xe8] sm:$0xff]
    %v763 = vld [vmem:[#allocation10 + $0xf0] sm:$0xff]
    %v764 = vld [vmem:[#allocation10 + $0xf8] sm:$0xff]
    %v765 = vld [vmem:[#allocation10 + $0x100] sm:$0xff]
    %v766 = vld [vmem:[#allocation10 + $0x108] sm:$0xff]
    %v767 = vld [vmem:[#allocation10 + $0x110] sm:$0xff]
    %v768 = vld [vmem:[#allocation10 + $0x118] sm:$0xff]
    %v769 = vld [vmem:[#allocation10 + $0x120] sm:$0xff]
    %v770 = vld [vmem:[#allocation10 + $0x128] sm:$0xff]
    %v771 = vld [vmem:[#allocation10 + $0x130] sm:$0xff]
    %v772 = vld [vmem:[#allocation10 + $0x138] sm:$0xff]
    %v773 = vld [vmem:[#allocation10 + $0x140] sm:$0xff]
    %v774 = vld [vmem:[#allocation10 + $0x148] sm:$0xff]
    %v775 = vld [vmem:[#allocation10 + $0x150] sm:$0xff]
    %v776 = vld [vmem:[#allocation10 + $0x158] sm:$0xff]
    %v777 = vld [vmem:[#allocation10 + $0x160] sm:$0xff]
    %v778 = vld [vmem:[#allocation10 + $0x168] sm:$0xff]
    %v779 = vld [vmem:[#allocation10 + $0x170] sm:$0xff]
    %v780 = vld [vmem:[#allocation10 + $0x178] sm:$0xff]
    %v781 = vld [vmem:[#allocation10 + $0x180] sm:$0xff]
    %v782 = vld [vmem:[#allocation10 + $0x188] sm:$0xff]
    %v783 = vld [vmem:[#allocation10 + $0x190] sm:$0xff]
    %v784 = vld [vmem:[#allocation10 + $0x198] sm:$0xff]
    %v785 = vld [vmem:[#allocation10 + $0x1a0] sm:$0xff]
    %v786 = vld [vmem:[#allocation10 + $0x1a8] sm:$0xff]
    %v787 = vld [vmem:[#allocation10 + $0x1b0] sm:$0xff]
    %v788 = vld [vmem:[#allocation10 + $0x1b8] sm:$0xff]
    %v789 = vld [vmem:[#allocation10 + $0x1c0] sm:$0xff]
    %v790 = vld [vmem:[#allocation10 + $0x1c8] sm:$0xff]
    %v791 = vld [vmem:[#allocation10 + $0x1d0] sm:$0xff]
    %v792 = vld [vmem:[#allocation10 + $0x1d8] sm:$0xff]
    %v793 = vld [vmem:[#allocation10 + $0x1e0] sm:$0xff]
    %v794 = vld [vmem:[#allocation10 + $0x1e8] sm:$0xff]
    %v795 = vld [vmem:[#allocation10 + $0x1f0] sm:$0xff]
    %v796 = vld [vmem:[#allocation10 + $0x1f8] sm:$0xff]
    %797 = vmatprep.subr.mxu0 %v734
    %798 = vmatpush1.msra.mxu0 %v733
    %799 = vmatprep.subr.mxu0 %v738
    %800 = vmatpush1.msra.mxu0 %v737
    %801 = vmatprep.subr.mxu0 %v742
    %802 = vmatpush1.msra.mxu0 %v741
    %803 = vmatprep.subr.mxu0 %v746
    %804 = vmatpush1.msra.mxu0 %v745
    %805 = vmatprep.subr.mxu0 %v750
    %806 = vmatpush1.msra.mxu0 %v749
    %807 = vmatprep.subr.mxu0 %v754
    %808 = vmatpush1.msra.mxu0 %v753
    %809 = vmatprep.subr.mxu0 %v758
    %810 = vmatpush1.msra.mxu0 %v757
    %811 = vmatprep.subr.mxu0 %v762
    %812 = vmatpush1.msra.mxu0 %v761
    %813 = vmatprep.subr.mxu0 %v766
    %814 = vmatpush1.msra.mxu0 %v765
    %815 = vmatprep.subr.mxu0 %v770
    %816 = vmatpush1.msra.mxu0 %v769
    %817 = vmatprep.subr.mxu0 %v774
    %818 = vmatpush1.msra.mxu0 %v773
    %819 = vmatprep.subr.mxu0 %v778
    %820 = vmatpush1.msra.mxu0 %v777
    %821 = vmatprep.subr.mxu0 %v782
    %822 = vmatpush1.msra.mxu0 %v781
    %823 = vmatprep.subr.mxu0 %v786
    %824 = vmatpush1.msra.mxu0 %v785
    %825 = vmatprep.subr.mxu0 %v790
    %826 = vmatpush1.msra.mxu0 %v789
    %827 = vmatprep.subr.mxu0 %v794
    %828 = vmatpush1.msra.mxu0 %v793
    %829 = vmatprep.subr.mxu0 0.0
    %830 = vmatpush1.msra.mxu0 0.0
    %831 = vmatprep.subr.mxu0 0.0
    %832 = vmatpush1.msra.mxu0 0.0
    %833 = vmatprep.subr.mxu0 0.0
    %834 = vmatpush1.msra.mxu0 0.0
    %835 = vmatprep.subr.mxu0 0.0
    %836 = vmatpush1.msra.mxu0 0.0
    %837 = vmatprep.subr.mxu0 0.0
    %838 = vmatpush1.msra.mxu0 0.0
    %839 = vmatprep.subr.mxu0 0.0
    %840 = vmatpush1.msra.mxu0 0.0
    %841 = vmatprep.subr.mxu0 0.0
    %842 = vmatpush1.msra.mxu0 0.0
    %843 = vmatprep.subr.mxu0 0.0
    %844 = vmatpush1.msra.mxu0 0.0
    %845 = vmatprep.subr.mxu0 0.0
    %846 = vmatpush1.msra.mxu0 0.0
    %847 = vmatprep.subr.mxu0 0.0
    %848 = vmatpush1.msra.mxu0 0.0
    %849 = vmatprep.subr.mxu0 0.0
    %850 = vmatpush1.msra.mxu0 0.0
    %851 = vmatprep.subr.mxu0 0.0
    %852 = vmatpush1.msra.mxu0 0.0
    %853 = vmatprep.subr.mxu0 0.0
    %854 = vmatpush1.msra.mxu0 0.0
    %855 = vmatprep.subr.mxu0 0.0
    %856 = vmatpush1.msra.mxu0 0.0
    %857 = vmatprep.subr.mxu0 0.0
    %858 = vmatpush1.msra.mxu0 0.0
    %859 = vmatprep.subr.mxu0 0.0
    %860 = vmatpush1.msra.mxu0 0.0
    %861 = vmatprep.mubr.f32.mxu0 0.0
    %862 = vmatmul.mubr.f32.gmra.mrb[0].mxu0 %v732
    %v863 = vpop.f32.mrb[0].mxu0
    %v864 = vadd.f32 0.0, %v863
    %v865 = vpop.f32.mrb[0].mxu0
    %v866 = vadd.f32 0.0, %v865
    %867 = vdwg.mxu0
    %868 = vmatprep.subr.mxu0 %v736
    %869 = vmatpush1.msra.mxu0 %v735
    %870 = vmatprep.subr.mxu0 %v740
    %871 = vmatpush1.msra.mxu0 %v739
    %872 = vmatprep.subr.mxu0 %v744
    %873 = vmatpush1.msra.mxu0 %v743
    %874 = vmatprep.subr.mxu0 %v748
    %875 = vmatpush1.msra.mxu0 %v747
    %876 = vmatprep.subr.mxu0 %v752
    %877 = vmatpush1.msra.mxu0 %v751
    %878 = vmatprep.subr.mxu0 %v756
    %879 = vmatpush1.msra.mxu0 %v755
    %880 = vmatprep.subr.mxu0 %v760
    %881 = vmatpush1.msra.mxu0 %v759
    %882 = vmatprep.subr.mxu0 %v764
    %883 = vmatpush1.msra.mxu0 %v763
    %884 = vmatprep.subr.mxu0 %v768
    %885 = vmatpush1.msra.mxu0 %v767
    %886 = vmatprep.subr.mxu0 %v772
    %887 = vmatpush1.msra.mxu0 %v771
    %888 = vmatprep.subr.mxu0 %v776
    %889 = vmatpush1.msra.mxu0 %v775
    %890 = vmatprep.subr.mxu0 %v780
    %891 = vmatpush1.msra.mxu0 %v779
    %892 = vmatprep.subr.mxu0 %v784
    %893 = vmatpush1.msra.mxu0 %v783
    %894 = vmatprep.subr.mxu0 %v788
    %895 = vmatpush1.msra.mxu0 %v787
    %896 = vmatprep.subr.mxu0 %v792
    %897 = vmatpush1.msra.mxu0 %v791
    %898 = vmatprep.subr.mxu0 %v796
    %899 = vmatpush1.msra.mxu0 %v795
    %900 = vmatprep.subr.mxu0 0.0
    %901 = vmatpush1.msra.mxu0 0.0
    %902 = vmatprep.subr.mxu0 0.0
    %903 = vmatpush1.msra.mxu0 0.0
    %904 = vmatprep.subr.mxu0 0.0
    %905 = vmatpush1.msra.mxu0 0.0
    %906 = vmatprep.subr.mxu0 0.0
    %907 = vmatpush1.msra.mxu0 0.0
    %908 = vmatprep.subr.mxu0 0.0
    %909 = vmatpush1.msra.mxu0 0.0
    %910 = vmatprep.subr.mxu0 0.0
    %911 = vmatpush1.msra.mxu0 0.0
    %912 = vmatprep.subr.mxu0 0.0
    %913 = vmatpush1.msra.mxu0 0.0
    %914 = vmatprep.subr.mxu0 0.0
    %915 = vmatpush1.msra.mxu0 0.0
    %916 = vmatprep.subr.mxu0 0.0
    %917 = vmatpush1.msra.mxu0 0.0
    %918 = vmatprep.subr.mxu0 0.0
    %919 = vmatpush1.msra.mxu0 0.0
    %920 = vmatprep.subr.mxu0 0.0
    %921 = vmatpush1.msra.mxu0 0.0
    %922 = vmatprep.subr.mxu0 0.0
    %923 = vmatpush1.msra.mxu0 0.0
    %924 = vmatprep.subr.mxu0 0.0
    %925 = vmatpush1.msra.mxu0 0.0
    %926 = vmatprep.subr.mxu0 0.0
    %927 = vmatpush1.msra.mxu0 0.0
    %928 = vmatprep.subr.mxu0 0.0
    %929 = vmatpush1.msra.mxu0 0.0
    %930 = vmatprep.subr.mxu0 0.0
    %931 = vmatpush1.msra.mxu0 0.0
    %932 = vmatprep.mubr.f32.mxu0 0.0
    %933 = vmatmul.mubr.f32.gmra.mrb[0].mxu0 %v732
    %v934 = vpop.f32.mrb[0].mxu0
    %v935 = vadd.f32 0.0, %v934
    %v936 = vpop.f32.mrb[0].mxu0
    %v937 = vadd.f32 0.0, %v936
    %938 = vdwg.mxu0
    %v939 = vadd.f32 %v728, %v864
    %v940 = vadd.f32 %v729, %v866
    %v941 = vadd.f32 %v730, %v935
    %v942 = vadd.f32 %v731, %v937
    %v943 = vxor.u32 %v939, 2147483648
    %v944 = vmul.f32 %v943, 1.442695
    %v945 = vpow.pop %v944
    %v946 = vadd.f32 %v945, 1.0
    %v947 = vrcp.pop %v946
    %v948 = vmul.f32 1.0, %v947
    %v949 = vxor.u32 %v940, 2147483648
    %v950 = vmul.f32 %v949, 1.442695
    %v951 = vpow.pop %v950
    %v952 = vadd.f32 %v951, 1.0
    %v953 = vrcp.pop %v952
    %v954 = vmul.f32 1.0, %v953
    %v955 = vtanh.pop %v941
    %v956 = vxor.u32 %v942, 2147483648
    %v957 = vmul.f32 %v956, 1.442695
    %v958 = vpow.pop %v957
    %v959 = vadd.f32 %v958, 1.0
    %v960 = vrcp.pop %v959
    %v961 = vmul.f32 1.0, %v960
    %v962 = vld [vmem:[#allocation4] sm:$0xff]
    %v963 = vmul.f32 %v954, %v962
    %v964 = vmul.f32 %v948, %v955
    %v965 = vadd.f32 %v963, %v964
    %v966 = vtanh.pop %v965
    %v967 = vmul.f32 %v961, %v966
    %968 = vst [vmem:[#allocation4] sm:$0xff] %v965
    %969 = vst [vmem:[#allocation3] sm:$0xff] %v967
    %s970 = smul.u32 2, 4
    %s971 = smul.addr %s970, 8
    %s972 = scalar_lea.vmem [#allocation2], %s971
    %v973 = vld [vmem:[%s972] sm:$0xff]
    %v974 = vld [vmem:[%s972 + $0x8] sm:$0xff]
    %v975 = vld [vmem:[%s972 + $0x10] sm:$0xff]
    %v976 = vld [vmem:[%s972 + $0x18] sm:$0xff]
    %v977 = vld [vmem:[#allocation3] sm:$0xff]
    %v978 = vld [vmem:[#allocation10] sm:$0xff]
    %v979 = vld [vmem:[#allocation10 + $0x8] sm:$0xff]
    %v980 = vld [vmem:[#allocation10 + $0x10] sm:$0xff]
    %v981 = vld [vmem:[#allocation10 + $0x18] sm:$0xff]
    %v982 = vld [vmem:[#allocation10 + $0x20] sm:$0xff]
    %v983 = vld [vmem:[#allocation10 + $0x28] sm:$0xff]
    %v984 = vld [vmem:[#allocation10 + $0x30] sm:$0xff]
    %v985 = vld [vmem:[#allocation10 + $0x38] sm:$0xff]
    %v986 = vld [vmem:[#allocation10 + $0x40] sm:$0xff]
    %v987 = vld [vmem:[#allocation10 + $0x48] sm:$0xff]
    %v988 = vld [vmem:[#allocation10 + $0x50] sm:$0xff]
    %v989 = vld [vmem:[#allocation10 + $0x58] sm:$0xff]
    %v990 = vld [vmem:[#allocation10 + $0x60] sm:$0xff]
    %v991 = vld [vmem:[#allocation10 + $0x68] sm:$0xff]
    %v992 = vld [vmem:[#allocation10 + $0x70] sm:$0xff]
    %v993 = vld [vmem:[#allocation10 + $0x78] sm:$0xff]
    %v994 = vld [vmem:[#allocation10 + $0x80] sm:$0xff]
    %v995 = vld [vmem:[#allocation10 + $0x88] sm:$0xff]
    %v996 = vld [vmem:[#allocation10 + $0x90] sm:$0xff]
    %v997 = vld [vmem:[#allocation10 + $0x98] sm:$0xff]
    %v998 = vld [vmem:[#allocation10 + $0xa0] sm:$0xff]
    %v999 = vld [vmem:[#allocation10 + $0xa8] sm:$0xff]
    %v1000 = vld [vmem:[#allocation10 + $0xb0] sm:$0xff]
    %v1001 = vld [vmem:[#allocation10 + $0xb8] sm:$0xff]
    %v1002 = vld [vmem:[#allocation10 + $0xc0] sm:$0xff]
    %v1003 = vld [vmem:[#allocation10 + $0xc8] sm:$0xff]
    %v1004 = vld [vmem:[#allocation10 + $0xd0] sm:$0xff]
    %v1005 = vld [vmem:[#allocation10 + $0xd8] sm:$0xff]
    %v1006 = vld [vmem:[#allocation10 + $0xe0] sm:$0xff]
    %v1007 = vld [vmem:[#allocation10 + $0xe8] sm:$0xff]
    %v1008 = vld [vmem:[#allocation10 + $0xf0] sm:$0xff]
    %v1009 = vld [vmem:[#allocation10 + $0xf8] sm:$0xff]
    %v1010 = vld [vmem:[#allocation10 + $0x100] sm:$0xff]
    %v1011 = vld [vmem:[#allocation10 + $0x108] sm:$0xff]
    %v1012 = vld [vmem:[#allocation10 + $0x110] sm:$0xff]
    %v1013 = vld [vmem:[#allocation10 + $0x118] sm:$0xff]
    %v1014 = vld [vmem:[#allocation10 + $0x120] sm:$0xff]
    %v1015 = vld [vmem:[#allocation10 + $0x128] sm:$0xff]
    %v1016 = vld [vmem:[#allocation10 + $0x130] sm:$0xff]
    %v1017 = vld [vmem:[#allocation10 + $0x138] sm:$0xff]
    %v1018 = vld [vmem:[#allocation10 + $0x140] sm:$0xff]
    %v1019 = vld [vmem:[#allocation10 + $0x148] sm:$0xff]
    %v1020 = vld [vmem:[#allocation10 + $0x150] sm:$0xff]
    %v1021 = vld [vmem:[#allocation10 + $0x158] sm:$0xff]
    %v1022 = vld [vmem:[#allocation10 + $0x160] sm:$0xff]
    %v1023 = vld [vmem:[#allocation10 + $0x168] sm:$0xff]
    %v1024 = vld [vmem:[#allocation10 + $0x170] sm:$0xff]
    %v1025 = vld [vmem:[#allocation10 + $0x178] sm:$0xff]
    %v1026 = vld [vmem:[#allocation10 + $0x180] sm:$0xff]
    %v1027 = vld [vmem:[#allocation10 + $0x188] sm:$0xff]
    %v1028 = vld [vmem:[#allocation10 + $0x190] sm:$0xff]
    %v1029 = vld [vmem:[#allocation10 + $0x198] sm:$0xff]
    %v1030 = vld [vmem:[#allocation10 + $0x1a0] sm:$0xff]
    %v1031 = vld [vmem:[#allocation10 + $0x1a8] sm:$0xff]
    %v1032 = vld [vmem:[#allocation10 + $0x1b0] sm:$0xff]
    %v1033 = vld [vmem:[#allocation10 + $0x1b8] sm:$0xff]
    %v1034 = vld [vmem:[#allocation10 + $0x1c0] sm:$0xff]
    %v1035 = vld [vmem:[#allocation10 + $0x1c8] sm:$0xff]
    %v1036 = vld [vmem:[#allocation10 + $0x1d0] sm:$0xff]
    %v1037 = vld [vmem:[#allocation10 + $0x1d8] sm:$0xff]
    %v1038 = vld [vmem:[#allocation10 + $0x1e0] sm:$0xff]
    %v1039 = vld [vmem:[#allocation10 + $0x1e8] sm:$0xff]
    %v1040 = vld [vmem:[#allocation10 + $0x1f0] sm:$0xff]
    %v1041 = vld [vmem:[#allocation10 + $0x1f8] sm:$0xff]
    %1042 = vmatprep.subr.mxu0 %v979
    %1043 = vmatpush1.msra.mxu0 %v978
    %1044 = vmatprep.subr.mxu0 %v983
    %1045 = vmatpush1.msra.mxu0 %v982
    %1046 = vmatprep.subr.mxu0 %v987
    %1047 = vmatpush1.msra.mxu0 %v986
    %1048 = vmatprep.subr.mxu0 %v991
    %1049 = vmatpush1.msra.mxu0 %v990
    %1050 = vmatprep.subr.mxu0 %v995
    %1051 = vmatpush1.msra.mxu0 %v994
    %1052 = vmatprep.subr.mxu0 %v999
    %1053 = vmatpush1.msra.mxu0 %v998
    %1054 = vmatprep.subr.mxu0 %v1003
    %1055 = vmatpush1.msra.mxu0 %v1002
    %1056 = vmatprep.subr.mxu0 %v1007
    %1057 = vmatpush1.msra.mxu0 %v1006
    %1058 = vmatprep.subr.mxu0 %v1011
    %1059 = vmatpush1.msra.mxu0 %v1010
    %1060 = vmatprep.subr.mxu0 %v1015
    %1061 = vmatpush1.msra.mxu0 %v1014
    %1062 = vmatprep.subr.mxu0 %v1019
    %1063 = vmatpush1.msra.mxu0 %v1018
    %1064 = vmatprep.subr.mxu0 %v1023
    %1065 = vmatpush1.msra.mxu0 %v1022
    %1066 = vmatprep.subr.mxu0 %v1027
    %1067 = vmatpush1.msra.mxu0 %v1026
    %1068 = vmatprep.subr.mxu0 %v1031
    %1069 = vmatpush1.msra.mxu0 %v1030
    %1070 = vmatprep.subr.mxu0 %v1035
    %1071 = vmatpush1.msra.mxu0 %v1034
    %1072 = vmatprep.subr.mxu0 %v1039
    %1073 = vmatpush1.msra.mxu0 %v1038
    %1074 = vmatprep.subr.mxu0 0.0
    %1075 = vmatpush1.msra.mxu0 0.0
    %1076 = vmatprep.subr.mxu0 0.0
    %1077 = vmatpush1.msra.mxu0 0.0
    %1078 = vmatprep.subr.mxu0 0.0
    %1079 = vmatpush1.msra.mxu0 0.0
    %1080 = vmatprep.subr.mxu0 0.0
    %1081 = vmatpush1.msra.mxu0 0.0
    %1082 = vmatprep.subr.mxu0 0.0
    %1083 = vmatpush1.msra.mxu0 0.0
    %1084 = vmatprep.subr.mxu0 0.0
    %1085 = vmatpush1.msra.mxu0 0.0
    %1086 = vmatprep.subr.mxu0 0.0
    %1087 = vmatpush1.msra.mxu0 0.0
    %1088 = vmatprep.subr.mxu0 0.0
    %1089 = vmatpush1.msra.mxu0 0.0
    %1090 = vmatprep.subr.mxu0 0.0
    %1091 = vmatpush1.msra.mxu0 0.0
    %1092 = vmatprep.subr.mxu0 0.0
    %1093 = vmatpush1.msra.mxu0 0.0
    %1094 = vmatprep.subr.mxu0 0.0
    %1095 = vmatpush1.msra.mxu0 0.0
    %1096 = vmatprep.subr.mxu0 0.0
    %1097 = vmatpush1.msra.mxu0 0.0
    %1098 = vmatprep.subr.mxu0 0.0
    %1099 = vmatpush1.msra.mxu0 0.0
    %1100 = vmatprep.subr.mxu0 0.0
    %1101 = vmatpush1.msra.mxu0 0.0
    %1102 = vmatprep.subr.mxu0 0.0
    %1103 = vmatpush1.msra.mxu0 0.0
    %1104 = vmatprep.subr.mxu0 0.0
    %1105 = vmatpush1.msra.mxu0 0.0
    %1106 = vmatprep.mubr.f32.mxu0 0.0
    %1107 = vmatmul.mubr.f32.gmra.mrb[0].mxu0 %v977
    %v1108 = vpop.f32.mrb[0].mxu0
    %v1109 = vadd.f32 0.0, %v1108
    %v1110 = vpop.f32.mrb[0].mxu0
    %v1111 = vadd.f32 0.0, %v1110
    %1112 = vdwg.mxu0
    %1113 = vmatprep.subr.mxu0 %v981
    %1114 = vmatpush1.msra.mxu0 %v980
    %1115 = vmatprep.subr.mxu0 %v985
    %1116 = vmatpush1.msra.mxu0 %v984
    %1117 = vmatprep.subr.mxu0 %v989
    %1118 = vmatpush1.msra.mxu0 %v988
    %1119 = vmatprep.subr.mxu0 %v993
    %1120 = vmatpush1.msra.mxu0 %v992
    %1121 = vmatprep.subr.mxu0 %v997
    %1122 = vmatpush1.msra.mxu0 %v996
    %1123 = vmatprep.subr.mxu0 %v1001
    %1124 = vmatpush1.msra.mxu0 %v1000
    %1125 = vmatprep.subr.mxu0 %v1005
    %1126 = vmatpush1.msra.mxu0 %v1004
    %1127 = vmatprep.subr.mxu0 %v1009
    %1128 = vmatpush1.msra.mxu0 %v1008
    %1129 = vmatprep.subr.mxu0 %v1013
    %1130 = vmatpush1.msra.mxu0 %v1012
    %1131 = vmatprep.subr.mxu0 %v1017
    %1132 = vmatpush1.msra.mxu0 %v1016
    %1133 = vmatprep.subr.mxu0 %v1021
    %1134 = vmatpush1.msra.mxu0 %v1020
    %1135 = vmatprep.subr.mxu0 %v1025
    %1136 = vmatpush1.msra.mxu0 %v1024
    %1137 = vmatprep.subr.mxu0 %v1029
    %1138 = vmatpush1.msra.mxu0 %v1028
    %1139 = vmatprep.subr.mxu0 %v1033
    %1140 = vmatpush1.msra.mxu0 %v1032
    %1141 = vmatprep.subr.mxu0 %v1037
    %1142 = vmatpush1.msra.mxu0 %v1036
    %1143 = vmatprep.subr.mxu0 %v1041
    %1144 = vmatpush1.msra.mxu0 %v1040
    %1145 = vmatprep.subr.mxu0 0.0
    %1146 = vmatpush1.msra.mxu0 0.0
    %1147 = vmatprep.subr.mxu0 0.0
    %1148 = vmatpush1.msra.mxu0 0.0
    %1149 = vmatprep.subr.mxu0 0.0
    %1150 = vmatpush1.msra.mxu0 0.0
    %1151 = vmatprep.subr.mxu0 0.0
    %1152 = vmatpush1.msra.mxu0 0.0
    %1153 = vmatprep.subr.mxu0 0.0
    %1154 = vmatpush1.msra.mxu0 0.0
    %1155 = vmatprep.subr.mxu0 0.0
    %1156 = vmatpush1.msra.mxu0 0.0
    %1157 = vmatprep.subr.mxu0 0.0
    %1158 = vmatpush1.msra.mxu0 0.0
    %1159 = vmatprep.subr.mxu0 0.0
    %1160 = vmatpush1.msra.mxu0 0.0
    %1161 = vmatprep.subr.mxu0 0.0
    %1162 = vmatpush1.msra.mxu0 0.0
    %1163 = vmatprep.subr.mxu0 0.0
    %1164 = vmatpush1.msra.mxu0 0.0
    %1165 = vmatprep.subr.mxu0 0.0
    %1166 = vmatpush1.msra.mxu0 0.0
    %1167 = vmatprep.subr.mxu0 0.0
    %1168 = vmatpush1.msra.mxu0 0.0
    %1169 = vmatprep.subr.mxu0 0.0
    %1170 = vmatpush1.msra.mxu0 0.0
    %1171 = vmatprep.subr.mxu0 0.0
    %1172 = vmatpush1.msra.mxu0 0.0
    %1173 = vmatprep.subr.mxu0 0.0
    %1174 = vmatpush1.msra.mxu0 0.0
    %1175 = vmatprep.subr.mxu0 0.0
    %1176 = vmatpush1.msra.mxu0 0.0
    %1177 = vmatprep.mubr.f32.mxu0 0.0
    %1178 = vmatmul.mubr.f32.gmra.mrb[0].mxu0 %v977
    %v1179 = vpop.f32.mrb[0].mxu0
    %v1180 = vadd.f32 0.0, %v1179
    %v1181 = vpop.f32.mrb[0].mxu0
    %v1182 = vadd.f32 0.0, %v1181
    %1183 = vdwg.mxu0
    %v1184 = vadd.f32 %v973, %v1109
    %v1185 = vadd.f32 %v974, %v1111
    %v1186 = vadd.f32 %v975, %v1180
    %v1187 = vadd.f32 %v976, %v1182
    %v1188 = vxor.u32 %v1184, 2147483648
    %v1189 = vmul.f32 %v1188, 1.442695
    %v1190 = vpow.pop %v1189
    %v1191 = vadd.f32 %v1190, 1.0
    %v1192 = vrcp.pop %v1191
    %v1193 = vmul.f32 1.0, %v1192
    %v1194 = vxor.u32 %v1185, 2147483648
    %v1195 = vmul.f32 %v1194, 1.442695
    %v1196 = vpow.pop %v1195
    %v1197 = vadd.f32 %v1196, 1.0
    %v1198 = vrcp.pop %v1197
    %v1199 = vmul.f32 1.0, %v1198
    %v1200 = vtanh.pop %v1186
    %v1201 = vxor.u32 %v1187, 2147483648
    %v1202 = vmul.f32 %v1201, 1.442695
    %v1203 = vpow.pop %v1202
    %v1204 = vadd.f32 %v1203, 1.0
    %v1205 = vrcp.pop %v1204
    %v1206 = vmul.f32 1.0, %v1205
    %v1207 = vld [vmem:[#allocation4] sm:$0xff]
    %v1208 = vmul.f32 %v1199, %v1207
    %v1209 = vmul.f32 %v1193, %v1200
    %v1210 = vadd.f32 %v1208, %v1209
    %v1211 = vtanh.pop %v1210
    %v1212 = vmul.f32 %v1206, %v1211
    %1213 = vst [vmem:[#allocation4] sm:$0xff] %v1210
    %1214 = vst [vmem:[#allocation3] sm:$0xff] %v1212
    %s1215 = smul.u32 3, 4
    %s1216 = smul.addr %s1215, 8
    %s1217 = scalar_lea.vmem [#allocation2], %s1216
    %v1218 = vld [vmem:[%s1217] sm:$0xff]
    %v1219 = vld [vmem:[%s1217 + $0x8] sm:$0xff]
    %v1220 = vld [vmem:[%s1217 + $0x10] sm:$0xff]
    %v1221 = vld [vmem:[%s1217 + $0x18] sm:$0xff]
    %v1222 = vld [vmem:[#allocation3] sm:$0xff]
    %v1223 = vld [vmem:[#allocation10] sm:$0xff]
    %v1224 = vld [vmem:[#allocation10 + $0x8] sm:$0xff]
    %v1225 = vld [vmem:[#allocation10 + $0x10] sm:$0xff]
    %v1226 = vld [vmem:[#allocation10 + $0x18] sm:$0xff]
    %v1227 = vld [vmem:[#allocation10 + $0x20] sm:$0xff]
    %v1228 = vld [vmem:[#allocation10 + $0x28] sm:$0xff]
    %v1229 = vld [vmem:[#allocation10 + $0x30] sm:$0xff]
    %v1230 = vld [vmem:[#allocation10 + $0x38] sm:$0xff]
    %v1231 = vld [vmem:[#allocation10 + $0x40] sm:$0xff]
    %v1232 = vld [vmem:[#allocation10 + $0x48] sm:$0xff]
    %v1233 = vld [vmem:[#allocation10 + $0x50] sm:$0xff]
    %v1234 = vld [vmem:[#allocation10 + $0x58] sm:$0xff]
    %v1235 = vld [vmem:[#allocation10 + $0x60] sm:$0xff]
    %v1236 = vld [vmem:[#allocation10 + $0x68] sm:$0xff]
    %v1237 = vld [vmem:[#allocation10 + $0x70] sm:$0xff]
    %v1238 = vld [vmem:[#allocation10 + $0x78] sm:$0xff]
    %v1239 = vld [vmem:[#allocation10 + $0x80] sm:$0xff]
    %v1240 = vld [vmem:[#allocation10 + $0x88] sm:$0xff]
    %v1241 = vld [vmem:[#allocation10 + $0x90] sm:$0xff]
    %v1242 = vld [vmem:[#allocation10 + $0x98] sm:$0xff]
    %v1243 = vld [vmem:[#allocation10 + $0xa0] sm:$0xff]
    %v1244 = vld [vmem:[#allocation10 + $0xa8] sm:$0xff]
    %v1245 = vld [vmem:[#allocation10 + $0xb0] sm:$0xff]
    %v1246 = vld [vmem:[#allocation10 + $0xb8] sm:$0xff]
    %v1247 = vld [vmem:[#allocation10 + $0xc0] sm:$0xff]
    %v1248 = vld [vmem:[#allocation10 + $0xc8] sm:$0xff]
    %v1249 = vld [vmem:[#allocation10 + $0xd0] sm:$0xff]
    %v1250 = vld [vmem:[#allocation10 + $0xd8] sm:$0xff]
    %v1251 = vld [vmem:[#allocation10 + $0xe0] sm:$0xff]
    %v1252 = vld [vmem:[#allocation10 + $0xe8] sm:$0xff]
    %v1253 = vld [vmem:[#allocation10 + $0xf0] sm:$0xff]
    %v1254 = vld [vmem:[#allocation10 + $0xf8] sm:$0xff]
    %v1255 = vld [vmem:[#allocation10 + $0x100] sm:$0xff]
    %v1256 = vld [vmem:[#allocation10 + $0x108] sm:$0xff]
    %v1257 = vld [vmem:[#allocation10 + $0x110] sm:$0xff]
    %v1258 = vld [vmem:[#allocation10 + $0x118] sm:$0xff]
    %v1259 = vld [vmem:[#allocation10 + $0x120] sm:$0xff]
    %v1260 = vld [vmem:[#allocation10 + $0x128] sm:$0xff]
    %v1261 = vld [vmem:[#allocation10 + $0x130] sm:$0xff]
    %v1262 = vld [vmem:[#allocation10 + $0x138] sm:$0xff]
    %v1263 = vld [vmem:[#allocation10 + $0x140] sm:$0xff]
    %v1264 = vld [vmem:[#allocation10 + $0x148] sm:$0xff]
    %v1265 = vld [vmem:[#allocation10 + $0x150] sm:$0xff]
    %v1266 = vld [vmem:[#allocation10 + $0x158] sm:$0xff]
    %v1267 = vld [vmem:[#allocation10 + $0x160] sm:$0xff]
    %v1268 = vld [vmem:[#allocation10 + $0x168] sm:$0xff]
    %v1269 = vld [vmem:[#allocation10 + $0x170] sm:$0xff]
    %v1270 = vld [vmem:[#allocation10 + $0x178] sm:$0xff]
    %v1271 = vld [vmem:[#allocation10 + $0x180] sm:$0xff]
    %v1272 = vld [vmem:[#allocation10 + $0x188] sm:$0xff]
    %v1273 = vld [vmem:[#allocation10 + $0x190] sm:$0xff]
    %v1274 = vld [vmem:[#allocation10 + $0x198] sm:$0xff]
    %v1275 = vld [vmem:[#allocation10 + $0x1a0] sm:$0xff]
    %v1276 = vld [vmem:[#allocation10 + $0x1a8] sm:$0xff]
    %v1277 = vld [vmem:[#allocation10 + $0x1b0] sm:$0xff]
    %v1278 = vld [vmem:[#allocation10 + $0x1b8] sm:$0xff]
    %v1279 = vld [vmem:[#allocation10 + $0x1c0] sm:$0xff]
    %v1280 = vld [vmem:[#allocation10 + $0x1c8] sm:$0xff]
    %v1281 = vld [vmem:[#allocation10 + $0x1d0] sm:$0xff]
    %v1282 = vld [vmem:[#allocation10 + $0x1d8] sm:$0xff]
    %v1283 = vld [vmem:[#allocation10 + $0x1e0] sm:$0xff]
    %v1284 = vld [vmem:[#allocation10 + $0x1e8] sm:$0xff]
    %v1285 = vld [vmem:[#allocation10 + $0x1f0] sm:$0xff]
    %v1286 = vld [vmem:[#allocation10 + $0x1f8] sm:$0xff]
    %1287 = vmatprep.subr.mxu0 %v1224
    %1288 = vmatpush1.msra.mxu0 %v1223
    %1289 = vmatprep.subr.mxu0 %v1228
    %1290 = vmatpush1.msra.mxu0 %v1227
    %1291 = vmatprep.subr.mxu0 %v1232
    %1292 = vmatpush1.msra.mxu0 %v1231
    %1293 = vmatprep.subr.mxu0 %v1236
    %1294 = vmatpush1.msra.mxu0 %v1235
    %1295 = vmatprep.subr.mxu0 %v1240
    %1296 = vmatpush1.msra.mxu0 %v1239
    %1297 = vmatprep.subr.mxu0 %v1244
    %1298 = vmatpush1.msra.mxu0 %v1243
    %1299 = vmatprep.subr.mxu0 %v1248
    %1300 = vmatpush1.msra.mxu0 %v1247
    %1301 = vmatprep.subr.mxu0 %v1252
    %1302 = vmatpush1.msra.mxu0 %v1251
    %1303 = vmatprep.subr.mxu0 %v1256
    %1304 = vmatpush1.msra.mxu0 %v1255
    %1305 = vmatprep.subr.mxu0 %v1260
    %1306 = vmatpush1.msra.mxu0 %v1259
    %1307 = vmatprep.subr.mxu0 %v1264
    %1308 = vmatpush1.msra.mxu0 %v1263
    %1309 = vmatprep.subr.mxu0 %v1268
    %1310 = vmatpush1.msra.mxu0 %v1267
    %1311 = vmatprep.subr.mxu0 %v1272
    %1312 = vmatpush1.msra.mxu0 %v1271
    %1313 = vmatprep.subr.mxu0 %v1276
    %1314 = vmatpush1.msra.mxu0 %v1275
    %1315 = vmatprep.subr.mxu0 %v1280
    %1316 = vmatpush1.msra.mxu0 %v1279
    %1317 = vmatprep.subr.mxu0 %v1284
    %1318 = vmatpush1.msra.mxu0 %v1283
    %1319 = vmatprep.subr.mxu0 0.0
    %1320 = vmatpush1.msra.mxu0 0.0
    %1321 = vmatprep.subr.mxu0 0.0
    %1322 = vmatpush1.msra.mxu0 0.0
    %1323 = vmatprep.subr.mxu0 0.0
    %1324 = vmatpush1.msra.mxu0 0.0
    %1325 = vmatprep.subr.mxu0 0.0
    %1326 = vmatpush1.msra.mxu0 0.0
    %1327 = vmatprep.subr.mxu0 0.0
    %1328 = vmatpush1.msra.mxu0 0.0
    %1329 = vmatprep.subr.mxu0 0.0
    %1330 = vmatpush1.msra.mxu0 0.0
    %1331 = vmatprep.subr.mxu0 0.0
    %1332 = vmatpush1.msra.mxu0 0.0
    %1333 = vmatprep.subr.mxu0 0.0
    %1334 = vmatpush1.msra.mxu0 0.0
    %1335 = vmatprep.subr.mxu0 0.0
    %1336 = vmatpush1.msra.mxu0 0.0
    %1337 = vmatprep.subr.mxu0 0.0
    %1338 = vmatpush1.msra.mxu0 0.0
    %1339 = vmatprep.subr.mxu0 0.0
    %1340 = vmatpush1.msra.mxu0 0.0
    %1341 = vmatprep.subr.mxu0 0.0
    %1342 = vmatpush1.msra.mxu0 0.0
    %1343 = vmatprep.subr.mxu0 0.0
    %1344 = vmatpush1.msra.mxu0 0.0
    %1345 = vmatprep.subr.mxu0 0.0
    %1346 = vmatpush1.msra.mxu0 0.0
    %1347 = vmatprep.subr.mxu0 0.0
    %1348 = vmatpush1.msra.mxu0 0.0
    %1349 = vmatprep.subr.mxu0 0.0
    %1350 = vmatpush1.msra.mxu0 0.0
    %1351 = vmatprep.mubr.f32.mxu0 0.0
    %1352 = vmatmul.mubr.f32.gmra.mrb[0].mxu0 %v1222
    %v1353 = vpop.f32.mrb[0].mxu0
    %v1354 = vadd.f32 0.0, %v1353
    %v1355 = vpop.f32.mrb[0].mxu0
    %v1356 = vadd.f32 0.0, %v1355
    %1357 = vdwg.mxu0
    %1358 = vmatprep.subr.mxu0 %v1226
    %1359 = vmatpush1.msra.mxu0 %v1225
    %1360 = vmatprep.subr.mxu0 %v1230
    %1361 = vmatpush1.msra.mxu0 %v1229
    %1362 = vmatprep.subr.mxu0 %v1234
    %1363 = vmatpush1.msra.mxu0 %v1233
    %1364 = vmatprep.subr.mxu0 %v1238
    %1365 = vmatpush1.msra.mxu0 %v1237
    %1366 = vmatprep.subr.mxu0 %v1242
    %1367 = vmatpush1.msra.mxu0 %v1241
    %1368 = vmatprep.subr.mxu0 %v1246
    %1369 = vmatpush1.msra.mxu0 %v1245
    %1370 = vmatprep.subr.mxu0 %v1250
    %1371 = vmatpush1.msra.mxu0 %v1249
    %1372 = vmatprep.subr.mxu0 %v1254
    %1373 = vmatpush1.msra.mxu0 %v1253
    %1374 = vmatprep.subr.mxu0 %v1258
    %1375 = vmatpush1.msra.mxu0 %v1257
    %1376 = vmatprep.subr.mxu0 %v1262
    %1377 = vmatpush1.msra.mxu0 %v1261
    %1378 = vmatprep.subr.mxu0 %v1266
    %1379 = vmatpush1.msra.mxu0 %v1265
    %1380 = vmatprep.subr.mxu0 %v1270
    %1381 = vmatpush1.msra.mxu0 %v1269
    %1382 = vmatprep.subr.mxu0 %v1274
    %1383 = vmatpush1.msra.mxu0 %v1273
    %1384 = vmatprep.subr.mxu0 %v1278
    %1385 = vmatpush1.msra.mxu0 %v1277
    %1386 = vmatprep.subr.mxu0 %v1282
    %1387 = vmatpush1.msra.mxu0 %v1281
    %1388 = vmatprep.subr.mxu0 %v1286
    %1389 = vmatpush1.msra.mxu0 %v1285
    %1390 = vmatprep.subr.mxu0 0.0
    %1391 = vmatpush1.msra.mxu0 0.0
    %1392 = vmatprep.subr.mxu0 0.0
    %1393 = vmatpush1.msra.mxu0 0.0
    %1394 = vmatprep.subr.mxu0 0.0
    %1395 = vmatpush1.msra.mxu0 0.0
    %1396 = vmatprep.subr.mxu0 0.0
    %1397 = vmatpush1.msra.mxu0 0.0
    %1398 = vmatprep.subr.mxu0 0.0
    %1399 = vmatpush1.msra.mxu0 0.0
    %1400 = vmatprep.subr.mxu0 0.0
    %1401 = vmatpush1.msra.mxu0 0.0
    %1402 = vmatprep.subr.mxu0 0.0
    %1403 = vmatpush1.msra.mxu0 0.0
    %1404 = vmatprep.subr.mxu0 0.0
    %1405 = vmatpush1.msra.mxu0 0.0
    %1406 = vmatprep.subr.mxu0 0.0
    %1407 = vmatpush1.msra.mxu0 0.0
    %1408 = vmatprep.subr.mxu0 0.0
    %1409 = vmatpush1.msra.mxu0 0.0
    %1410 = vmatprep.subr.mxu0 0.0
    %1411 = vmatpush1.msra.mxu0 0.0
    %1412 = vmatprep.subr.mxu0 0.0
    %1413 = vmatpush1.msra.mxu0 0.0
    %1414 = vmatprep.subr.mxu0 0.0
    %1415 = vmatpush1.msra.mxu0 0.0
    %1416 = vmatprep.subr.mxu0 0.0
    %1417 = vmatpush1.msra.mxu0 0.0
    %1418 = vmatprep.subr.mxu0 0.0
    %1419 = vmatpush1.msra.mxu0 0.0
    %1420 = vmatprep.subr.mxu0 0.0
    %1421 = vmatpush1.msra.mxu0 0.0
    %1422 = vmatprep.mubr.f32.mxu0 0.0
    %1423 = vmatmul.mubr.f32.gmra.mrb[0].mxu0 %v1222
    %v1424 = vpop.f32.mrb[0].mxu0
    %v1425 = vadd.f32 0.0, %v1424
    %v1426 = vpop.f32.mrb[0].mxu0
    %v1427 = vadd.f32 0.0, %v1426
    %1428 = vdwg.mxu0
    %v1429 = vadd.f32 %v1218, %v1354
    %v1430 = vadd.f32 %v1219, %v1356
    %v1431 = vadd.f32 %v1220, %v1425
    %v1432 = vadd.f32 %v1221, %v1427
    %v1433 = vxor.u32 %v1429, 2147483648
    %v1434 = vmul.f32 %v1433, 1.442695
    %v1435 = vpow.pop %v1434
    %v1436 = vadd.f32 %v1435, 1.0
    %v1437 = vrcp.pop %v1436
    %v1438 = vmul.f32 1.0, %v1437
    %v1439 = vxor.u32 %v1430, 2147483648
    %v1440 = vmul.f32 %v1439, 1.442695
    %v1441 = vpow.pop %v1440
    %v1442 = vadd.f32 %v1441, 1.0
    %v1443 = vrcp.pop %v1442
    %v1444 = vmul.f32 1.0, %v1443
    %v1445 = vtanh.pop %v1431
    %v1446 = vxor.u32 %v1432, 2147483648
    %v1447 = vmul.f32 %v1446, 1.442695
    %v1448 = vpow.pop %v1447
    %v1449 = vadd.f32 %v1448, 1.0
    %v1450 = vrcp.pop %v1449
    %v1451 = vmul.f32 1.0, %v1450
    %v1452 = vld [vmem:[#allocation4] sm:$0xff]
    %v1453 = vmul.f32 %v1444, %v1452
    %v1454 = vmul.f32 %v1438, %v1445
    %v1455 = vadd.f32 %v1453, %v1454
    %v1456 = vtanh.pop %v1455
    %v1457 = vmul.f32 %v1451, %v1456
    %1458 = vst [vmem:[#allocation4] sm:$0xff] %v1455
    %1459 = vst [vmem:[#allocation3] sm:$0xff] %v1457
    %s1460 = smul.u32 4, 4
    %s1461 = smul.addr %s1460, 8
    %s1462 = scalar_lea.vmem [#allocation2], %s1461
    %v1463 = vld [vmem:[%s1462] sm:$0xff]
    %v1464 = vld [vmem:[%s1462 + $0x8] sm:$0xff]
    %v1465 = vld [vmem:[%s1462 + $0x10] sm:$0xff]
    %v1466 = vld [vmem:[%s1462 + $0x18] sm:$0xff]
    %v1467 = vld [vmem:[#allocation3] sm:$0xff]
    %v1468 = vld [vmem:[#allocation10] sm:$0xff]
    %v1469 = vld [vmem:[#allocation10 + $0x8] sm:$0xff]
    %v1470 = vld [vmem:[#allocation10 + $0x10] sm:$0xff]
    %v1471 = vld [vmem:[#allocation10 + $0x18] sm:$0xff]
    %v1472 = vld [vmem:[#allocation10 + $0x20] sm:$0xff]
    %v1473 = vld [vmem:[#allocation10 + $0x28] sm:$0xff]
    %v1474 = vld [vmem:[#allocation10 + $0x30] sm:$0xff]
    %v1475 = vld [vmem:[#allocation10 + $0x38] sm:$0xff]
    %v1476 = vld [vmem:[#allocation10 + $0x40] sm:$0xff]
    %v1477 = vld [vmem:[#allocation10 + $0x48] sm:$0xff]
    %v1478 = vld [vmem:[#allocation10 + $0x50] sm:$0xff]
    %v1479 = vld [vmem:[#allocation10 + $0x58] sm:$0xff]
    %v1480 = vld [vmem:[#allocation10 + $0x60] sm:$0xff]
    %v1481 = vld [vmem:[#allocation10 + $0x68] sm:$0xff]
    %v1482 = vld [vmem:[#allocation10 + $0x70] sm:$0xff]
    %v1483 = vld [vmem:[#allocation10 + $0x78] sm:$0xff]
    %v1484 = vld [vmem:[#allocation10 + $0x80] sm:$0xff]
    %v1485 = vld [vmem:[#allocation10 + $0x88] sm:$0xff]
    %v1486 = vld [vmem:[#allocation10 + $0x90] sm:$0xff]
    %v1487 = vld [vmem:[#allocation10 + $0x98] sm:$0xff]
    %v1488 = vld [vmem:[#allocation10 + $0xa0] sm:$0xff]
    %v1489 = vld [vmem:[#allocation10 + $0xa8] sm:$0xff]
    %v1490 = vld [vmem:[#allocation10 + $0xb0] sm:$0xff]
    %v1491 = vld [vmem:[#allocation10 + $0xb8] sm:$0xff]
    %v1492 = vld [vmem:[#allocation10 + $0xc0] sm:$0xff]
    %v1493 = vld [vmem:[#allocation10 + $0xc8] sm:$0xff]
    %v1494 = vld [vmem:[#allocation10 + $0xd0] sm:$0xff]
    %v1495 = vld [vmem:[#allocation10 + $0xd8] sm:$0xff]
    %v1496 = vld [vmem:[#allocation10 + $0xe0] sm:$0xff]
    %v1497 = vld [vmem:[#allocation10 + $0xe8] sm:$0xff]
    %v1498 = vld [vmem:[#allocation10 + $0xf0] sm:$0xff]
    %v1499 = vld [vmem:[#allocation10 + $0xf8] sm:$0xff]
    %v1500 = vld [vmem:[#allocation10 + $0x100] sm:$0xff]
    %v1501 = vld [vmem:[#allocation10 + $0x108] sm:$0xff]
    %v1502 = vld [vmem:[#allocation10 + $0x110] sm:$0xff]
    %v1503 = vld [vmem:[#allocation10 + $0x118] sm:$0xff]
    %v1504 = vld [vmem:[#allocation10 + $0x120] sm:$0xff]
    %v1505 = vld [vmem:[#allocation10 + $0x128] sm:$0xff]
    %v1506 = vld [vmem:[#allocation10 + $0x130] sm:$0xff]
    %v1507 = vld [vmem:[#allocation10 + $0x138] sm:$0xff]
    %v1508 = vld [vmem:[#allocation10 + $0x140] sm:$0xff]
    %v1509 = vld [vmem:[#allocation10 + $0x148] sm:$0xff]
    %v1510 = vld [vmem:[#allocation10 + $0x150] sm:$0xff]
    %v1511 = vld [vmem:[#allocation10 + $0x158] sm:$0xff]
    %v1512 = vld [vmem:[#allocation10 + $0x160] sm:$0xff]
    %v1513 = vld [vmem:[#allocation10 + $0x168] sm:$0xff]
    %v1514 = vld [vmem:[#allocation10 + $0x170] sm:$0xff]
    %v1515 = vld [vmem:[#allocation10 + $0x178] sm:$0xff]
    %v1516 = vld [vmem:[#allocation10 + $0x180] sm:$0xff]
    %v1517 = vld [vmem:[#allocation10 + $0x188] sm:$0xff]
    %v1518 = vld [vmem:[#allocation10 + $0x190] sm:$0xff]
    %v1519 = vld [vmem:[#allocation10 + $0x198] sm:$0xff]
    %v1520 = vld [vmem:[#allocation10 + $0x1a0] sm:$0xff]
    %v1521 = vld [vmem:[#allocation10 + $0x1a8] sm:$0xff]
    %v1522 = vld [vmem:[#allocation10 + $0x1b0] sm:$0xff]
    %v1523 = vld [vmem:[#allocation10 + $0x1b8] sm:$0xff]
    %v1524 = vld [vmem:[#allocation10 + $0x1c0] sm:$0xff]
    %v1525 = vld [vmem:[#allocation10 + $0x1c8] sm:$0xff]
    %v1526 = vld [vmem:[#allocation10 + $0x1d0] sm:$0xff]
    %v1527 = vld [vmem:[#allocation10 + $0x1d8] sm:$0xff]
    %v1528 = vld [vmem:[#allocation10 + $0x1e0] sm:$0xff]
    %v1529 = vld [vmem:[#allocation10 + $0x1e8] sm:$0xff]
    %v1530 = vld [vmem:[#allocation10 + $0x1f0] sm:$0xff]
    %v1531 = vld [vmem:[#allocation10 + $0x1f8] sm:$0xff]
    %1532 = vmatprep.subr.mxu0 %v1469
    %1533 = vmatpush1.msra.mxu0 %v1468
    %1534 = vmatprep.subr.mxu0 %v1473
    %1535 = vmatpush1.msra.mxu0 %v1472
    %1536 = vmatprep.subr.mxu0 %v1477
    %1537 = vmatpush1.msra.mxu0 %v1476
    %1538 = vmatprep.subr.mxu0 %v1481
    %1539 = vmatpush1.msra.mxu0 %v1480
    %1540 = vmatprep.subr.mxu0 %v1485
    %1541 = vmatpush1.msra.mxu0 %v1484
    %1542 = vmatprep.subr.mxu0 %v1489
    %1543 = vmatpush1.msra.mxu0 %v1488
    %1544 = vmatprep.subr.mxu0 %v1493
    %1545 = vmatpush1.msra.mxu0 %v1492
    %1546 = vmatprep.subr.mxu0 %v1497
    %1547 = vmatpush1.msra.mxu0 %v1496
    %1548 = vmatprep.subr.mxu0 %v1501
    %1549 = vmatpush1.msra.mxu0 %v1500
    %1550 = vmatprep.subr.mxu0 %v1505
    %1551 = vmatpush1.msra.mxu0 %v1504
    %1552 = vmatprep.subr.mxu0 %v1509
    %1553 = vmatpush1.msra.mxu0 %v1508
    %1554 = vmatprep.subr.mxu0 %v1513
    %1555 = vmatpush1.msra.mxu0 %v1512
    %1556 = vmatprep.subr.mxu0 %v1517
    %1557 = vmatpush1.msra.mxu0 %v1516
    %1558 = vmatprep.subr.mxu0 %v1521
    %1559 = vmatpush1.msra.mxu0 %v1520
    %1560 = vmatprep.subr.mxu0 %v1525
    %1561 = vmatpush1.msra.mxu0 %v1524
    %1562 = vmatprep.subr.mxu0 %v1529
    %1563 = vmatpush1.msra.mxu0 %v1528
    %1564 = vmatprep.subr.mxu0 0.0
    %1565 = vmatpush1.msra.mxu0 0.0
    %1566 = vmatprep.subr.mxu0 0.0
    %1567 = vmatpush1.msra.mxu0 0.0
    %1568 = vmatprep.subr.mxu0 0.0
    %1569 = vmatpush1.msra.mxu0 0.0
    %1570 = vmatprep.subr.mxu0 0.0
    %1571 = vmatpush1.msra.mxu0 0.0
    %1572 = vmatprep.subr.mxu0 0.0
    %1573 = vmatpush1.msra.mxu0 0.0
    %1574 = vmatprep.subr.mxu0 0.0
    %1575 = vmatpush1.msra.mxu0 0.0
    %1576 = vmatprep.subr.mxu0 0.0
    %1577 = vmatpush1.msra.mxu0 0.0
    %1578 = vmatprep.subr.mxu0 0.0
    %1579 = vmatpush1.msra.mxu0 0.0
    %1580 = vmatprep.subr.mxu0 0.0
    %1581 = vmatpush1.msra.mxu0 0.0
    %1582 = vmatprep.subr.mxu0 0.0
    %1583 = vmatpush1.msra.mxu0 0.0
    %1584 = vmatprep.subr.mxu0 0.0
    %1585 = vmatpush1.msra.mxu0 0.0
    %1586 = vmatprep.subr.mxu0 0.0
    %1587 = vmatpush1.msra.mxu0 0.0
    %1588 = vmatprep.subr.mxu0 0.0
    %1589 = vmatpush1.msra.mxu0 0.0
    %1590 = vmatprep.subr.mxu0 0.0
    %1591 = vmatpush1.msra.mxu0 0.0
    %1592 = vmatprep.subr.mxu0 0.0
    %1593 = vmatpush1.msra.mxu0 0.0
    %1594 = vmatprep.subr.mxu0 0.0
    %1595 = vmatpush1.msra.mxu0 0.0
    %1596 = vmatprep.mubr.f32.mxu0 0.0
    %1597 = vmatmul.mubr.f32.gmra.mrb[0].mxu0 %v1467
    %v1598 = vpop.f32.mrb[0].mxu0
    %v1599 = vadd.f32 0.0, %v1598
    %v1600 = vpop.f32.mrb[0].mxu0
    %v1601 = vadd.f32 0.0, %v1600
    %1602 = vdwg.mxu0
    %1603 = vmatprep.subr.mxu0 %v1471
    %1604 = vmatpush1.msra.mxu0 %v1470
    %1605 = vmatprep.subr.mxu0 %v1475
    %1606 = vmatpush1.msra.mxu0 %v1474
    %1607 = vmatprep.subr.mxu0 %v1479
    %1608 = vmatpush1.msra.mxu0 %v1478
    %1609 = vmatprep.subr.mxu0 %v1483
    %1610 = vmatpush1.msra.mxu0 %v1482
    %1611 = vmatprep.subr.mxu0 %v1487
    %1612 = vmatpush1.msra.mxu0 %v1486
    %1613 = vmatprep.subr.mxu0 %v1491
    %1614 = vmatpush1.msra.mxu0 %v1490
    %1615 = vmatprep.subr.mxu0 %v1495
    %1616 = vmatpush1.msra.mxu0 %v1494
    %1617 = vmatprep.subr.mxu0 %v1499
    %1618 = vmatpush1.msra.mxu0 %v1498
    %1619 = vmatprep.subr.mxu0 %v1503
    %1620 = vmatpush1.msra.mxu0 %v1502
    %1621 = vmatprep.subr.mxu0 %v1507
    %1622 = vmatpush1.msra.mxu0 %v1506
    %1623 = vmatprep.subr.mxu0 %v1511
    %1624 = vmatpush1.msra.mxu0 %v1510
    %1625 = vmatprep.subr.mxu0 %v1515
    %1626 = vmatpush1.msra.mxu0 %v1514
    %1627 = vmatprep.subr.mxu0 %v1519
    %1628 = vmatpush1.msra.mxu0 %v1518
    %1629 = vmatprep.subr.mxu0 %v1523
    %1630 = vmatpush1.msra.mxu0 %v1522
    %1631 = vmatprep.subr.mxu0 %v1527
    %1632 = vmatpush1.msra.mxu0 %v1526
    %1633 = vmatprep.subr.mxu0 %v1531
    %1634 = vmatpush1.msra.mxu0 %v1530
    %1635 = vmatprep.subr.mxu0 0.0
    %1636 = vmatpush1.msra.mxu0 0.0
    %1637 = vmatprep.subr.mxu0 0.0
    %1638 = vmatpush1.msra.mxu0 0.0
    %1639 = vmatprep.subr.mxu0 0.0
    %1640 = vmatpush1.msra.mxu0 0.0
    %1641 = vmatprep.subr.mxu0 0.0
    %1642 = vmatpush1.msra.mxu0 0.0
    %1643 = vmatprep.subr.mxu0 0.0
    %1644 = vmatpush1.msra.mxu0 0.0
    %1645 = vmatprep.subr.mxu0 0.0
    %1646 = vmatpush1.msra.mxu0 0.0
    %1647 = vmatprep.subr.mxu0 0.0
    %1648 = vmatpush1.msra.mxu0 0.0
    %1649 = vmatprep.subr.mxu0 0.0
    %1650 = vmatpush1.msra.mxu0 0.0
    %1651 = vmatprep.subr.mxu0 0.0
    %1652 = vmatpush1.msra.mxu0 0.0
    %1653 = vmatprep.subr.mxu0 0.0
    %1654 = vmatpush1.msra.mxu0 0.0
    %1655 = vmatprep.subr.mxu0 0.0
    %1656 = vmatpush1.msra.mxu0 0.0
    %1657 = vmatprep.subr.mxu0 0.0
    %1658 = vmatpush1.msra.mxu0 0.0
    %1659 = vmatprep.subr.mxu0 0.0
    %1660 = vmatpush1.msra.mxu0 0.0
    %1661 = vmatprep.subr.mxu0 0.0
    %1662 = vmatpush1.msra.mxu0 0.0
    %1663 = vmatprep.subr.mxu0 0.0
    %1664 = vmatpush1.msra.mxu0 0.0
    %1665 = vmatprep.subr.mxu0 0.0
    %1666 = vmatpush1.msra.mxu0 0.0
    %1667 = vmatprep.mubr.f32.mxu0 0.0
    %1668 = vmatmul.mubr.f32.gmra.mrb[0].mxu0 %v1467
    %v1669 = vpop.f32.mrb[0].mxu0
    %v1670 = vadd.f32 0.0, %v1669
    %v1671 = vpop.f32.mrb[0].mxu0
    %v1672 = vadd.f32 0.0, %v1671
    %1673 = vdwg.mxu0
    %v1674 = vadd.f32 %v1463, %v1599
    %v1675 = vadd.f32 %v1464, %v1601
    %v1676 = vadd.f32 %v1465, %v1670
    %v1677 = vadd.f32 %v1466, %v1672
    %v1678 = vxor.u32 %v1674, 2147483648
    %v1679 = vmul.f32 %v1678, 1.442695
    %v1680 = vpow.pop %v1679
    %v1681 = vadd.f32 %v1680, 1.0
    %v1682 = vrcp.pop %v1681
    %v1683 = vmul.f32 1.0, %v1682
    %v1684 = vxor.u32 %v1675, 2147483648
    %v1685 = vmul.f32 %v1684, 1.442695
    %v1686 = vpow.pop %v1685
    %v1687 = vadd.f32 %v1686, 1.0
    %v1688 = vrcp.pop %v1687
    %v1689 = vmul.f32 1.0, %v1688
    %v1690 = vtanh.pop %v1676
    %v1691 = vxor.u32 %v1677, 2147483648
    %v1692 = vmul.f32 %v1691, 1.442695
    %v1693 = vpow.pop %v1692
    %v1694 = vadd.f32 %v1693, 1.0
    %v1695 = vrcp.pop %v1694
    %v1696 = vmul.f32 1.0, %v1695
    %v1697 = vld [vmem:[#allocation4] sm:$0xff]
    %v1698 = vmul.f32 %v1689, %v1697
    %v1699 = vmul.f32 %v1683, %v1690
    %v1700 = vadd.f32 %v1698, %v1699
    %v1701 = vtanh.pop %v1700
    %v1702 = vmul.f32 %v1696, %v1701
    %1703 = vst [vmem:[#allocation4] sm:$0xff] %v1700
    %1704 = vst [vmem:[#allocation3] sm:$0xff] %v1702
    %s1705 = smul.u32 5, 4
    %s1706 = smul.addr %s1705, 8
    %s1707 = scalar_lea.vmem [#allocation2], %s1706
    %v1708 = vld [vmem:[%s1707] sm:$0xff]
    %v1709 = vld [vmem:[%s1707 + $0x8] sm:$0xff]
    %v1710 = vld [vmem:[%s1707 + $0x10] sm:$0xff]
    %v1711 = vld [vmem:[%s1707 + $0x18] sm:$0xff]
    %v1712 = vld [vmem:[#allocation3] sm:$0xff]
    %v1713 = vld [vmem:[#allocation10] sm:$0xff]
    %v1714 = vld [vmem:[#allocation10 + $0x8] sm:$0xff]
    %v1715 = vld [vmem:[#allocation10 + $0x10] sm:$0xff]
    %v1716 = vld [vmem:[#allocation10 + $0x18] sm:$0xff]
    %v1717 = vld [vmem:[#allocation10 + $0x20] sm:$0xff]
    %v1718 = vld [vmem:[#allocation10 + $0x28] sm:$0xff]
    %v1719 = vld [vmem:[#allocation10 + $0x30] sm:$0xff]
    %v1720 = vld [vmem:[#allocation10 + $0x38] sm:$0xff]
    %v1721 = vld [vmem:[#allocation10 + $0x40] sm:$0xff]
    %v1722 = vld [vmem:[#allocation10 + $0x48] sm:$0xff]
    %v1723 = vld [vmem:[#allocation10 + $0x50] sm:$0xff]
    %v1724 = vld [vmem:[#allocation10 + $0x58] sm:$0xff]
    %v1725 = vld [vmem:[#allocation10 + $0x60] sm:$0xff]
    %v1726 = vld [vmem:[#allocation10 + $0x68] sm:$0xff]
    %v1727 = vld [vmem:[#allocation10 + $0x70] sm:$0xff]
    %v1728 = vld [vmem:[#allocation10 + $0x78] sm:$0xff]
    %v1729 = vld [vmem:[#allocation10 + $0x80] sm:$0xff]
    %v1730 = vld [vmem:[#allocation10 + $0x88] sm:$0xff]
    %v1731 = vld [vmem:[#allocation10 + $0x90] sm:$0xff]
    %v1732 = vld [vmem:[#allocation10 + $0x98] sm:$0xff]
    %v1733 = vld [vmem:[#allocation10 + $0xa0] sm:$0xff]
    %v1734 = vld [vmem:[#allocation10 + $0xa8] sm:$0xff]
    %v1735 = vld [vmem:[#allocation10 + $0xb0] sm:$0xff]
    %v1736 = vld [vmem:[#allocation10 + $0xb8] sm:$0xff]
    %v1737 = vld [vmem:[#allocation10 + $0xc0] sm:$0xff]
    %v1738 = vld [vmem:[#allocation10 + $0xc8] sm:$0xff]
    %v1739 = vld [vmem:[#allocation10 + $0xd0] sm:$0xff]
    %v1740 = vld [vmem:[#allocation10 + $0xd8] sm:$0xff]
    %v1741 = vld [vmem:[#allocation10 + $0xe0] sm:$0xff]
    %v1742 = vld [vmem:[#allocation10 + $0xe8] sm:$0xff]
    %v1743 = vld [vmem:[#allocation10 + $0xf0] sm:$0xff]
    %v1744 = vld [vmem:[#allocation10 + $0xf8] sm:$0xff]
    %v1745 = vld [vmem:[#allocation10 + $0x100] sm:$0xff]
    %v1746 = vld [vmem:[#allocation10 + $0x108] sm:$0xff]
    %v1747 = vld [vmem:[#allocation10 + $0x110] sm:$0xff]
    %v1748 = vld [vmem:[#allocation10 + $0x118] sm:$0xff]
    %v1749 = vld [vmem:[#allocation10 + $0x120] sm:$0xff]
    %v1750 = vld [vmem:[#allocation10 + $0x128] sm:$0xff]
    %v1751 = vld [vmem:[#allocation10 + $0x130] sm:$0xff]
    %v1752 = vld [vmem:[#allocation10 + $0x138] sm:$0xff]
    %v1753 = vld [vmem:[#allocation10 + $0x140] sm:$0xff]
    %v1754 = vld [vmem:[#allocation10 + $0x148] sm:$0xff]
    %v1755 = vld [vmem:[#allocation10 + $0x150] sm:$0xff]
    %v1756 = vld [vmem:[#allocation10 + $0x158] sm:$0xff]
    %v1757 = vld [vmem:[#allocation10 + $0x160] sm:$0xff]
    %v1758 = vld [vmem:[#allocation10 + $0x168] sm:$0xff]
    %v1759 = vld [vmem:[#allocation10 + $0x170] sm:$0xff]
    %v1760 = vld [vmem:[#allocation10 + $0x178] sm:$0xff]
    %v1761 = vld [vmem:[#allocation10 + $0x180] sm:$0xff]
    %v1762 = vld [vmem:[#allocation10 + $0x188] sm:$0xff]
    %v1763 = vld [vmem:[#allocation10 + $0x190] sm:$0xff]
    %v1764 = vld [vmem:[#allocation10 + $0x198] sm:$0xff]
    %v1765 = vld [vmem:[#allocation10 + $0x1a0] sm:$0xff]
    %v1766 = vld [vmem:[#allocation10 + $0x1a8] sm:$0xff]
    %v1767 = vld [vmem:[#allocation10 + $0x1b0] sm:$0xff]
    %v1768 = vld [vmem:[#allocation10 + $0x1b8] sm:$0xff]
    %v1769 = vld [vmem:[#allocation10 + $0x1c0] sm:$0xff]
    %v1770 = vld [vmem:[#allocation10 + $0x1c8] sm:$0xff]
    %v1771 = vld [vmem:[#allocation10 + $0x1d0] sm:$0xff]
    %v1772 = vld [vmem:[#allocation10 + $0x1d8] sm:$0xff]
    %v1773 = vld [vmem:[#allocation10 + $0x1e0] sm:$0xff]
    %v1774 = vld [vmem:[#allocation10 + $0x1e8] sm:$0xff]
    %v1775 = vld [vmem:[#allocation10 + $0x1f0] sm:$0xff]
    %v1776 = vld [vmem:[#allocation10 + $0x1f8] sm:$0xff]
    %1777 = vmatprep.subr.mxu0 %v1714
    %1778 = vmatpush1.msra.mxu0 %v1713
    %1779 = vmatprep.subr.mxu0 %v1718
    %1780 = vmatpush1.msra.mxu0 %v1717
    %1781 = vmatprep.subr.mxu0 %v1722
    %1782 = vmatpush1.msra.mxu0 %v1721
    %1783 = vmatprep.subr.mxu0 %v1726
    %1784 = vmatpush1.msra.mxu0 %v1725
    %1785 = vmatprep.subr.mxu0 %v1730
    %1786 = vmatpush1.msra.mxu0 %v1729
    %1787 = vmatprep.subr.mxu0 %v1734
    %1788 = vmatpush1.msra.mxu0 %v1733
    %1789 = vmatprep.subr.mxu0 %v1738
    %1790 = vmatpush1.msra.mxu0 %v1737
    %1791 = vmatprep.subr.mxu0 %v1742
    %1792 = vmatpush1.msra.mxu0 %v1741
    %1793 = vmatprep.subr.mxu0 %v1746
    %1794 = vmatpush1.msra.mxu0 %v1745
    %1795 = vmatprep.subr.mxu0 %v1750
    %1796 = vmatpush1.msra.mxu0 %v1749
    %1797 = vmatprep.subr.mxu0 %v1754
    %1798 = vmatpush1.msra.mxu0 %v1753
    %1799 = vmatprep.subr.mxu0 %v1758
    %1800 = vmatpush1.msra.mxu0 %v1757
    %1801 = vmatprep.subr.mxu0 %v1762
    %1802 = vmatpush1.msra.mxu0 %v1761
    %1803 = vmatprep.subr.mxu0 %v1766
    %1804 = vmatpush1.msra.mxu0 %v1765
    %1805 = vmatprep.subr.mxu0 %v1770
    %1806 = vmatpush1.msra.mxu0 %v1769
    %1807 = vmatprep.subr.mxu0 %v1774
    %1808 = vmatpush1.msra.mxu0 %v1773
    %1809 = vmatprep.subr.mxu0 0.0
    %1810 = vmatpush1.msra.mxu0 0.0
    %1811 = vmatprep.subr.mxu0 0.0
    %1812 = vmatpush1.msra.mxu0 0.0
    %1813 = vmatprep.subr.mxu0 0.0
    %1814 = vmatpush1.msra.mxu0 0.0
    %1815 = vmatprep.subr.mxu0 0.0
    %1816 = vmatpush1.msra.mxu0 0.0
    %1817 = vmatprep.subr.mxu0 0.0
    %1818 = vmatpush1.msra.mxu0 0.0
    %1819 = vmatprep.subr.mxu0 0.0
    %1820 = vmatpush1.msra.mxu0 0.0
    %1821 = vmatprep.subr.mxu0 0.0
    %1822 = vmatpush1.msra.mxu0 0.0
    %1823 = vmatprep.subr.mxu0 0.0
    %1824 = vmatpush1.msra.mxu0 0.0
    %1825 = vmatprep.subr.mxu0 0.0
    %1826 = vmatpush1.msra.mxu0 0.0
    %1827 = vmatprep.subr.mxu0 0.0
    %1828 = vmatpush1.msra.mxu0 0.0
    %1829 = vmatprep.subr.mxu0 0.0
    %1830 = vmatpush1.msra.mxu0 0.0
    %1831 = vmatprep.subr.mxu0 0.0
    %1832 = vmatpush1.msra.mxu0 0.0
    %1833 = vmatprep.subr.mxu0 0.0
    %1834 = vmatpush1.msra.mxu0 0.0
    %1835 = vmatprep.subr.mxu0 0.0
    %1836 = vmatpush1.msra.mxu0 0.0
    %1837 = vmatprep.subr.mxu0 0.0
    %1838 = vmatpush1.msra.mxu0 0.0
    %1839 = vmatprep.subr.mxu0 0.0
    %1840 = vmatpush1.msra.mxu0 0.0
    %1841 = vmatprep.mubr.f32.mxu0 0.0
    %1842 = vmatmul.mubr.f32.gmra.mrb[0].mxu0 %v1712
    %v1843 = vpop.f32.mrb[0].mxu0
    %v1844 = vadd.f32 0.0, %v1843
    %v1845 = vpop.f32.mrb[0].mxu0
    %v1846 = vadd.f32 0.0, %v1845
    %1847 = vdwg.mxu0
    %1848 = vmatprep.subr.mxu0 %v1716
    %1849 = vmatpush1.msra.mxu0 %v1715
    %1850 = vmatprep.subr.mxu0 %v1720
    %1851 = vmatpush1.msra.mxu0 %v1719
    %1852 = vmatprep.subr.mxu0 %v1724
    %1853 = vmatpush1.msra.mxu0 %v1723
    %1854 = vmatprep.subr.mxu0 %v1728
    %1855 = vmatpush1.msra.mxu0 %v1727
    %1856 = vmatprep.subr.mxu0 %v1732
    %1857 = vmatpush1.msra.mxu0 %v1731
    %1858 = vmatprep.subr.mxu0 %v1736
    %1859 = vmatpush1.msra.mxu0 %v1735
    %1860 = vmatprep.subr.mxu0 %v1740
    %1861 = vmatpush1.msra.mxu0 %v1739
    %1862 = vmatprep.subr.mxu0 %v1744
    %1863 = vmatpush1.msra.mxu0 %v1743
    %1864 = vmatprep.subr.mxu0 %v1748
    %1865 = vmatpush1.msra.mxu0 %v1747
    %1866 = vmatprep.subr.mxu0 %v1752
    %1867 = vmatpush1.msra.mxu0 %v1751
    %1868 = vmatprep.subr.mxu0 %v1756
    %1869 = vmatpush1.msra.mxu0 %v1755
    %1870 = vmatprep.subr.mxu0 %v1760
    %1871 = vmatpush1.msra.mxu0 %v1759
    %1872 = vmatprep.subr.mxu0 %v1764
    %1873 = vmatpush1.msra.mxu0 %v1763
    %1874 = vmatprep.subr.mxu0 %v1768
    %1875 = vmatpush1.msra.mxu0 %v1767
    %1876 = vmatprep.subr.mxu0 %v1772
    %1877 = vmatpush1.msra.mxu0 %v1771
    %1878 = vmatprep.subr.mxu0 %v1776
    %1879 = vmatpush1.msra.mxu0 %v1775
    %1880 = vmatprep.subr.mxu0 0.0
    %1881 = vmatpush1.msra.mxu0 0.0
    %1882 = vmatprep.subr.mxu0 0.0
    %1883 = vmatpush1.msra.mxu0 0.0
    %1884 = vmatprep.subr.mxu0 0.0
    %1885 = vmatpush1.msra.mxu0 0.0
    %1886 = vmatprep.subr.mxu0 0.0
    %1887 = vmatpush1.msra.mxu0 0.0
    %1888 = vmatprep.subr.mxu0 0.0
    %1889 = vmatpush1.msra.mxu0 0.0
    %1890 = vmatprep.subr.mxu0 0.0
    %1891 = vmatpush1.msra.mxu0 0.0
    %1892 = vmatprep.subr.mxu0 0.0
    %1893 = vmatpush1.msra.mxu0 0.0
    %1894 = vmatprep.subr.mxu0 0.0
    %1895 = vmatpush1.msra.mxu0 0.0
    %1896 = vmatprep.subr.mxu0 0.0
    %1897 = vmatpush1.msra.mxu0 0.0
    %1898 = vmatprep.subr.mxu0 0.0
    %1899 = vmatpush1.msra.mxu0 0.0
    %1900 = vmatprep.subr.mxu0 0.0
    %1901 = vmatpush1.msra.mxu0 0.0
    %1902 = vmatprep.subr.mxu0 0.0
    %1903 = vmatpush1.msra.mxu0 0.0
    %1904 = vmatprep.subr.mxu0 0.0
    %1905 = vmatpush1.msra.mxu0 0.0
    %1906 = vmatprep.subr.mxu0 0.0
    %1907 = vmatpush1.msra.mxu0 0.0
    %1908 = vmatprep.subr.mxu0 0.0
    %1909 = vmatpush1.msra.mxu0 0.0
    %1910 = vmatprep.subr.mxu0 0.0
    %1911 = vmatpush1.msra.mxu0 0.0
    %1912 = vmatprep.mubr.f32.mxu0 0.0
    %1913 = vmatmul.mubr.f32.gmra.mrb[0].mxu0 %v1712
    %v1914 = vpop.f32.mrb[0].mxu0
    %v1915 = vadd.f32 0.0, %v1914
    %v1916 = vpop.f32.mrb[0].mxu0
    %v1917 = vadd.f32 0.0, %v1916
    %1918 = vdwg.mxu0
    %v1919 = vadd.f32 %v1708, %v1844
    %v1920 = vadd.f32 %v1709, %v1846
    %v1921 = vadd.f32 %v1710, %v1915
    %v1922 = vadd.f32 %v1711, %v1917
    %v1923 = vxor.u32 %v1919, 2147483648
    %v1924 = vmul.f32 %v1923, 1.442695
    %v1925 = vpow.pop %v1924
    %v1926 = vadd.f32 %v1925, 1.0
    %v1927 = vrcp.pop %v1926
    %v1928 = vmul.f32 1.0, %v1927
    %v1929 = vxor.u32 %v1920, 2147483648
    %v1930 = vmul.f32 %v1929, 1.442695
    %v1931 = vpow.pop %v1930
    %v1932 = vadd.f32 %v1931, 1.0
    %v1933 = vrcp.pop %v1932
    %v1934 = vmul.f32 1.0, %v1933
    %v1935 = vtanh.pop %v1921
    %v1936 = vxor.u32 %v1922, 2147483648
    %v1937 = vmul.f32 %v1936, 1.442695
    %v1938 = vpow.pop %v1937
    %v1939 = vadd.f32 %v1938, 1.0
    %v1940 = vrcp.pop %v1939
    %v1941 = vmul.f32 1.0, %v1940
    %v1942 = vld [vmem:[#allocation4] sm:$0xff]
    %v1943 = vmul.f32 %v1934, %v1942
    %v1944 = vmul.f32 %v1928, %v1935
    %v1945 = vadd.f32 %v1943, %v1944
    %v1946 = vtanh.pop %v1945
    %v1947 = vmul.f32 %v1941, %v1946
    %1948 = vst [vmem:[#allocation4] sm:$0xff] %v1945
    %1949 = vst [vmem:[#allocation3] sm:$0xff] %v1947
    %s1950 = smul.u32 6, 4
    %s1951 = smul.addr %s1950, 8
    %s1952 = scalar_lea.vmem [#allocation2], %s1951
    %v1953 = vld [vmem:[%s1952] sm:$0xff]
    %v1954 = vld [vmem:[%s1952 + $0x8] sm:$0xff]
    %v1955 = vld [vmem:[%s1952 + $0x10] sm:$0xff]
    %v1956 = vld [vmem:[%s1952 + $0x18] sm:$0xff]
    %v1957 = vld [vmem:[#allocation3] sm:$0xff]
    %v1958 = vld [vmem:[#allocation10] sm:$0xff]
    %v1959 = vld [vmem:[#allocation10 + $0x8] sm:$0xff]
    %v1960 = vld [vmem:[#allocation10 + $0x10] sm:$0xff]
    %v1961 = vld [vmem:[#allocation10 + $0x18] sm:$0xff]
    %v1962 = vld [vmem:[#allocation10 + $0x20] sm:$0xff]
    %v1963 = vld [vmem:[#allocation10 + $0x28] sm:$0xff]
    %v1964 = vld [vmem:[#allocation10 + $0x30] sm:$0xff]
    %v1965 = vld [vmem:[#allocation10 + $0x38] sm:$0xff]
    %v1966 = vld [vmem:[#allocation10 + $0x40] sm:$0xff]
    %v1967 = vld [vmem:[#allocation10 + $0x48] sm:$0xff]
    %v1968 = vld [vmem:[#allocation10 + $0x50] sm:$0xff]
    %v1969 = vld [vmem:[#allocation10 + $0x58] sm:$0xff]
    %v1970 = vld [vmem:[#allocation10 + $0x60] sm:$0xff]
    %v1971 = vld [vmem:[#allocation10 + $0x68] sm:$0xff]
    %v1972 = vld [vmem:[#allocation10 + $0x70] sm:$0xff]
    %v1973 = vld [vmem:[#allocation10 + $0x78] sm:$0xff]
    %v1974 = vld [vmem:[#allocation10 + $0x80] sm:$0xff]
    %v1975 = vld [vmem:[#allocation10 + $0x88] sm:$0xff]
    %v1976 = vld [vmem:[#allocation10 + $0x90] sm:$0xff]
    %v1977 = vld [vmem:[#allocation10 + $0x98] sm:$0xff]
    %v1978 = vld [vmem:[#allocation10 + $0xa0] sm:$0xff]
    %v1979 = vld [vmem:[#allocation10 + $0xa8] sm:$0xff]
    %v1980 = vld [vmem:[#allocation10 + $0xb0] sm:$0xff]
    %v1981 = vld [vmem:[#allocation10 + $0xb8] sm:$0xff]
    %v1982 = vld [vmem:[#allocation10 + $0xc0] sm:$0xff]
    %v1983 = vld [vmem:[#allocation10 + $0xc8] sm:$0xff]
    %v1984 = vld [vmem:[#allocation10 + $0xd0] sm:$0xff]
    %v1985 = vld [vmem:[#allocation10 + $0xd8] sm:$0xff]
    %v1986 = vld [vmem:[#allocation10 + $0xe0] sm:$0xff]
    %v1987 = vld [vmem:[#allocation10 + $0xe8] sm:$0xff]
    %v1988 = vld [vmem:[#allocation10 + $0xf0] sm:$0xff]
    %v1989 = vld [vmem:[#allocation10 + $0xf8] sm:$0xff]
    %v1990 = vld [vmem:[#allocation10 + $0x100] sm:$0xff]
    %v1991 = vld [vmem:[#allocation10 + $0x108] sm:$0xff]
    %v1992 = vld [vmem:[#allocation10 + $0x110] sm:$0xff]
    %v1993 = vld [vmem:[#allocation10 + $0x118] sm:$0xff]
    %v1994 = vld [vmem:[#allocation10 + $0x120] sm:$0xff]
    %v1995 = vld [vmem:[#allocation10 + $0x128] sm:$0xff]
    %v1996 = vld [vmem:[#allocation10 + $0x130] sm:$0xff]
    %v1997 = vld [vmem:[#allocation10 + $0x138] sm:$0xff]
    %v1998 = vld [vmem:[#allocation10 + $0x140] sm:$0xff]
    %v1999 = vld [vmem:[#allocation10 + $0x148] sm:$0xff]
    %v2000 = vld [vmem:[#allocation10 + $0x150] sm:$0xff]
    %v2001 = vld [vmem:[#allocation10 + $0x158] sm:$0xff]
    %v2002 = vld [vmem:[#allocation10 + $0x160] sm:$0xff]
    %v2003 = vld [vmem:[#allocation10 + $0x168] sm:$0xff]
    %v2004 = vld [vmem:[#allocation10 + $0x170] sm:$0xff]
    %v2005 = vld [vmem:[#allocation10 + $0x178] sm:$0xff]
    %v2006 = vld [vmem:[#allocation10 + $0x180] sm:$0xff]
    %v2007 = vld [vmem:[#allocation10 + $0x188] sm:$0xff]
    %v2008 = vld [vmem:[#allocation10 + $0x190] sm:$0xff]
    %v2009 = vld [vmem:[#allocation10 + $0x198] sm:$0xff]
    %v2010 = vld [vmem:[#allocation10 + $0x1a0] sm:$0xff]
    %v2011 = vld [vmem:[#allocation10 + $0x1a8] sm:$0xff]
    %v2012 = vld [vmem:[#allocation10 + $0x1b0] sm:$0xff]
    %v2013 = vld [vmem:[#allocation10 + $0x1b8] sm:$0xff]
    %v2014 = vld [vmem:[#allocation10 + $0x1c0] sm:$0xff]
    %v2015 = vld [vmem:[#allocation10 + $0x1c8] sm:$0xff]
    %v2016 = vld [vmem:[#allocation10 + $0x1d0] sm:$0xff]
    %v2017 = vld [vmem:[#allocation10 + $0x1d8] sm:$0xff]
    %v2018 = vld [vmem:[#allocation10 + $0x1e0] sm:$0xff]
    %v2019 = vld [vmem:[#allocation10 + $0x1e8] sm:$0xff]
    %v2020 = vld [vmem:[#allocation10 + $0x1f0] sm:$0xff]
    %v2021 = vld [vmem:[#allocation10 + $0x1f8] sm:$0xff]
    %2022 = vmatprep.subr.mxu0 %v1959
    %2023 = vmatpush1.msra.mxu0 %v1958
    %2024 = vmatprep.subr.mxu0 %v1963
    %2025 = vmatpush1.msra.mxu0 %v1962
    %2026 = vmatprep.subr.mxu0 %v1967
    %2027 = vmatpush1.msra.mxu0 %v1966
    %2028 = vmatprep.subr.mxu0 %v1971
    %2029 = vmatpush1.msra.mxu0 %v1970
    %2030 = vmatprep.subr.mxu0 %v1975
    %2031 = vmatpush1.msra.mxu0 %v1974
    %2032 = vmatprep.subr.mxu0 %v1979
    %2033 = vmatpush1.msra.mxu0 %v1978
    %2034 = vmatprep.subr.mxu0 %v1983
    %2035 = vmatpush1.msra.mxu0 %v1982
    %2036 = vmatprep.subr.mxu0 %v1987
    %2037 = vmatpush1.msra.mxu0 %v1986
    %2038 = vmatprep.subr.mxu0 %v1991
    %2039 = vmatpush1.msra.mxu0 %v1990
    %2040 = vmatprep.subr.mxu0 %v1995
    %2041 = vmatpush1.msra.mxu0 %v1994
    %2042 = vmatprep.subr.mxu0 %v1999
    %2043 = vmatpush1.msra.mxu0 %v1998
    %2044 = vmatprep.subr.mxu0 %v2003
    %2045 = vmatpush1.msra.mxu0 %v2002
    %2046 = vmatprep.subr.mxu0 %v2007
    %2047 = vmatpush1.msra.mxu0 %v2006
    %2048 = vmatprep.subr.mxu0 %v2011
    %2049 = vmatpush1.msra.mxu0 %v2010
    %2050 = vmatprep.subr.mxu0 %v2015
    %2051 = vmatpush1.msra.mxu0 %v2014
    %2052 = vmatprep.subr.mxu0 %v2019
    %2053 = vmatpush1.msra.mxu0 %v2018
    %2054 = vmatprep.subr.mxu0 0.0
    %2055 = vmatpush1.msra.mxu0 0.0
    %2056 = vmatprep.subr.mxu0 0.0
    %2057 = vmatpush1.msra.mxu0 0.0
    %2058 = vmatprep.subr.mxu0 0.0
    %2059 = vmatpush1.msra.mxu0 0.0
    %2060 = vmatprep.subr.mxu0 0.0
    %2061 = vmatpush1.msra.mxu0 0.0
    %2062 = vmatprep.subr.mxu0 0.0
    %2063 = vmatpush1.msra.mxu0 0.0
    %2064 = vmatprep.subr.mxu0 0.0
    %2065 = vmatpush1.msra.mxu0 0.0
    %2066 = vmatprep.subr.mxu0 0.0
    %2067 = vmatpush1.msra.mxu0 0.0
    %2068 = vmatprep.subr.mxu0 0.0
    %2069 = vmatpush1.msra.mxu0 0.0
    %2070 = vmatprep.subr.mxu0 0.0
    %2071 = vmatpush1.msra.mxu0 0.0
    %2072 = vmatprep.subr.mxu0 0.0
    %2073 = vmatpush1.msra.mxu0 0.0
    %2074 = vmatprep.subr.mxu0 0.0
    %2075 = vmatpush1.msra.mxu0 0.0
    %2076 = vmatprep.subr.mxu0 0.0
    %2077 = vmatpush1.msra.mxu0 0.0
    %2078 = vmatprep.subr.mxu0 0.0
    %2079 = vmatpush1.msra.mxu0 0.0
    %2080 = vmatprep.subr.mxu0 0.0
    %2081 = vmatpush1.msra.mxu0 0.0
    %2082 = vmatprep.subr.mxu0 0.0
    %2083 = vmatpush1.msra.mxu0 0.0
    %2084 = vmatprep.subr.mxu0 0.0
    %2085 = vmatpush1.msra.mxu0 0.0
    %2086 = vmatprep.mubr.f32.mxu0 0.0
    %2087 = vmatmul.mubr.f32.gmra.mrb[0].mxu0 %v1957
    %v2088 = vpop.f32.mrb[0].mxu0
    %v2089 = vadd.f32 0.0, %v2088
    %v2090 = vpop.f32.mrb[0].mxu0
    %v2091 = vadd.f32 0.0, %v2090
    %2092 = vdwg.mxu0
    %2093 = vmatprep.subr.mxu0 %v1961
    %2094 = vmatpush1.msra.mxu0 %v1960
    %2095 = vmatprep.subr.mxu0 %v1965
    %2096 = vmatpush1.msra.mxu0 %v1964
    %2097 = vmatprep.subr.mxu0 %v1969
    %2098 = vmatpush1.msra.mxu0 %v1968
    %2099 = vmatprep.subr.mxu0 %v1973
    %2100 = vmatpush1.msra.mxu0 %v1972
    %2101 = vmatprep.subr.mxu0 %v1977
    %2102 = vmatpush1.msra.mxu0 %v1976
    %2103 = vmatprep.subr.mxu0 %v1981
    %2104 = vmatpush1.msra.mxu0 %v1980
    %2105 = vmatprep.subr.mxu0 %v1985
    %2106 = vmatpush1.msra.mxu0 %v1984
    %2107 = vmatprep.subr.mxu0 %v1989
    %2108 = vmatpush1.msra.mxu0 %v1988
    %2109 = vmatprep.subr.mxu0 %v1993
    %2110 = vmatpush1.msra.mxu0 %v1992
    %2111 = vmatprep.subr.mxu0 %v1997
    %2112 = vmatpush1.msra.mxu0 %v1996
    %2113 = vmatprep.subr.mxu0 %v2001
    %2114 = vmatpush1.msra.mxu0 %v2000
    %2115 = vmatprep.subr.mxu0 %v2005
    %2116 = vmatpush1.msra.mxu0 %v2004
    %2117 = vmatprep.subr.mxu0 %v2009
    %2118 = vmatpush1.msra.mxu0 %v2008
    %2119 = vmatprep.subr.mxu0 %v2013
    %2120 = vmatpush1.msra.mxu0 %v2012
    %2121 = vmatprep.subr.mxu0 %v2017
    %2122 = vmatpush1.msra.mxu0 %v2016
    %2123 = vmatprep.subr.mxu0 %v2021
    %2124 = vmatpush1.msra.mxu0 %v2020
    %2125 = vmatprep.subr.mxu0 0.0
    %2126 = vmatpush1.msra.mxu0 0.0
    %2127 = vmatprep.subr.mxu0 0.0
    %2128 = vmatpush1.msra.mxu0 0.0
    %2129 = vmatprep.subr.mxu0 0.0
    %2130 = vmatpush1.msra.mxu0 0.0
    %2131 = vmatprep.subr.mxu0 0.0
    %2132 = vmatpush1.msra.mxu0 0.0
    %2133 = vmatprep.subr.mxu0 0.0
    %2134 = vmatpush1.msra.mxu0 0.0
    %2135 = vmatprep.subr.mxu0 0.0
    %2136 = vmatpush1.msra.mxu0 0.0
    %2137 = vmatprep.subr.mxu0 0.0
    %2138 = vmatpush1.msra.mxu0 0.0
    %2139 = vmatprep.subr.mxu0 0.0
    %2140 = vmatpush1.msra.mxu0 0.0
    %2141 = vmatprep.subr.mxu0 0.0
    %2142 = vmatpush1.msra.mxu0 0.0
    %2143 = vmatprep.subr.mxu0 0.0
    %2144 = vmatpush1.msra.mxu0 0.0
    %2145 = vmatprep.subr.mxu0 0.0
    %2146 = vmatpush1.msra.mxu0 0.0
    %2147 = vmatprep.subr.mxu0 0.0
    %2148 = vmatpush1.msra.mxu0 0.0
    %2149 = vmatprep.subr.mxu0 0.0
    %2150 = vmatpush1.msra.mxu0 0.0
    %2151 = vmatprep.subr.mxu0 0.0
    %2152 = vmatpush1.msra.mxu0 0.0
    %2153 = vmatprep.subr.mxu0 0.0
    %2154 = vmatpush1.msra.mxu0 0.0
    %2155 = vmatprep.subr.mxu0 0.0
    %2156 = vmatpush1.msra.mxu0 0.0
    %2157 = vmatprep.mubr.f32.mxu0 0.0
    %2158 = vmatmul.mubr.f32.gmra.mrb[0].mxu0 %v1957
    %v2159 = vpop.f32.mrb[0].mxu0
    %v2160 = vadd.f32 0.0, %v2159
    %v2161 = vpop.f32.mrb[0].mxu0
    %v2162 = vadd.f32 0.0, %v2161
    %2163 = vdwg.mxu0
    %v2164 = vadd.f32 %v1953, %v2089
    %v2165 = vadd.f32 %v1954, %v2091
    %v2166 = vadd.f32 %v1955, %v2160
    %v2167 = vadd.f32 %v1956, %v2162
    %v2168 = vxor.u32 %v2164, 2147483648
    %v2169 = vmul.f32 %v2168, 1.442695
    %v2170 = vpow.pop %v2169
    %v2171 = vadd.f32 %v2170, 1.0
    %v2172 = vrcp.pop %v2171
    %v2173 = vmul.f32 1.0, %v2172
    %v2174 = vxor.u32 %v2165, 2147483648
    %v2175 = vmul.f32 %v2174, 1.442695
    %v2176 = vpow.pop %v2175
    %v2177 = vadd.f32 %v2176, 1.0
    %v2178 = vrcp.pop %v2177
    %v2179 = vmul.f32 1.0, %v2178
    %v2180 = vtanh.pop %v2166
    %v2181 = vxor.u32 %v2167, 2147483648
    %v2182 = vmul.f32 %v2181, 1.442695
    %v2183 = vpow.pop %v2182
    %v2184 = vadd.f32 %v2183, 1.0
    %v2185 = vrcp.pop %v2184
    %v2186 = vmul.f32 1.0, %v2185
    %v2187 = vld [vmem:[#allocation4] sm:$0xff]
    %v2188 = vmul.f32 %v2179, %v2187
    %v2189 = vmul.f32 %v2173, %v2180
    %v2190 = vadd.f32 %v2188, %v2189
    %v2191 = vtanh.pop %v2190
    %v2192 = vmul.f32 %v2186, %v2191
    %2193 = vst [vmem:[#allocation4] sm:$0xff] %v2190
    %2194 = vst [vmem:[#allocation3] sm:$0xff] %v2192
    %s2195 = smul.u32 7, 4
    %s2196 = smul.addr %s2195, 8
    %s2197 = scalar_lea.vmem [#allocation2], %s2196
    %v2198 = vld [vmem:[%s2197] sm:$0xff]
    %v2199 = vld [vmem:[%s2197 + $0x8] sm:$0xff]
    %v2200 = vld [vmem:[%s2197 + $0x10] sm:$0xff]
    %v2201 = vld [vmem:[%s2197 + $0x18] sm:$0xff]
    %v2202 = vld [vmem:[#allocation3] sm:$0xff]
    %v2203 = vld [vmem:[#allocation10] sm:$0xff]
    %v2204 = vld [vmem:[#allocation10 + $0x8] sm:$0xff]
    %v2205 = vld [vmem:[#allocation10 + $0x10] sm:$0xff]
    %v2206 = vld [vmem:[#allocation10 + $0x18] sm:$0xff]
    %v2207 = vld [vmem:[#allocation10 + $0x20] sm:$0xff]
    %v2208 = vld [vmem:[#allocation10 + $0x28] sm:$0xff]
    %v2209 = vld [vmem:[#allocation10 + $0x30] sm:$0xff]
    %v2210 = vld [vmem:[#allocation10 + $0x38] sm:$0xff]
    %v2211 = vld [vmem:[#allocation10 + $0x40] sm:$0xff]
    %v2212 = vld [vmem:[#allocation10 + $0x48] sm:$0xff]
    %v2213 = vld [vmem:[#allocation10 + $0x50] sm:$0xff]
    %v2214 = vld [vmem:[#allocation10 + $0x58] sm:$0xff]
    %v2215 = vld [vmem:[#allocation10 + $0x60] sm:$0xff]
    %v2216 = vld [vmem:[#allocation10 + $0x68] sm:$0xff]
    %v2217 = vld [vmem:[#allocation10 + $0x70] sm:$0xff]
    %v2218 = vld [vmem:[#allocation10 + $0x78] sm:$0xff]
    %v2219 = vld [vmem:[#allocation10 + $0x80] sm:$0xff]
    %v2220 = vld [vmem:[#allocation10 + $0x88] sm:$0xff]
    %v2221 = vld [vmem:[#allocation10 + $0x90] sm:$0xff]
    %v2222 = vld [vmem:[#allocation10 + $0x98] sm:$0xff]
    %v2223 = vld [vmem:[#allocation10 + $0xa0] sm:$0xff]
    %v2224 = vld [vmem:[#allocation10 + $0xa8] sm:$0xff]
    %v2225 = vld [vmem:[#allocation10 + $0xb0] sm:$0xff]
    %v2226 = vld [vmem:[#allocation10 + $0xb8] sm:$0xff]
    %v2227 = vld [vmem:[#allocation10 + $0xc0] sm:$0xff]
    %v2228 = vld [vmem:[#allocation10 + $0xc8] sm:$0xff]
    %v2229 = vld [vmem:[#allocation10 + $0xd0] sm:$0xff]
    %v2230 = vld [vmem:[#allocation10 + $0xd8] sm:$0xff]
    %v2231 = vld [vmem:[#allocation10 + $0xe0] sm:$0xff]
    %v2232 = vld [vmem:[#allocation10 + $0xe8] sm:$0xff]
    %v2233 = vld [vmem:[#allocation10 + $0xf0] sm:$0xff]
    %v2234 = vld [vmem:[#allocation10 + $0xf8] sm:$0xff]
    %v2235 = vld [vmem:[#allocation10 + $0x100] sm:$0xff]
    %v2236 = vld [vmem:[#allocation10 + $0x108] sm:$0xff]
    %v2237 = vld [vmem:[#allocation10 + $0x110] sm:$0xff]
    %v2238 = vld [vmem:[#allocation10 + $0x118] sm:$0xff]
    %v2239 = vld [vmem:[#allocation10 + $0x120] sm:$0xff]
    %v2240 = vld [vmem:[#allocation10 + $0x128] sm:$0xff]
    %v2241 = vld [vmem:[#allocation10 + $0x130] sm:$0xff]
    %v2242 = vld [vmem:[#allocation10 + $0x138] sm:$0xff]
    %v2243 = vld [vmem:[#allocation10 + $0x140] sm:$0xff]
    %v2244 = vld [vmem:[#allocation10 + $0x148] sm:$0xff]
    %v2245 = vld [vmem:[#allocation10 + $0x150] sm:$0xff]
    %v2246 = vld [vmem:[#allocation10 + $0x158] sm:$0xff]
    %v2247 = vld [vmem:[#allocation10 + $0x160] sm:$0xff]
    %v2248 = vld [vmem:[#allocation10 + $0x168] sm:$0xff]
    %v2249 = vld [vmem:[#allocation10 + $0x170] sm:$0xff]
    %v2250 = vld [vmem:[#allocation10 + $0x178] sm:$0xff]
    %v2251 = vld [vmem:[#allocation10 + $0x180] sm:$0xff]
    %v2252 = vld [vmem:[#allocation10 + $0x188] sm:$0xff]
    %v2253 = vld [vmem:[#allocation10 + $0x190] sm:$0xff]
    %v2254 = vld [vmem:[#allocation10 + $0x198] sm:$0xff]
    %v2255 = vld [vmem:[#allocation10 + $0x1a0] sm:$0xff]
    %v2256 = vld [vmem:[#allocation10 + $0x1a8] sm:$0xff]
    %v2257 = vld [vmem:[#allocation10 + $0x1b0] sm:$0xff]
    %v2258 = vld [vmem:[#allocation10 + $0x1b8] sm:$0xff]
    %v2259 = vld [vmem:[#allocation10 + $0x1c0] sm:$0xff]
    %v2260 = vld [vmem:[#allocation10 + $0x1c8] sm:$0xff]
    %v2261 = vld [vmem:[#allocation10 + $0x1d0] sm:$0xff]
    %v2262 = vld [vmem:[#allocation10 + $0x1d8] sm:$0xff]
    %v2263 = vld [vmem:[#allocation10 + $0x1e0] sm:$0xff]
    %v2264 = vld [vmem:[#allocation10 + $0x1e8] sm:$0xff]
    %v2265 = vld [vmem:[#allocation10 + $0x1f0] sm:$0xff]
    %v2266 = vld [vmem:[#allocation10 + $0x1f8] sm:$0xff]
    %2267 = vmatprep.subr.mxu0 %v2204
    %2268 = vmatpush1.msra.mxu0 %v2203
    %2269 = vmatprep.subr.mxu0 %v2208
    %2270 = vmatpush1.msra.mxu0 %v2207
    %2271 = vmatprep.subr.mxu0 %v2212
    %2272 = vmatpush1.msra.mxu0 %v2211
    %2273 = vmatprep.subr.mxu0 %v2216
    %2274 = vmatpush1.msra.mxu0 %v2215
    %2275 = vmatprep.subr.mxu0 %v2220
    %2276 = vmatpush1.msra.mxu0 %v2219
    %2277 = vmatprep.subr.mxu0 %v2224
    %2278 = vmatpush1.msra.mxu0 %v2223
    %2279 = vmatprep.subr.mxu0 %v2228
    %2280 = vmatpush1.msra.mxu0 %v2227
    %2281 = vmatprep.subr.mxu0 %v2232
    %2282 = vmatpush1.msra.mxu0 %v2231
    %2283 = vmatprep.subr.mxu0 %v2236
    %2284 = vmatpush1.msra.mxu0 %v2235
    %2285 = vmatprep.subr.mxu0 %v2240
    %2286 = vmatpush1.msra.mxu0 %v2239
    %2287 = vmatprep.subr.mxu0 %v2244
    %2288 = vmatpush1.msra.mxu0 %v2243
    %2289 = vmatprep.subr.mxu0 %v2248
    %2290 = vmatpush1.msra.mxu0 %v2247
    %2291 = vmatprep.subr.mxu0 %v2252
    %2292 = vmatpush1.msra.mxu0 %v2251
    %2293 = vmatprep.subr.mxu0 %v2256
    %2294 = vmatpush1.msra.mxu0 %v2255
    %2295 = vmatprep.subr.mxu0 %v2260
    %2296 = vmatpush1.msra.mxu0 %v2259
    %2297 = vmatprep.subr.mxu0 %v2264
    %2298 = vmatpush1.msra.mxu0 %v2263
    %2299 = vmatprep.subr.mxu0 0.0
    %2300 = vmatpush1.msra.mxu0 0.0
    %2301 = vmatprep.subr.mxu0 0.0
    %2302 = vmatpush1.msra.mxu0 0.0
    %2303 = vmatprep.subr.mxu0 0.0
    %2304 = vmatpush1.msra.mxu0 0.0
    %2305 = vmatprep.subr.mxu0 0.0
    %2306 = vmatpush1.msra.mxu0 0.0
    %2307 = vmatprep.subr.mxu0 0.0
    %2308 = vmatpush1.msra.mxu0 0.0
    %2309 = vmatprep.subr.mxu0 0.0
    %2310 = vmatpush1.msra.mxu0 0.0
    %2311 = vmatprep.subr.mxu0 0.0
    %2312 = vmatpush1.msra.mxu0 0.0
    %2313 = vmatprep.subr.mxu0 0.0
    %2314 = vmatpush1.msra.mxu0 0.0
    %2315 = vmatprep.subr.mxu0 0.0
    %2316 = vmatpush1.msra.mxu0 0.0
    %2317 = vmatprep.subr.mxu0 0.0
    %2318 = vmatpush1.msra.mxu0 0.0
    %2319 = vmatprep.subr.mxu0 0.0
    %2320 = vmatpush1.msra.mxu0 0.0
    %2321 = vmatprep.subr.mxu0 0.0
    %2322 = vmatpush1.msra.mxu0 0.0
    %2323 = vmatprep.subr.mxu0 0.0
    %2324 = vmatpush1.msra.mxu0 0.0
    %2325 = vmatprep.subr.mxu0 0.0
    %2326 = vmatpush1.msra.mxu0 0.0
    %2327 = vmatprep.subr.mxu0 0.0
    %2328 = vmatpush1.msra.mxu0 0.0
    %2329 = vmatprep.subr.mxu0 0.0
    %2330 = vmatpush1.msra.mxu0 0.0
    %2331 = vmatprep.mubr.f32.mxu0 0.0
    %2332 = vmatmul.mubr.f32.gmra.mrb[0].mxu0 %v2202
    %v2333 = vpop.f32.mrb[0].mxu0
    %v2334 = vadd.f32 0.0, %v2333
    %v2335 = vpop.f32.mrb[0].mxu0
    %v2336 = vadd.f32 0.0, %v2335
    %2337 = vdwg.mxu0
    %2338 = vmatprep.subr.mxu0 %v2206
    %2339 = vmatpush1.msra.mxu0 %v2205
    %2340 = vmatprep.subr.mxu0 %v2210
    %2341 = vmatpush1.msra.mxu0 %v2209
    %2342 = vmatprep.subr.mxu0 %v2214
    %2343 = vmatpush1.msra.mxu0 %v2213
    %2344 = vmatprep.subr.mxu0 %v2218
    %2345 = vmatpush1.msra.mxu0 %v2217
    %2346 = vmatprep.subr.mxu0 %v2222
    %2347 = vmatpush1.msra.mxu0 %v2221
    %2348 = vmatprep.subr.mxu0 %v2226
    %2349 = vmatpush1.msra.mxu0 %v2225
    %2350 = vmatprep.subr.mxu0 %v2230
    %2351 = vmatpush1.msra.mxu0 %v2229
    %2352 = vmatprep.subr.mxu0 %v2234
    %2353 = vmatpush1.msra.mxu0 %v2233
    %2354 = vmatprep.subr.mxu0 %v2238
    %2355 = vmatpush1.msra.mxu0 %v2237
    %2356 = vmatprep.subr.mxu0 %v2242
    %2357 = vmatpush1.msra.mxu0 %v2241
    %2358 = vmatprep.subr.mxu0 %v2246
    %2359 = vmatpush1.msra.mxu0 %v2245
    %2360 = vmatprep.subr.mxu0 %v2250
    %2361 = vmatpush1.msra.mxu0 %v2249
    %2362 = vmatprep.subr.mxu0 %v2254
    %2363 = vmatpush1.msra.mxu0 %v2253
    %2364 = vmatprep.subr.mxu0 %v2258
    %2365 = vmatpush1.msra.mxu0 %v2257
    %2366 = vmatprep.subr.mxu0 %v2262
    %2367 = vmatpush1.msra.mxu0 %v2261
    %2368 = vmatprep.subr.mxu0 %v2266
    %2369 = vmatpush1.msra.mxu0 %v2265
    %2370 = vmatprep.subr.mxu0 0.0
    %2371 = vmatpush1.msra.mxu0 0.0
    %2372 = vmatprep.subr.mxu0 0.0
    %2373 = vmatpush1.msra.mxu0 0.0
    %2374 = vmatprep.subr.mxu0 0.0
    %2375 = vmatpush1.msra.mxu0 0.0
    %2376 = vmatprep.subr.mxu0 0.0
    %2377 = vmatpush1.msra.mxu0 0.0
    %2378 = vmatprep.subr.mxu0 0.0
    %2379 = vmatpush1.msra.mxu0 0.0
    %2380 = vmatprep.subr.mxu0 0.0
    %2381 = vmatpush1.msra.mxu0 0.0
    %2382 = vmatprep.subr.mxu0 0.0
    %2383 = vmatpush1.msra.mxu0 0.0
    %2384 = vmatprep.subr.mxu0 0.0
    %2385 = vmatpush1.msra.mxu0 0.0
    %2386 = vmatprep.subr.mxu0 0.0
    %2387 = vmatpush1.msra.mxu0 0.0
    %2388 = vmatprep.subr.mxu0 0.0
    %2389 = vmatpush1.msra.mxu0 0.0
    %2390 = vmatprep.subr.mxu0 0.0
    %2391 = vmatpush1.msra.mxu0 0.0
    %2392 = vmatprep.subr.mxu0 0.0
    %2393 = vmatpush1.msra.mxu0 0.0
    %2394 = vmatprep.subr.mxu0 0.0
    %2395 = vmatpush1.msra.mxu0 0.0
    %2396 = vmatprep.subr.mxu0 0.0
    %2397 = vmatpush1.msra.mxu0 0.0
    %2398 = vmatprep.subr.mxu0 0.0
    %2399 = vmatpush1.msra.mxu0 0.0
    %2400 = vmatprep.subr.mxu0 0.0
    %2401 = vmatpush1.msra.mxu0 0.0
    %2402 = vmatprep.mubr.f32.mxu0 0.0
    %2403 = vmatmul.mubr.f32.gmra.mrb[0].mxu0 %v2202
    %v2404 = vpop.f32.mrb[0].mxu0
    %v2405 = vadd.f32 0.0, %v2404
    %v2406 = vpop.f32.mrb[0].mxu0
    %v2407 = vadd.f32 0.0, %v2406
    %2408 = vdwg.mxu0
    %v2409 = vadd.f32 %v2198, %v2334
    %v2410 = vadd.f32 %v2199, %v2336
    %v2411 = vadd.f32 %v2200, %v2405
    %v2412 = vadd.f32 %v2201, %v2407
    %v2413 = vxor.u32 %v2409, 2147483648
    %v2414 = vmul.f32 %v2413, 1.442695
    %v2415 = vpow.pop %v2414
    %v2416 = vadd.f32 %v2415, 1.0
    %v2417 = vrcp.pop %v2416
    %v2418 = vmul.f32 1.0, %v2417
    %v2419 = vxor.u32 %v2410, 2147483648
    %v2420 = vmul.f32 %v2419, 1.442695
    %v2421 = vpow.pop %v2420
    %v2422 = vadd.f32 %v2421, 1.0
    %v2423 = vrcp.pop %v2422
    %v2424 = vmul.f32 1.0, %v2423
    %v2425 = vtanh.pop %v2411
    %v2426 = vxor.u32 %v2412, 2147483648
    %v2427 = vmul.f32 %v2426, 1.442695
    %v2428 = vpow.pop %v2427
    %v2429 = vadd.f32 %v2428, 1.0
    %v2430 = vrcp.pop %v2429
    %v2431 = vmul.f32 1.0, %v2430
    %v2432 = vld [vmem:[#allocation4] sm:$0xff]
    %v2433 = vmul.f32 %v2424, %v2432
    %v2434 = vmul.f32 %v2418, %v2425
    %v2435 = vadd.f32 %v2433, %v2434
    %v2436 = vtanh.pop %v2435
    %v2437 = vmul.f32 %v2431, %v2436
    %2438 = vst [vmem:[#allocation4] sm:$0xff] %v2435
    %2439 = vst [vmem:[#allocation3] sm:$0xff] %v2437
    %s2440 = smul.u32 8, 4
    %s2441 = smul.addr %s2440, 8
    %s2442 = scalar_lea.vmem [#allocation2], %s2441
    %v2443 = vld [vmem:[%s2442] sm:$0xff]
    %v2444 = vld [vmem:[%s2442 + $0x8] sm:$0xff]
    %v2445 = vld [vmem:[%s2442 + $0x10] sm:$0xff]
    %v2446 = vld [vmem:[%s2442 + $0x18] sm:$0xff]
    %v2447 = vld [vmem:[#allocation3] sm:$0xff]
    %v2448 = vld [vmem:[#allocation10] sm:$0xff]
    %v2449 = vld [vmem:[#allocation10 + $0x8] sm:$0xff]
    %v2450 = vld [vmem:[#allocation10 + $0x10] sm:$0xff]
    %v2451 = vld [vmem:[#allocation10 + $0x18] sm:$0xff]
    %v2452 = vld [vmem:[#allocation10 + $0x20] sm:$0xff]
    %v2453 = vld [vmem:[#allocation10 + $0x28] sm:$0xff]
    %v2454 = vld [vmem:[#allocation10 + $0x30] sm:$0xff]
    %v2455 = vld [vmem:[#allocation10 + $0x38] sm:$0xff]
    %v2456 = vld [vmem:[#allocation10 + $0x40] sm:$0xff]
    %v2457 = vld [vmem:[#allocation10 + $0x48] sm:$0xff]
    %v2458 = vld [vmem:[#allocation10 + $0x50] sm:$0xff]
    %v2459 = vld [vmem:[#allocation10 + $0x58] sm:$0xff]
    %v2460 = vld [vmem:[#allocation10 + $0x60] sm:$0xff]
    %v2461 = vld [vmem:[#allocation10 + $0x68] sm:$0xff]
    %v2462 = vld [vmem:[#allocation10 + $0x70] sm:$0xff]
    %v2463 = vld [vmem:[#allocation10 + $0x78] sm:$0xff]
    %v2464 = vld [vmem:[#allocation10 + $0x80] sm:$0xff]
    %v2465 = vld [vmem:[#allocation10 + $0x88] sm:$0xff]
    %v2466 = vld [vmem:[#allocation10 + $0x90] sm:$0xff]
    %v2467 = vld [vmem:[#allocation10 + $0x98] sm:$0xff]
    %v2468 = vld [vmem:[#allocation10 + $0xa0] sm:$0xff]
    %v2469 = vld [vmem:[#allocation10 + $0xa8] sm:$0xff]
    %v2470 = vld [vmem:[#allocation10 + $0xb0] sm:$0xff]
    %v2471 = vld [vmem:[#allocation10 + $0xb8] sm:$0xff]
    %v2472 = vld [vmem:[#allocation10 + $0xc0] sm:$0xff]
    %v2473 = vld [vmem:[#allocation10 + $0xc8] sm:$0xff]
    %v2474 = vld [vmem:[#allocation10 + $0xd0] sm:$0xff]
    %v2475 = vld [vmem:[#allocation10 + $0xd8] sm:$0xff]
    %v2476 = vld [vmem:[#allocation10 + $0xe0] sm:$0xff]
    %v2477 = vld [vmem:[#allocation10 + $0xe8] sm:$0xff]
    %v2478 = vld [vmem:[#allocation10 + $0xf0] sm:$0xff]
    %v2479 = vld [vmem:[#allocation10 + $0xf8] sm:$0xff]
    %v2480 = vld [vmem:[#allocation10 + $0x100] sm:$0xff]
    %v2481 = vld [vmem:[#allocation10 + $0x108] sm:$0xff]
    %v2482 = vld [vmem:[#allocation10 + $0x110] sm:$0xff]
    %v2483 = vld [vmem:[#allocation10 + $0x118] sm:$0xff]
    %v2484 = vld [vmem:[#allocation10 + $0x120] sm:$0xff]
    %v2485 = vld [vmem:[#allocation10 + $0x128] sm:$0xff]
    %v2486 = vld [vmem:[#allocation10 + $0x130] sm:$0xff]
    %v2487 = vld [vmem:[#allocation10 + $0x138] sm:$0xff]
    %v2488 = vld [vmem:[#allocation10 + $0x140] sm:$0xff]
    %v2489 = vld [vmem:[#allocation10 + $0x148] sm:$0xff]
    %v2490 = vld [vmem:[#allocation10 + $0x150] sm:$0xff]
    %v2491 = vld [vmem:[#allocation10 + $0x158] sm:$0xff]
    %v2492 = vld [vmem:[#allocation10 + $0x160] sm:$0xff]
    %v2493 = vld [vmem:[#allocation10 + $0x168] sm:$0xff]
    %v2494 = vld [vmem:[#allocation10 + $0x170] sm:$0xff]
    %v2495 = vld [vmem:[#allocation10 + $0x178] sm:$0xff]
    %v2496 = vld [vmem:[#allocation10 + $0x180] sm:$0xff]
    %v2497 = vld [vmem:[#allocation10 + $0x188] sm:$0xff]
    %v2498 = vld [vmem:[#allocation10 + $0x190] sm:$0xff]
    %v2499 = vld [vmem:[#allocation10 + $0x198] sm:$0xff]
    %v2500 = vld [vmem:[#allocation10 + $0x1a0] sm:$0xff]
    %v2501 = vld [vmem:[#allocation10 + $0x1a8] sm:$0xff]
    %v2502 = vld [vmem:[#allocation10 + $0x1b0] sm:$0xff]
    %v2503 = vld [vmem:[#allocation10 + $0x1b8] sm:$0xff]
    %v2504 = vld [vmem:[#allocation10 + $0x1c0] sm:$0xff]
    %v2505 = vld [vmem:[#allocation10 + $0x1c8] sm:$0xff]
    %v2506 = vld [vmem:[#allocation10 + $0x1d0] sm:$0xff]
    %v2507 = vld [vmem:[#allocation10 + $0x1d8] sm:$0xff]
    %v2508 = vld [vmem:[#allocation10 + $0x1e0] sm:$0xff]
    %v2509 = vld [vmem:[#allocation10 + $0x1e8] sm:$0xff]
    %v2510 = vld [vmem:[#allocation10 + $0x1f0] sm:$0xff]
    %v2511 = vld [vmem:[#allocation10 + $0x1f8] sm:$0xff]
    %2512 = vmatprep.subr.mxu0 %v2449
    %2513 = vmatpush1.msra.mxu0 %v2448
    %2514 = vmatprep.subr.mxu0 %v2453
    %2515 = vmatpush1.msra.mxu0 %v2452
    %2516 = vmatprep.subr.mxu0 %v2457
    %2517 = vmatpush1.msra.mxu0 %v2456
    %2518 = vmatprep.subr.mxu0 %v2461
    %2519 = vmatpush1.msra.mxu0 %v2460
    %2520 = vmatprep.subr.mxu0 %v2465
    %2521 = vmatpush1.msra.mxu0 %v2464
    %2522 = vmatprep.subr.mxu0 %v2469
    %2523 = vmatpush1.msra.mxu0 %v2468
    %2524 = vmatprep.subr.mxu0 %v2473
    %2525 = vmatpush1.msra.mxu0 %v2472
    %2526 = vmatprep.subr.mxu0 %v2477
    %2527 = vmatpush1.msra.mxu0 %v2476
    %2528 = vmatprep.subr.mxu0 %v2481
    %2529 = vmatpush1.msra.mxu0 %v2480
    %2530 = vmatprep.subr.mxu0 %v2485
    %2531 = vmatpush1.msra.mxu0 %v2484
    %2532 = vmatprep.subr.mxu0 %v2489
    %2533 = vmatpush1.msra.mxu0 %v2488
    %2534 = vmatprep.subr.mxu0 %v2493
    %2535 = vmatpush1.msra.mxu0 %v2492
    %2536 = vmatprep.subr.mxu0 %v2497
    %2537 = vmatpush1.msra.mxu0 %v2496
    %2538 = vmatprep.subr.mxu0 %v2501
    %2539 = vmatpush1.msra.mxu0 %v2500
    %2540 = vmatprep.subr.mxu0 %v2505
    %2541 = vmatpush1.msra.mxu0 %v2504
    %2542 = vmatprep.subr.mxu0 %v2509
    %2543 = vmatpush1.msra.mxu0 %v2508
    %2544 = vmatprep.subr.mxu0 0.0
    %2545 = vmatpush1.msra.mxu0 0.0
    %2546 = vmatprep.subr.mxu0 0.0
    %2547 = vmatpush1.msra.mxu0 0.0
    %2548 = vmatprep.subr.mxu0 0.0
    %2549 = vmatpush1.msra.mxu0 0.0
    %2550 = vmatprep.subr.mxu0 0.0
    %2551 = vmatpush1.msra.mxu0 0.0
    %2552 = vmatprep.subr.mxu0 0.0
    %2553 = vmatpush1.msra.mxu0 0.0
    %2554 = vmatprep.subr.mxu0 0.0
    %2555 = vmatpush1.msra.mxu0 0.0
    %2556 = vmatprep.subr.mxu0 0.0
    %2557 = vmatpush1.msra.mxu0 0.0
    %2558 = vmatprep.subr.mxu0 0.0
    %2559 = vmatpush1.msra.mxu0 0.0
    %2560 = vmatprep.subr.mxu0 0.0
    %2561 = vmatpush1.msra.mxu0 0.0
    %2562 = vmatprep.subr.mxu0 0.0
    %2563 = vmatpush1.msra.mxu0 0.0
    %2564 = vmatprep.subr.mxu0 0.0
    %2565 = vmatpush1.msra.mxu0 0.0
    %2566 = vmatprep.subr.mxu0 0.0
    %2567 = vmatpush1.msra.mxu0 0.0
    %2568 = vmatprep.subr.mxu0 0.0
    %2569 = vmatpush1.msra.mxu0 0.0
    %2570 = vmatprep.subr.mxu0 0.0
    %2571 = vmatpush1.msra.mxu0 0.0
    %2572 = vmatprep.subr.mxu0 0.0
    %2573 = vmatpush1.msra.mxu0 0.0
    %2574 = vmatprep.subr.mxu0 0.0
    %2575 = vmatpush1.msra.mxu0 0.0
    %2576 = vmatprep.mubr.f32.mxu0 0.0
    %2577 = vmatmul.mubr.f32.gmra.mrb[0].mxu0 %v2447
    %v2578 = vpop.f32.mrb[0].mxu0
    %v2579 = vadd.f32 0.0, %v2578
    %v2580 = vpop.f32.mrb[0].mxu0
    %v2581 = vadd.f32 0.0, %v2580
    %2582 = vdwg.mxu0
    %2583 = vmatprep.subr.mxu0 %v2451
    %2584 = vmatpush1.msra.mxu0 %v2450
    %2585 = vmatprep.subr.mxu0 %v2455
    %2586 = vmatpush1.msra.mxu0 %v2454
    %2587 = vmatprep.subr.mxu0 %v2459
    %2588 = vmatpush1.msra.mxu0 %v2458
    %2589 = vmatprep.subr.mxu0 %v2463
    %2590 = vmatpush1.msra.mxu0 %v2462
    %2591 = vmatprep.subr.mxu0 %v2467
    %2592 = vmatpush1.msra.mxu0 %v2466
    %2593 = vmatprep.subr.mxu0 %v2471
    %2594 = vmatpush1.msra.mxu0 %v2470
    %2595 = vmatprep.subr.mxu0 %v2475
    %2596 = vmatpush1.msra.mxu0 %v2474
    %2597 = vmatprep.subr.mxu0 %v2479
    %2598 = vmatpush1.msra.mxu0 %v2478
    %2599 = vmatprep.subr.mxu0 %v2483
    %2600 = vmatpush1.msra.mxu0 %v2482
    %2601 = vmatprep.subr.mxu0 %v2487
    %2602 = vmatpush1.msra.mxu0 %v2486
    %2603 = vmatprep.subr.mxu0 %v2491
    %2604 = vmatpush1.msra.mxu0 %v2490
    %2605 = vmatprep.subr.mxu0 %v2495
    %2606 = vmatpush1.msra.mxu0 %v2494
    %2607 = vmatprep.subr.mxu0 %v2499
    %2608 = vmatpush1.msra.mxu0 %v2498
    %2609 = vmatprep.subr.mxu0 %v2503
    %2610 = vmatpush1.msra.mxu0 %v2502
    %2611 = vmatprep.subr.mxu0 %v2507
    %2612 = vmatpush1.msra.mxu0 %v2506
    %2613 = vmatprep.subr.mxu0 %v2511
    %2614 = vmatpush1.msra.mxu0 %v2510
    %2615 = vmatprep.subr.mxu0 0.0
    %2616 = vmatpush1.msra.mxu0 0.0
    %2617 = vmatprep.subr.mxu0 0.0
    %2618 = vmatpush1.msra.mxu0 0.0
    %2619 = vmatprep.subr.mxu0 0.0
    %2620 = vmatpush1.msra.mxu0 0.0
    %2621 = vmatprep.subr.mxu0 0.0
    %2622 = vmatpush1.msra.mxu0 0.0
    %2623 = vmatprep.subr.mxu0 0.0
    %2624 = vmatpush1.msra.mxu0 0.0
    %2625 = vmatprep.subr.mxu0 0.0
    %2626 = vmatpush1.msra.mxu0 0.0
    %2627 = vmatprep.subr.mxu0 0.0
    %2628 = vmatpush1.msra.mxu0 0.0
    %2629 = vmatprep.subr.mxu0 0.0
    %2630 = vmatpush1.msra.mxu0 0.0
    %2631 = vmatprep.subr.mxu0 0.0
    %2632 = vmatpush1.msra.mxu0 0.0
    %2633 = vmatprep.subr.mxu0 0.0
    %2634 = vmatpush1.msra.mxu0 0.0
    %2635 = vmatprep.subr.mxu0 0.0
    %2636 = vmatpush1.msra.mxu0 0.0
    %2637 = vmatprep.subr.mxu0 0.0
    %2638 = vmatpush1.msra.mxu0 0.0
    %2639 = vmatprep.subr.mxu0 0.0
    %2640 = vmatpush1.msra.mxu0 0.0
    %2641 = vmatprep.subr.mxu0 0.0
    %2642 = vmatpush1.msra.mxu0 0.0
    %2643 = vmatprep.subr.mxu0 0.0
    %2644 = vmatpush1.msra.mxu0 0.0
    %2645 = vmatprep.subr.mxu0 0.0
    %2646 = vmatpush1.msra.mxu0 0.0
    %2647 = vmatprep.mubr.f32.mxu0 0.0
    %2648 = vmatmul.mubr.f32.gmra.mrb[0].mxu0 %v2447
    %v2649 = vpop.f32.mrb[0].mxu0
    %v2650 = vadd.f32 0.0, %v2649
    %v2651 = vpop.f32.mrb[0].mxu0
    %v2652 = vadd.f32 0.0, %v2651
    %2653 = vdwg.mxu0
    %v2654 = vadd.f32 %v2443, %v2579
    %v2655 = vadd.f32 %v2444, %v2581
    %v2656 = vadd.f32 %v2445, %v2650
    %v2657 = vadd.f32 %v2446, %v2652
    %v2658 = vxor.u32 %v2654, 2147483648
    %v2659 = vmul.f32 %v2658, 1.442695
    %v2660 = vpow.pop %v2659
    %v2661 = vadd.f32 %v2660, 1.0
    %v2662 = vrcp.pop %v2661
    %v2663 = vmul.f32 1.0, %v2662
    %v2664 = vxor.u32 %v2655, 2147483648
    %v2665 = vmul.f32 %v2664, 1.442695
    %v2666 = vpow.pop %v2665
    %v2667 = vadd.f32 %v2666, 1.0
    %v2668 = vrcp.pop %v2667
    %v2669 = vmul.f32 1.0, %v2668
    %v2670 = vtanh.pop %v2656
    %v2671 = vxor.u32 %v2657, 2147483648
    %v2672 = vmul.f32 %v2671, 1.442695
    %v2673 = vpow.pop %v2672
    %v2674 = vadd.f32 %v2673, 1.0
    %v2675 = vrcp.pop %v2674
    %v2676 = vmul.f32 1.0, %v2675
    %v2677 = vld [vmem:[#allocation4] sm:$0xff]
    %v2678 = vmul.f32 %v2669, %v2677
    %v2679 = vmul.f32 %v2663, %v2670
    %v2680 = vadd.f32 %v2678, %v2679
    %v2681 = vtanh.pop %v2680
    %v2682 = vmul.f32 %v2676, %v2681
    %2683 = vst [vmem:[#allocation4] sm:$0xff] %v2680
    %2684 = vst [vmem:[#allocation3] sm:$0xff] %v2682
    %v2685 = vld [vmem:[#allocation3] sm:$0xff]
    %v2686 = vld [vmem:[%s5] sm:$0xff]
    %v2687 = vld [vmem:[%s5 + $0x8] sm:$0xff]
    %v2688 = vld [vmem:[%s5 + $0x10] sm:$0xff]
    %v2689 = vld [vmem:[%s5 + $0x18] sm:$0xff]
    %v2690 = vld [vmem:[%s5 + $0x20] sm:$0xff]
    %v2691 = vld [vmem:[%s5 + $0x28] sm:$0xff]
    %v2692 = vld [vmem:[%s5 + $0x30] sm:$0xff]
    %v2693 = vld [vmem:[%s5 + $0x38] sm:$0xff]
    %v2694 = vld [vmem:[%s5 + $0x40] sm:$0xff]
    %v2695 = vld [vmem:[%s5 + $0x48] sm:$0xff]
    %v2696 = vld [vmem:[%s5 + $0x50] sm:$0xff]
    %v2697 = vld [vmem:[%s5 + $0x58] sm:$0xff]
    %v2698 = vld [vmem:[%s5 + $0x60] sm:$0xff]
    %v2699 = vld [vmem:[%s5 + $0x68] sm:$0xff]
    %v2700 = vld [vmem:[%s5 + $0x70] sm:$0xff]
    %v2701 = vld [vmem:[%s5 + $0x78] sm:$0xff]
    %v2702 = vld [vmem:[%s6] sm:$0x1]
    %v2704 = vlaneseq
    %v2705 = vshrl.u32 %v2704, 7
    %v2706 = vsub.s32 0, %v2705
    %v2707 = vrot.slane %v2702, %v2706
    %2709 = vmatprep.subr.mxu0 0.0
    %2710 = vmatpush1.msra.mxu0 %v2686
    %2711 = vmatprep.subr.mxu0 0.0
    %2712 = vmatpush1.msra.mxu0 %v2687
    %2713 = vmatprep.subr.mxu0 0.0
    %2714 = vmatpush1.msra.mxu0 %v2688
    %2715 = vmatprep.subr.mxu0 0.0
    %2716 = vmatpush1.msra.mxu0 %v2689
    %2717 = vmatprep.subr.mxu0 0.0
    %2718 = vmatpush1.msra.mxu0 %v2690
    %2719 = vmatprep.subr.mxu0 0.0
    %2720 = vmatpush1.msra.mxu0 %v2691
    %2721 = vmatprep.subr.mxu0 0.0
    %2722 = vmatpush1.msra.mxu0 %v2692
    %2723 = vmatprep.subr.mxu0 0.0
    %2724 = vmatpush1.msra.mxu0 %v2693
    %2725 = vmatprep.subr.mxu0 0.0
    %2726 = vmatpush1.msra.mxu0 %v2694
    %2727 = vmatprep.subr.mxu0 0.0
    %2728 = vmatpush1.msra.mxu0 %v2695
    %2729 = vmatprep.subr.mxu0 0.0
    %2730 = vmatpush1.msra.mxu0 %v2696
    %2731 = vmatprep.subr.mxu0 0.0
    %2732 = vmatpush1.msra.mxu0 %v2697
    %2733 = vmatprep.subr.mxu0 0.0
    %2734 = vmatpush1.msra.mxu0 %v2698
    %2735 = vmatprep.subr.mxu0 0.0
    %2736 = vmatpush1.msra.mxu0 %v2699
    %2737 = vmatprep.subr.mxu0 0.0
    %2738 = vmatpush1.msra.mxu0 %v2700
    %2739 = vmatprep.subr.mxu0 0.0
    %2740 = vmatpush1.msra.mxu0 %v2701
    %2741 = vmatprep.subr.mxu0 0.0
    %2742 = vmatpush1.msra.mxu0 0.0
    %2743 = vmatprep.subr.mxu0 0.0
    %2744 = vmatpush1.msra.mxu0 0.0
    %2745 = vmatprep.subr.mxu0 0.0
    %2746 = vmatpush1.msra.mxu0 0.0
    %2747 = vmatprep.subr.mxu0 0.0
    %2748 = vmatpush1.msra.mxu0 0.0
    %2749 = vmatprep.subr.mxu0 0.0
    %2750 = vmatpush1.msra.mxu0 0.0
    %2751 = vmatprep.subr.mxu0 0.0
    %2752 = vmatpush1.msra.mxu0 0.0
    %2753 = vmatprep.subr.mxu0 0.0
    %2754 = vmatpush1.msra.mxu0 0.0
    %2755 = vmatprep.subr.mxu0 0.0
    %2756 = vmatpush1.msra.mxu0 0.0
    %2757 = vmatprep.subr.mxu0 0.0
    %2758 = vmatpush1.msra.mxu0 0.0
    %2759 = vmatprep.subr.mxu0 0.0
    %2760 = vmatpush1.msra.mxu0 0.0
    %2761 = vmatprep.subr.mxu0 0.0
    %2762 = vmatpush1.msra.mxu0 0.0
    %2763 = vmatprep.subr.mxu0 0.0
    %2764 = vmatpush1.msra.mxu0 0.0
    %2765 = vmatprep.subr.mxu0 0.0
    %2766 = vmatpush1.msra.mxu0 0.0
    %2767 = vmatprep.subr.mxu0 0.0
    %2768 = vmatpush1.msra.mxu0 0.0
    %2769 = vmatprep.subr.mxu0 0.0
    %2770 = vmatpush1.msra.mxu0 0.0
    %2771 = vmatprep.subr.mxu0 0.0
    %2772 = vmatpush1.msra.mxu0 0.0
    %2773 = vmatprep.mubr.f32.mxu0 0.0
    %2774 = vmatmul.mubr.f32.gmra.mrb[0].mxu0 %v2685
    %v2775 = vpop.f32.mrb[0].mxu0
    %v2776 = vadd.f32 %v2707, %v2775
    %v2777 = vpop.f32.mrb[0].mxu0
    %2778 = vdwg.mxu0
    %2779 = vst [vmem:[%s7] sm:$0xff] %v2776
    // Predicated region
    $region46: #{lstm_dqn_forward.1} parent=1 // pred_check
      _
    $region47: #{lstm_dqn_forward.1} parent=1 // pred_check_branch
      %2781 = sbr.rel (0) target = $region49
    $region48: #{lstm_dqn_forward.1} parent=1 // pred_region
      _
    $region49: #{lstm_dqn_forward.1} parent=1 // pred_fallthru
      _
    // Predicated region
    $region50: #{lstm_dqn_forward.1} parent=1 // pred_check
      _
    $region51: #{lstm_dqn_forward.1} parent=1 // pred_check_branch
      %2783 = sbr.rel (0) target = $region53
    $region52: #{lstm_dqn_forward.1} parent=1 // pred_region
      _
    $region53: #{lstm_dqn_forward.1} parent=1 // pred_fallthru
      _
    %2784 = vsyncpa [#allocation6], 1
    %2785 = vsyncpa [#allocation8], 1
    %2786 = vsyncpa [#allocation11], 1

</llo_original>
